<compile_context>
chip_gen: v5e
topology: v5e:2x2
jax: 0.10.0
libtpu: 0.0.40
codegen_flags: <defaults>
</compile_context>

<pallas_src>
import math
import functools

import jax
import jax.numpy as jnp
from jax import lax
from jax.experimental import pallas as pl
from jax.experimental.pallas import tpu as pltpu

LN_EPS = 1e-5
_MASK_NEG = -1e9      # safe large-negative mask value (finfo.min + finfo.min would overflow to -inf)


def _layernorm(v, g, b):
    mu = jnp.mean(v, axis=-1, keepdims=True)
    var = jnp.mean((v - mu) ** 2, axis=-1, keepdims=True)
    return (v - mu) * lax.rsqrt(var + LN_EPS) * g + b


def _gelu_new(x):
    # GPT-2 "gelu_new" (tanh approximation)
    return 0.5 * x * (1.0 + jnp.tanh(math.sqrt(2.0 / math.pi) * (x + 0.044715 * x * x * x)))


def _layer_kernel(n_head,
                  x_ref, mask_ref, gate_ref,
                  ln1_g_ref, ln1_b_ref,
                  wqkv_ref, bqkv_ref, wo_ref, bo_ref,
                  ln2_g_ref, ln2_b_ref,
                  wfc_ref, bfc_ref, wmp_ref, bmp_ref,
                  o_ref,
                  k_scr, v_scr, ctx_scr):
    qi = pl.program_id(1)
    S, D = x_ref.shape[1], x_ref.shape[2]
    tq = o_ref.shape[1]
    hd = D // n_head
    inv_scale = 1.0 / math.sqrt(hd)

    # ---- once per batch element: K/V projection of ln_1(x) over the FULL sequence -> VMEM scratch ----
    @pl.when(qi == 0)
    def _():
        h_full = _layernorm(x_ref[0], ln1_g_ref[...], ln1_b_ref[...]).astype(jnp.bfloat16)
        kv = jnp.dot(h_full, wqkv_ref[:, D:], preferred_element_type=jnp.float32) + bqkv_ref[:, D:]
        k_scr[...] = kv[:, :D].astype(jnp.bfloat16)
        v_scr[...] = kv[:, D:].astype(jnp.bfloat16)

    # ---- per query tile: q projection (1/sqrt(hd) folded in), lane-dense slice of the full x block ----
    row0 = pl.multiple_of(qi * tq, tq)
    x_t = x_ref[0, pl.ds(row0, tq), :]                                    # (tq, D) f32 residual stream
    h_t = _layernorm(x_t, ln1_g_ref[...], ln1_b_ref[...]).astype(jnp.bfloat16)
    q_t = ((jnp.dot(h_t, wqkv_ref[:, :D], preferred_element_type=jnp.float32)
            + bqkv_ref[:, :D]) * inv_scale).astype(jnp.bfloat16)          # (tq, D) bf16

    # causal mask built on the VPU (no (S,S) causal DMA); external additive mask DMA'd per tile.
    rows = row0 + lax.broadcasted_iota(jnp.int32, (tq, S), 0)
    cols = lax.broadcasted_iota(jnp.int32, (tq, S), 1)
    bias = mask_ref[...] + jnp.where(cols <= rows, 0.0, _MASK_NEG)        # (tq, S) f32

    # ---- per-head attention: static lane slices, no transposes, no concatenate ----
    for h_i in range(n_head):
        sl = slice(h_i * hd, (h_i + 1) * hd)
        s = lax.dot_general(q_t[:, sl], k_scr[:, sl],
                            (((1,), (1,)), ((), ())),
                            preferred_element_type=jnp.float32)           # (tq, S) f32
        s = s + bias
        m = jnp.max(s, axis=-1, keepdims=True)
        p = jnp.exp((s - m).astype(jnp.bfloat16))                         # bf16 exp on the EUP
        denom = jnp.sum(p.astype(jnp.float32), axis=-1, keepdims=True)    # f32 row sum
        ctx = jnp.dot(p, v_scr[:, sl], preferred_element_type=jnp.float32)  # (tq, hd) unnormalised
        ctx_scr[:, sl] = (ctx * pl.reciprocal(denom, approx=True)).astype(jnp.bfloat16)

    attn = jnp.dot(ctx_scr[...], wo_ref[...], preferred_element_type=jnp.float32) + bo_ref[...]
    x1 = x_t + attn                                                        # (tq, D) f32

    # ---- ln_2 + MLP (bf16 MXU, f32 accumulation) ----
    h2 = _layernorm(x1, ln2_g_ref[...], ln2_b_ref[...]).astype(jnp.bfloat16)
    ff = jnp.dot(h2, wfc_ref[...], preferred_element_type=jnp.float32) + bfc_ref[...]
    ff = _gelu_new(ff).astype(jnp.bfloat16)
    ff = jnp.dot(ff, wmp_ref[...], preferred_element_type=jnp.float32) + bmp_ref[...]
    x2 = x1 + ff

    # ---- gating: (tq, 1) gate broadcast in-register across lanes ----
    o_ref[0] = (x2 * gate_ref[0]).astype(o_ref.dtype)


def _vmem_limit_bytes():
    # ~3/4 of physical VMEM: 48 MiB on v7x (64 MiB), 96 MiB on v5e/v6e (128 MiB).
    try:
        cap = int(pltpu.get_tpu_info().vmem_capacity_bytes)
    except Exception:
        cap = 64 * 1024 * 1024
    return (cap // 4) * 3


def _as_bf16(w):
    return w if w.dtype == jnp.bfloat16 else w.astype(jnp.bfloat16)


def prepare_params(params):
    """Cast matmul weights to bf16 once (MXU-native); LN params and biases stay f32."""
    p = dict(params)
    for k in ("w_qkv", "w_ao", "w_fc", "w_mp"):
        p[k] = _as_bf16(p[k])
    return p


def phase_controlled_layer(x, attention_mask, gating_value, params, n_head,
                           *, q_block=256, single_buffer_weights=True):
    B, S, D = x.shape
    assert D % n_head == 0, "hidden size must be divisible by n_head"

    tq = min(q_block, S)
    if S % tq != 0 or tq % 8 != 0:
        raise ValueError(f"q_block={tq} must divide S={S} and be a multiple of 8")
    n_q = S // tq

    # External additive mask (PyTorch adds (1 - mask) * finfo.min; we use a safe -1e9 so that
    # causal + external masking never overflows to -inf / NaN -- same softmax result).
    ext_mask = ((1.0 - attention_mask.astype(jnp.float32)) * _MASK_NEG)     # (S, S) f32

    if gating_value is None:
        gating_value = jnp.ones((B, S), x.dtype)
    gate = gating_value.astype(x.dtype).reshape(B, S, 1)                    # (B, S, 1) - no D broadcast

    w_qkv = _as_bf16(params["w_qkv"])
    w_ao = _as_bf16(params["w_ao"])
    w_fc = _as_bf16(params["w_fc"])
    w_mp = _as_bf16(params["w_mp"])

    weight_mode = pl.Buffered(1) if single_buffer_weights else None

    def const(shape):
        idx = lambda b, qi: (0,) * len(shape)
        if weight_mode is None:
            return pl.BlockSpec(shape, idx)
        return pl.BlockSpec(shape, idx, pipeline_mode=weight_mode)          # fetched once, 1 buffer

    grid_spec = pltpu.PrefetchScalarGridSpec(
        num_scalar_prefetch=0,
        grid=(B, n_q),
        in_specs=[
            pl.BlockSpec((1, S, D), lambda b, qi: (b, 0, 0)),    # x: full sequence, fetched once per b
            pl.BlockSpec((tq, S), lambda b, qi: (qi, 0)),        # external additive mask tile
            pl.BlockSpec((1, tq, 1), lambda b, qi: (b, qi, 0)),  # gating value (broadcast in kernel)
            const((1, D)), const((1, D)),                        # ln_1 gamma/beta
            const((D, 3 * D)), const((1, 3 * D)),                # c_attn (bf16 W, f32 b)
            const((D, D)), const((1, D)),                        # attn c_proj
            const((1, D)), const((1, D)),                        # ln_2 gamma/beta
            const((D, 4 * D)), const((1, 4 * D)),                # mlp c_fc
            const((4 * D, D)), const((1, D)),                    # mlp c_proj
        ],
        out_specs=pl.BlockSpec((1, tq, D), lambda b, qi: (b, qi, 0)),
        scratch_shapes=[
            pltpu.VMEM((S, D), jnp.bfloat16),     # K (full sequence, persists across query tiles)
            pltpu.VMEM((S, D), jnp.bfloat16),     # V
            pltpu.VMEM((tq, D), jnp.bfloat16),    # merged-head attention context
        ],
    )

    kernel = functools.partial(_layer_kernel, n_head)
    return pl.pallas_call(
        kernel,
        out_shape=jax.ShapeDtypeStruct((B, S, D), x.dtype),
        grid_spec=grid_spec,
        compiler_params=pltpu.CompilerParams(
            # batch axis shards across TensorCores (v7x); the query-tile axis must stay sequential
            # because K/V scratch is computed at qi == 0 and reused by later tiles of the same b.
            dimension_semantics=("parallel", "arbitrary"),
            vmem_limit_bytes=_vmem_limit_bytes(),
        ),
    )(x, ext_mask, gate,
      params["ln1_g"], params["ln1_b"],
      w_qkv, params["b_qkv"], w_ao, params["b_ao"],
      params["ln2_g"], params["ln2_b"],
      w_fc, params["b_fc"], w_mp, params["b_mp"])


# ---------------- pure-JAX f32 reference (faithful to the PyTorch forward) ----------------
def reference_forward(x, attention_mask, gating_value, p, n_head):
    B, S, D = x.shape
    hd = D // n_head
    neg_min = jnp.finfo(x.dtype).min
    add_mask = (1.0 - attention_mask) * neg_min

    def ln(v, g, b):
        mu = jnp.mean(v, axis=-1, keepdims=True)
        var = jnp.mean((v - mu) ** 2, axis=-1, keepdims=True)
        return (v - mu) / jnp.sqrt(var + LN_EPS) * g + b

    h = ln(x, p["ln1_g"], p["ln1_b"])
    qkv = h @ p["w_qkv"] + p["b_qkv"]
    q, k, v = jnp.split(qkv, 3, axis=-1)
    q = q.reshape(B, S, n_head, hd).transpose(0, 2, 1, 3)
    k = k.reshape(B, S, n_head, hd).transpose(0, 2, 1, 3)
    v = v.reshape(B, S, n_head, hd).transpose(0, 2, 1, 3)
    s = jnp.einsum("bhqd,bhkd->bhqk", q, k) / math.sqrt(hd)
    causal = jnp.tril(jnp.ones((S, S), bool))
    s = jnp.where(causal[None, None], s, neg_min)
    s = s + add_mask[None, None]
    pattn = jax.nn.softmax(s, axis=-1)
    a = jnp.einsum("bhqk,bhkd->bhqd", pattn, v).transpose(0, 2, 1, 3).reshape(B, S, D)
    a = a @ p["w_ao"] + p["b_ao"]
    x1 = x + a
    h2 = ln(x1, p["ln2_g"], p["ln2_b"])
    ff = h2 @ p["w_fc"] + p["b_fc"]
    ff = 0.5 * ff * (1.0 + jnp.tanh(math.sqrt(2.0 / math.pi) * (ff + 0.044715 * ff ** 3)))
    ff = ff @ p["w_mp"] + p["b_mp"]
    x2 = x1 + ff
    return x2 * gating_value[..., None]


def make_params(key, D):
    ks = jax.random.split(key, 4)
    std = 0.02
    return {
        "ln1_g": jnp.ones((1, D), jnp.float32),
        "ln1_b": jnp.zeros((1, D), jnp.float32),
        "w_qkv": (std * jax.random.normal(ks[0], (D, 3 * D))).astype(jnp.float32),
        "b_qkv": jnp.zeros((1, 3 * D), jnp.float32),
        "w_ao": (std * jax.random.normal(ks[1], (D, D))).astype(jnp.float32),
        "b_ao": jnp.zeros((1, D), jnp.float32),
        "ln2_g": jnp.ones((1, D), jnp.float32),
        "ln2_b": jnp.zeros((1, D), jnp.float32),
        "w_fc": (std * jax.random.normal(ks[2], (D, 4 * D))).astype(jnp.float32),
        "b_fc": jnp.zeros((1, 4 * D), jnp.float32),
        "w_mp": (std * jax.random.normal(ks[3], (4 * D, D))).astype(jnp.float32),
        "b_mp": jnp.zeros((1, D), jnp.float32),
    }


if __name__ == "__main__":
    # Small, lane-aligned demo shapes (D = one full lane width; two query tiles exercise the tiled path).
    B, S, D, H = 2, 32, 128, 4
    Q_BLOCK = 16

    key = jax.random.PRNGKey(0)
    kx, kg, kp = jax.random.split(key, 3)

    x = jax.random.normal(kx, (B, S, D), dtype=jnp.float32)
    # attention mask: 1 = attend, 0 = masked; mask out the last key position
    attention_mask = jnp.ones((S, S), jnp.float32).at[:, -1].set(0.0)
    gating_value = jax.nn.sigmoid(jax.random.normal(kg, (B, S), dtype=jnp.float32))
    params = make_params(kp, D)
    kernel_params = prepare_params(params)          # bf16 weight cast happens ONCE, not per call

    try:
        out = phase_controlled_layer(x, attention_mask, gating_value, kernel_params, H,
                                     q_block=Q_BLOCK, single_buffer_weights=True)
    except Exception:
        # version-compat fallback: pl.Buffered(1) (single-buffered constant weights) unsupported
        out = phase_controlled_layer(x, attention_mask, gating_value, kernel_params, H,
                                     q_block=Q_BLOCK, single_buffer_weights=False)
    out = jax.block_until_ready(out)

    ref = reference_forward(x, attention_mask, gating_value, params, H)
    assert out.shape == (B, S, D)
    # bf16 MXU inputs + bf16 exp + approx reciprocal vs f32 reference -> mixed-precision tolerance.
    err = float(jnp.max(jnp.abs(out - ref)))
    assert err < 5e-2, err

    print("KERNEL_OK")
</pallas_src>

<mosaic_0001>
module attributes {stable_mosaic.version = 11 : i64} {
  func.func @_layer_kernel(%arg0: i32, %arg1: i32, %arg2: memref<1x32x128xf32, #tpu.memory_space<vmem>>, %arg3: memref<16x32xf32, #tpu.memory_space<vmem>>, %arg4: memref<1x16x1xf32, #tpu.memory_space<vmem>>, %arg5: memref<1x128xf32, #tpu.memory_space<vmem>>, %arg6: memref<1x128xf32, #tpu.memory_space<vmem>>, %arg7: memref<128x384xbf16, #tpu.memory_space<vmem>>, %arg8: memref<1x384xf32, #tpu.memory_space<vmem>>, %arg9: memref<128x128xbf16, #tpu.memory_space<vmem>>, %arg10: memref<1x128xf32, #tpu.memory_space<vmem>>, %arg11: memref<1x128xf32, #tpu.memory_space<vmem>>, %arg12: memref<1x128xf32, #tpu.memory_space<vmem>>, %arg13: memref<128x512xbf16, #tpu.memory_space<vmem>>, %arg14: memref<1x512xf32, #tpu.memory_space<vmem>>, %arg15: memref<512x128xbf16, #tpu.memory_space<vmem>>, %arg16: memref<1x128xf32, #tpu.memory_space<vmem>>, %arg17: memref<1x16x128xf32, #tpu.memory_space<vmem>>, %arg18: memref<32x128xbf16, #tpu.memory_space<vmem>>, %arg19: memref<32x128xbf16, #tpu.memory_space<vmem>>, %arg20: memref<16x128xbf16, #tpu.memory_space<vmem>>) attributes {dimension_semantics = [#tpu.dimension_semantics<parallel>, #tpu.dimension_semantics<arbitrary>], iteration_bounds = array<i64: 2, 2>, scalar_prefetch = 0 : i64, scratch_operands = 3 : i64, tpu.core_type = #tpu.core_type<tc>, window_params = [{transform_indices = @transform_0, window_bounds = array<i64: 1, 32, 128>}, {transform_indices = @transform_1, window_bounds = array<i64: 16, 32>}, {transform_indices = @transform_2, window_bounds = array<i64: 1, 16, 1>}, {pipeline_mode = #tpu.pipeline_mode<synchronous>, transform_indices = @transform_3, window_bounds = array<i64: 1, 128>}, {pipeline_mode = #tpu.pipeline_mode<synchronous>, transform_indices = @transform_4, window_bounds = array<i64: 1, 128>}, {pipeline_mode = #tpu.pipeline_mode<synchronous>, transform_indices = @transform_5, window_bounds = array<i64: 128, 384>}, {pipeline_mode = #tpu.pipeline_mode<synchronous>, transform_indices = @transform_6, window_bounds = array<i64: 1, 384>}, {pipeline_mode = #tpu.pipeline_mode<synchronous>, transform_indices = @transform_7, window_bounds = array<i64: 128, 128>}, {pipeline_mode = #tpu.pipeline_mode<synchronous>, transform_indices = @transform_8, window_bounds = array<i64: 1, 128>}, {pipeline_mode = #tpu.pipeline_mode<synchronous>, transform_indices = @transform_9, window_bounds = array<i64: 1, 128>}, {pipeline_mode = #tpu.pipeline_mode<synchronous>, transform_indices = @transform_10, window_bounds = array<i64: 1, 128>}, {pipeline_mode = #tpu.pipeline_mode<synchronous>, transform_indices = @transform_11, window_bounds = array<i64: 128, 512>}, {pipeline_mode = #tpu.pipeline_mode<synchronous>, transform_indices = @transform_12, window_bounds = array<i64: 1, 512>}, {pipeline_mode = #tpu.pipeline_mode<synchronous>, transform_indices = @transform_13, window_bounds = array<i64: 512, 128>}, {pipeline_mode = #tpu.pipeline_mode<synchronous>, transform_indices = @transform_14, window_bounds = array<i64: 1, 128>}, {transform_indices = @transform_15, window_bounds = array<i64: 1, 16, 128>}]} {
    %c0_i32 = arith.constant 0 : i32
    %0 = arith.cmpi eq, %arg1, %c0_i32 : i32
    %1 = arith.extui %0 : i1 to i32
    %c0_i32_0 = arith.constant 0 : i32
    %2 = arith.cmpi ne, %1, %c0_i32_0 : i32
    scf.if %2 {
      %c0_93 = arith.constant 0 : index
      %c0_94 = arith.constant 0 : index
      %c0_95 = arith.constant 0 : index
      %195 = vector.load %arg2[%c0_93, %c0_94, %c0_95] : memref<1x32x128xf32, #tpu.memory_space<vmem>>, vector<1x32x128xf32>
      %196 = vector.shape_cast %195 : vector<1x32x128xf32> to vector<32x128xf32>
      %c0_96 = arith.constant 0 : index
      %c0_97 = arith.constant 0 : index
      %197 = vector.load %arg5[%c0_96, %c0_97] : memref<1x128xf32, #tpu.memory_space<vmem>>, vector<1x128xf32>
      %c0_98 = arith.constant 0 : index
      %c0_99 = arith.constant 0 : index
      %198 = vector.load %arg6[%c0_98, %c0_99] : memref<1x128xf32, #tpu.memory_space<vmem>>, vector<1x128xf32>
      %cst_100 = arith.constant dense<0.000000e+00> : vector<32xf32>
      %199 = vector.multi_reduction <add>, %196, %cst_100 [1] : vector<32x128xf32> to vector<32xf32>
      %200 = vector.shape_cast %199 : vector<32xf32> to vector<32x1xf32>
      %cst_101 = arith.constant 1.280000e+02 : f32
      %201 = vector.broadcast %cst_101 : f32 to vector<32x1xf32>
      %202 = arith.divf %200, %201 : vector<32x1xf32>
      %203 = vector.broadcast %202 : vector<32x1xf32> to vector<32x128xf32>
      %204 = arith.subf %196, %203 : vector<32x128xf32>
      %205 = arith.mulf %204, %204 : vector<32x128xf32>
      %cst_102 = arith.constant dense<0.000000e+00> : vector<32xf32>
      %206 = vector.multi_reduction <add>, %205, %cst_102 [1] : vector<32x128xf32> to vector<32xf32>
      %207 = vector.shape_cast %206 : vector<32xf32> to vector<32x1xf32>
      %cst_103 = arith.constant 1.280000e+02 : f32
      %208 = vector.broadcast %cst_103 : f32 to vector<32x1xf32>
      %209 = arith.divf %207, %208 : vector<32x1xf32>
      %210 = vector.broadcast %202 : vector<32x1xf32> to vector<32x128xf32>
      %211 = arith.subf %196, %210 : vector<32x128xf32>
      %cst_104 = arith.constant 9.99999974E-6 : f32
      %212 = vector.broadcast %cst_104 : f32 to vector<32x1xf32>
      %213 = arith.addf %209, %212 : vector<32x1xf32>
      %214 = math.rsqrt %213 : vector<32x1xf32>
      %215 = vector.broadcast %214 : vector<32x1xf32> to vector<32x128xf32>
      %216 = arith.mulf %211, %215 : vector<32x128xf32>
      %217 = vector.broadcast %197 : vector<1x128xf32> to vector<32x128xf32>
      %218 = arith.mulf %216, %217 : vector<32x128xf32>
      %219 = vector.broadcast %198 : vector<1x128xf32> to vector<32x128xf32>
      %220 = arith.addf %218, %219 : vector<32x128xf32>
      %221 = arith.truncf %220 : vector<32x128xf32> to vector<32x128xbf16>
      %c0_105 = arith.constant 0 : index
      %c128 = arith.constant 128 : index
      %222 = vector.load %arg7[%c0_105, %c128] : memref<128x384xbf16, #tpu.memory_space<vmem>>, vector<128x256xbf16>
      %cst_106 = arith.constant dense<0.000000e+00> : vector<32x256xf32>
      %223 = tpu.matmul %221, %222, %cst_106 {dimension_numbers = #tpu.dot_dimension_numbers<[1], [0], [0], [1], [0, 0, 1, 1], [], []>} : vector<32x128xbf16>, vector<128x256xbf16>, vector<32x256xf32> -> vector<32x256xf32>
      %c0_107 = arith.constant 0 : index
      %c128_108 = arith.constant 128 : index
      %224 = vector.load %arg8[%c0_107, %c128_108] : memref<1x384xf32, #tpu.memory_space<vmem>>, vector<1x256xf32>
      %225 = vector.broadcast %224 : vector<1x256xf32> to vector<32x256xf32>
      %226 = arith.addf %223, %225 : vector<32x256xf32>
      %227 = vector.extract_strided_slice %226 {offsets = [0, 0], sizes = [32, 128], strides = [1, 1]} : vector<32x256xf32> to vector<32x128xf32>
      %228 = arith.truncf %227 : vector<32x128xf32> to vector<32x128xbf16>
      %c0_109 = arith.constant 0 : index
      %c0_110 = arith.constant 0 : index
      %229 = vector.load %arg18[%c0_109, %c0_110] : memref<32x128xbf16, #tpu.memory_space<vmem>>, vector<32x128xbf16>
      tpu.vector_store %arg18[%c0_109, %c0_110], %228 {strides = array<i32>} : memref<32x128xbf16, #tpu.memory_space<vmem>>, vector<32x128xbf16>,
      %230 = vector.extract_strided_slice %226 {offsets = [0, 128], sizes = [32, 128], strides = [1, 1]} : vector<32x256xf32> to vector<32x128xf32>
      %231 = arith.truncf %230 : vector<32x128xf32> to vector<32x128xbf16>
      %c0_111 = arith.constant 0 : index
      %c0_112 = arith.constant 0 : index
      %232 = vector.load %arg19[%c0_111, %c0_112] : memref<32x128xbf16, #tpu.memory_space<vmem>>, vector<32x128xbf16>
      tpu.vector_store %arg19[%c0_111, %c0_112], %231 {strides = array<i32>} : memref<32x128xbf16, #tpu.memory_space<vmem>>, vector<32x128xbf16>,
    } else {
    }
    %c16_i32 = arith.constant 16 : i32
    %3 = arith.muli %arg1, %c16_i32 : i32
    %4 = tpu.assume_multiple %3, 16 : i32
    %c0 = arith.constant 0 : index
    %5 = arith.index_cast %4 : i32 to index
    %c0_1 = arith.constant 0 : index
    %6 = vector.load %arg2[%c0, %5, %c0_1] : memref<1x32x128xf32, #tpu.memory_space<vmem>>, vector<1x16x128xf32>
    %7 = vector.shape_cast %6 : vector<1x16x128xf32> to vector<16x128xf32>
    %c0_2 = arith.constant 0 : index
    %c0_3 = arith.constant 0 : index
    %8 = vector.load %arg5[%c0_2, %c0_3] : memref<1x128xf32, #tpu.memory_space<vmem>>, vector<1x128xf32>
    %c0_4 = arith.constant 0 : index
    %c0_5 = arith.constant 0 : index
    %9 = vector.load %arg6[%c0_4, %c0_5] : memref<1x128xf32, #tpu.memory_space<vmem>>, vector<1x128xf32>
    %cst = arith.constant dense<0.000000e+00> : vector<16xf32>
    %10 = vector.multi_reduction <add>, %7, %cst [1] : vector<16x128xf32> to vector<16xf32>
    %11 = vector.shape_cast %10 : vector<16xf32> to vector<16x1xf32>
    %cst_6 = arith.constant 1.280000e+02 : f32
    %12 = vector.broadcast %cst_6 : f32 to vector<16x1xf32>
    %13 = arith.divf %11, %12 : vector<16x1xf32>
    %14 = vector.broadcast %13 : vector<16x1xf32> to vector<16x128xf32>
    %15 = arith.subf %7, %14 : vector<16x128xf32>
    %16 = arith.mulf %15, %15 : vector<16x128xf32>
    %cst_7 = arith.constant dense<0.000000e+00> : vector<16xf32>
    %17 = vector.multi_reduction <add>, %16, %cst_7 [1] : vector<16x128xf32> to vector<16xf32>
    %18 = vector.shape_cast %17 : vector<16xf32> to vector<16x1xf32>
    %cst_8 = arith.constant 1.280000e+02 : f32
    %19 = vector.broadcast %cst_8 : f32 to vector<16x1xf32>
    %20 = arith.divf %18, %19 : vector<16x1xf32>
    %21 = vector.broadcast %13 : vector<16x1xf32> to vector<16x128xf32>
    %22 = arith.subf %7, %21 : vector<16x128xf32>
    %cst_9 = arith.constant 9.99999974E-6 : f32
    %23 = vector.broadcast %cst_9 : f32 to vector<16x1xf32>
    %24 = arith.addf %20, %23 : vector<16x1xf32>
    %25 = math.rsqrt %24 : vector<16x1xf32>
    %26 = vector.broadcast %25 : vector<16x1xf32> to vector<16x128xf32>
    %27 = arith.mulf %22, %26 : vector<16x128xf32>
    %28 = vector.broadcast %8 : vector<1x128xf32> to vector<16x128xf32>
    %29 = arith.mulf %27, %28 : vector<16x128xf32>
    %30 = vector.broadcast %9 : vector<1x128xf32> to vector<16x128xf32>
    %31 = arith.addf %29, %30 : vector<16x128xf32>
    %32 = arith.truncf %31 : vector<16x128xf32> to vector<16x128xbf16>
    %c0_10 = arith.constant 0 : index
    %c0_11 = arith.constant 0 : index
    %33 = vector.load %arg7[%c0_10, %c0_11] : memref<128x384xbf16, #tpu.memory_space<vmem>>, vector<128x128xbf16>
    %cst_12 = arith.constant dense<0.000000e+00> : vector<16x128xf32>
    %34 = tpu.matmul %32, %33, %cst_12 {dimension_numbers = #tpu.dot_dimension_numbers<[1], [0], [0], [1], [0, 0, 1, 1], [], []>} : vector<16x128xbf16>, vector<128x128xbf16>, vector<16x128xf32> -> vector<16x128xf32>
    %c0_13 = arith.constant 0 : index
    %c0_14 = arith.constant 0 : index
    %35 = vector.load %arg8[%c0_13, %c0_14] : memref<1x384xf32, #tpu.memory_space<vmem>>, vector<1x128xf32>
    %36 = vector.broadcast %35 : vector<1x128xf32> to vector<16x128xf32>
    %37 = arith.addf %34, %36 : vector<16x128xf32>
    %cst_15 = arith.constant 0.176776692 : f32
    %38 = vector.broadcast %cst_15 : f32 to vector<16x128xf32>
    %39 = arith.mulf %37, %38 : vector<16x128xf32>
    %40 = arith.truncf %39 : vector<16x128xf32> to vector<16x128xbf16>
    %41 = tpu.iota {dimensions = array<i32: 0>} : vector<16x32xi32>
    %42 = vector.broadcast %4 : i32 to vector<16x32xi32>
    %43 = arith.addi %42, %41 : vector<16x32xi32>
    %44 = tpu.iota {dimensions = array<i32: 1>} : vector<16x32xi32>
    %c0_16 = arith.constant 0 : index
    %c0_17 = arith.constant 0 : index
    %45 = vector.load %arg3[%c0_16, %c0_17] : memref<16x32xf32, #tpu.memory_space<vmem>>, vector<16x32xf32>
    %46 = arith.cmpi sle, %44, %43 : vector<16x32xi32>
    %cst_18 = arith.constant 0.000000e+00 : f32
    %cst_19 = arith.constant -1.000000e+09 : f32
    %47 = vector.broadcast %cst_18 : f32 to vector<16x32xf32>
    %48 = vector.broadcast %cst_19 : f32 to vector<16x32xf32>
    %49 = arith.select %46, %47, %48 : vector<16x32xi1>, vector<16x32xf32>
    %50 = arith.addf %45, %49 : vector<16x32xf32>
    %51 = vector.extract_strided_slice %40 {offsets = [0, 0], sizes = [16, 32], strides = [1, 1]} : vector<16x128xbf16> to vector<16x32xbf16>
    %c0_20 = arith.constant 0 : index
    %c0_21 = arith.constant 0 : index
    %52 = vector.load %arg18[%c0_20, %c0_21] : memref<32x128xbf16, #tpu.memory_space<vmem>>, vector<32x32xbf16>
    %cst_22 = arith.constant dense<0.000000e+00> : vector<16x32xf32>
    %53 = tpu.matmul %51, %52, %cst_22 {dimension_numbers = #tpu.dot_dimension_numbers<[1], [1], [0], [0], [0, 0, 1, 0], [], []>} : vector<16x32xbf16>, vector<32x32xbf16>, vector<16x32xf32> -> vector<16x32xf32>
    %54 = arith.addf %53, %50 : vector<16x32xf32>
    %cst_23 = arith.constant dense<0xFF800000> : vector<16xf32>
    %55 = vector.multi_reduction <maximumf>, %54, %cst_23 [1] : vector<16x32xf32> to vector<16xf32>
    %56 = vector.shape_cast %55 : vector<16xf32> to vector<16x1xf32>
    %57 = vector.broadcast %56 : vector<16x1xf32> to vector<16x32xf32>
    %58 = arith.subf %54, %57 : vector<16x32xf32>
    %59 = arith.truncf %58 : vector<16x32xf32> to vector<16x32xbf16>
    %60 = math.exp %59 : vector<16x32xbf16>
    %61 = arith.extf %60 : vector<16x32xbf16> to vector<16x32xf32>
    %cst_24 = arith.constant dense<0.000000e+00> : vector<16xf32>
    %62 = vector.multi_reduction <add>, %61, %cst_24 [1] : vector<16x32xf32> to vector<16xf32>
    %63 = vector.shape_cast %62 : vector<16xf32> to vector<16x1xf32>
    %c0_25 = arith.constant 0 : index
    %c0_26 = arith.constant 0 : index
    %64 = vector.load %arg19[%c0_25, %c0_26] : memref<32x128xbf16, #tpu.memory_space<vmem>>, vector<32x32xbf16>
    %cst_27 = arith.constant dense<0.000000e+00> : vector<16x32xf32>
    %65 = tpu.matmul %60, %64, %cst_27 {dimension_numbers = #tpu.dot_dimension_numbers<[1], [0], [0], [1], [0, 0, 1, 1], [], []>} : vector<16x32xbf16>, vector<32x32xbf16>, vector<16x32xf32> -> vector<16x32xf32>
    %66 = tpu.reciprocal %63 {approx = true} : vector<16x1xf32> -> vector<16x1xf32>
    %67 = vector.broadcast %66 : vector<16x1xf32> to vector<16x32xf32>
    %68 = arith.mulf %65, %67 : vector<16x32xf32>
    %69 = arith.truncf %68 : vector<16x32xf32> to vector<16x32xbf16>
    %c0_28 = arith.constant 0 : index
    %c0_29 = arith.constant 0 : index
    %70 = vector.load %arg20[%c0_28, %c0_29] : memref<16x128xbf16, #tpu.memory_space<vmem>>, vector<16x32xbf16>
    tpu.vector_store %arg20[%c0_28, %c0_29], %69 {strides = array<i32>} : memref<16x128xbf16, #tpu.memory_space<vmem>>, vector<16x32xbf16>,
    %71 = vector.extract_strided_slice %40 {offsets = [0, 32], sizes = [16, 32], strides = [1, 1]} : vector<16x128xbf16> to vector<16x32xbf16>
    %c0_30 = arith.constant 0 : index
    %c32 = arith.constant 32 : index
    %72 = vector.load %arg18[%c0_30, %c32] : memref<32x128xbf16, #tpu.memory_space<vmem>>, vector<32x32xbf16>
    %cst_31 = arith.constant dense<0.000000e+00> : vector<16x32xf32>
    %73 = tpu.matmul %71, %72, %cst_31 {dimension_numbers = #tpu.dot_dimension_numbers<[1], [1], [0], [0], [0, 0, 1, 0], [], []>} : vector<16x32xbf16>, vector<32x32xbf16>, vector<16x32xf32> -> vector<16x32xf32>
    %74 = arith.addf %73, %50 : vector<16x32xf32>
    %cst_32 = arith.constant dense<0xFF800000> : vector<16xf32>
    %75 = vector.multi_reduction <maximumf>, %74, %cst_32 [1] : vector<16x32xf32> to vector<16xf32>
    %76 = vector.shape_cast %75 : vector<16xf32> to vector<16x1xf32>
    %77 = vector.broadcast %76 : vector<16x1xf32> to vector<16x32xf32>
    %78 = arith.subf %74, %77 : vector<16x32xf32>
    %79 = arith.truncf %78 : vector<16x32xf32> to vector<16x32xbf16>
    %80 = math.exp %79 : vector<16x32xbf16>
    %81 = arith.extf %80 : vector<16x32xbf16> to vector<16x32xf32>
    %cst_33 = arith.constant dense<0.000000e+00> : vector<16xf32>
    %82 = vector.multi_reduction <add>, %81, %cst_33 [1] : vector<16x32xf32> to vector<16xf32>
    %83 = vector.shape_cast %82 : vector<16xf32> to vector<16x1xf32>
    %c0_34 = arith.constant 0 : index
    %c32_35 = arith.constant 32 : index
    %84 = vector.load %arg19[%c0_34, %c32_35] : memref<32x128xbf16, #tpu.memory_space<vmem>>, vector<32x32xbf16>
    %cst_36 = arith.constant dense<0.000000e+00> : vector<16x32xf32>
    %85 = tpu.matmul %80, %84, %cst_36 {dimension_numbers = #tpu.dot_dimension_numbers<[1], [0], [0], [1], [0, 0, 1, 1], [], []>} : vector<16x32xbf16>, vector<32x32xbf16>, vector<16x32xf32> -> vector<16x32xf32>
    %86 = tpu.reciprocal %83 {approx = true} : vector<16x1xf32> -> vector<16x1xf32>
    %87 = vector.broadcast %86 : vector<16x1xf32> to vector<16x32xf32>
    %88 = arith.mulf %85, %87 : vector<16x32xf32>
    %89 = arith.truncf %88 : vector<16x32xf32> to vector<16x32xbf16>
    %c0_37 = arith.constant 0 : index
    %c32_38 = arith.constant 32 : index
    %90 = vector.load %arg20[%c0_37, %c32_38] : memref<16x128xbf16, #tpu.memory_space<vmem>>, vector<16x32xbf16>
    tpu.vector_store %arg20[%c0_37, %c32_38], %89 {strides = array<i32>} : memref<16x128xbf16, #tpu.memory_space<vmem>>, vector<16x32xbf16>,
    %91 = vector.extract_strided_slice %40 {offsets = [0, 64], sizes = [16, 32], strides = [1, 1]} : vector<16x128xbf16> to vector<16x32xbf16>
    %c0_39 = arith.constant 0 : index
    %c64 = arith.constant 64 : index
    %92 = vector.load %arg18[%c0_39, %c64] : memref<32x128xbf16, #tpu.memory_space<vmem>>, vector<32x32xbf16>
    %cst_40 = arith.constant dense<0.000000e+00> : vector<16x32xf32>
    %93 = tpu.matmul %91, %92, %cst_40 {dimension_numbers = #tpu.dot_dimension_numbers<[1], [1], [0], [0], [0, 0, 1, 0], [], []>} : vector<16x32xbf16>, vector<32x32xbf16>, vector<16x32xf32> -> vector<16x32xf32>
    %94 = arith.addf %93, %50 : vector<16x32xf32>
    %cst_41 = arith.constant dense<0xFF800000> : vector<16xf32>
    %95 = vector.multi_reduction <maximumf>, %94, %cst_41 [1] : vector<16x32xf32> to vector<16xf32>
    %96 = vector.shape_cast %95 : vector<16xf32> to vector<16x1xf32>
    %97 = vector.broadcast %96 : vector<16x1xf32> to vector<16x32xf32>
    %98 = arith.subf %94, %97 : vector<16x32xf32>
    %99 = arith.truncf %98 : vector<16x32xf32> to vector<16x32xbf16>
    %100 = math.exp %99 : vector<16x32xbf16>
    %101 = arith.extf %100 : vector<16x32xbf16> to vector<16x32xf32>
    %cst_42 = arith.constant dense<0.000000e+00> : vector<16xf32>
    %102 = vector.multi_reduction <add>, %101, %cst_42 [1] : vector<16x32xf32> to vector<16xf32>
    %103 = vector.shape_cast %102 : vector<16xf32> to vector<16x1xf32>
    %c0_43 = arith.constant 0 : index
    %c64_44 = arith.constant 64 : index
    %104 = vector.load %arg19[%c0_43, %c64_44] : memref<32x128xbf16, #tpu.memory_space<vmem>>, vector<32x32xbf16>
    %cst_45 = arith.constant dense<0.000000e+00> : vector<16x32xf32>
    %105 = tpu.matmul %100, %104, %cst_45 {dimension_numbers = #tpu.dot_dimension_numbers<[1], [0], [0], [1], [0, 0, 1, 1], [], []>} : vector<16x32xbf16>, vector<32x32xbf16>, vector<16x32xf32> -> vector<16x32xf32>
    %106 = tpu.reciprocal %103 {approx = true} : vector<16x1xf32> -> vector<16x1xf32>
    %107 = vector.broadcast %106 : vector<16x1xf32> to vector<16x32xf32>
    %108 = arith.mulf %105, %107 : vector<16x32xf32>
    %109 = arith.truncf %108 : vector<16x32xf32> to vector<16x32xbf16>
    %c0_46 = arith.constant 0 : index
    %c64_47 = arith.constant 64 : index
    %110 = vector.load %arg20[%c0_46, %c64_47] : memref<16x128xbf16, #tpu.memory_space<vmem>>, vector<16x32xbf16>
    tpu.vector_store %arg20[%c0_46, %c64_47], %109 {strides = array<i32>} : memref<16x128xbf16, #tpu.memory_space<vmem>>, vector<16x32xbf16>,
    %111 = vector.extract_strided_slice %40 {offsets = [0, 96], sizes = [16, 32], strides = [1, 1]} : vector<16x128xbf16> to vector<16x32xbf16>
    %c0_48 = arith.constant 0 : index
    %c96 = arith.constant 96 : index
    %112 = vector.load %arg18[%c0_48, %c96] : memref<32x128xbf16, #tpu.memory_space<vmem>>, vector<32x32xbf16>
    %cst_49 = arith.constant dense<0.000000e+00> : vector<16x32xf32>
    %113 = tpu.matmul %111, %112, %cst_49 {dimension_numbers = #tpu.dot_dimension_numbers<[1], [1], [0], [0], [0, 0, 1, 0], [], []>} : vector<16x32xbf16>, vector<32x32xbf16>, vector<16x32xf32> -> vector<16x32xf32>
    %114 = arith.addf %113, %50 : vector<16x32xf32>
    %cst_50 = arith.constant dense<0xFF800000> : vector<16xf32>
    %115 = vector.multi_reduction <maximumf>, %114, %cst_50 [1] : vector<16x32xf32> to vector<16xf32>
    %116 = vector.shape_cast %115 : vector<16xf32> to vector<16x1xf32>
    %117 = vector.broadcast %116 : vector<16x1xf32> to vector<16x32xf32>
    %118 = arith.subf %114, %117 : vector<16x32xf32>
    %119 = arith.truncf %118 : vector<16x32xf32> to vector<16x32xbf16>
    %120 = math.exp %119 : vector<16x32xbf16>
    %121 = arith.extf %120 : vector<16x32xbf16> to vector<16x32xf32>
    %cst_51 = arith.constant dense<0.000000e+00> : vector<16xf32>
    %122 = vector.multi_reduction <add>, %121, %cst_51 [1] : vector<16x32xf32> to vector<16xf32>
    %123 = vector.shape_cast %122 : vector<16xf32> to vector<16x1xf32>
    %c0_52 = arith.constant 0 : index
    %c96_53 = arith.constant 96 : index
    %124 = vector.load %arg19[%c0_52, %c96_53] : memref<32x128xbf16, #tpu.memory_space<vmem>>, vector<32x32xbf16>
    %cst_54 = arith.constant dense<0.000000e+00> : vector<16x32xf32>
    %125 = tpu.matmul %120, %124, %cst_54 {dimension_numbers = #tpu.dot_dimension_numbers<[1], [0], [0], [1], [0, 0, 1, 1], [], []>} : vector<16x32xbf16>, vector<32x32xbf16>, vector<16x32xf32> -> vector<16x32xf32>
    %126 = tpu.reciprocal %123 {approx = true} : vector<16x1xf32> -> vector<16x1xf32>
    %127 = vector.broadcast %126 : vector<16x1xf32> to vector<16x32xf32>
    %128 = arith.mulf %125, %127 : vector<16x32xf32>
    %129 = arith.truncf %128 : vector<16x32xf32> to vector<16x32xbf16>
    %c0_55 = arith.constant 0 : index
    %c96_56 = arith.constant 96 : index
    %130 = vector.load %arg20[%c0_55, %c96_56] : memref<16x128xbf16, #tpu.memory_space<vmem>>, vector<16x32xbf16>
    tpu.vector_store %arg20[%c0_55, %c96_56], %129 {strides = array<i32>} : memref<16x128xbf16, #tpu.memory_space<vmem>>, vector<16x32xbf16>,
    %c0_57 = arith.constant 0 : index
    %c0_58 = arith.constant 0 : index
    %131 = vector.load %arg20[%c0_57, %c0_58] : memref<16x128xbf16, #tpu.memory_space<vmem>>, vector<16x128xbf16>
    %c0_59 = arith.constant 0 : index
    %c0_60 = arith.constant 0 : index
    %132 = vector.load %arg9[%c0_59, %c0_60] : memref<128x128xbf16, #tpu.memory_space<vmem>>, vector<128x128xbf16>
    %cst_61 = arith.constant dense<0.000000e+00> : vector<16x128xf32>
    %133 = tpu.matmul %131, %132, %cst_61 {dimension_numbers = #tpu.dot_dimension_numbers<[1], [0], [0], [1], [0, 0, 1, 1], [], []>} : vector<16x128xbf16>, vector<128x128xbf16>, vector<16x128xf32> -> vector<16x128xf32>
    %c0_62 = arith.constant 0 : index
    %c0_63 = arith.constant 0 : index
    %134 = vector.load %arg10[%c0_62, %c0_63] : memref<1x128xf32, #tpu.memory_space<vmem>>, vector<1x128xf32>
    %135 = vector.broadcast %134 : vector<1x128xf32> to vector<16x128xf32>
    %136 = arith.addf %133, %135 : vector<16x128xf32>
    %137 = arith.addf %7, %136 : vector<16x128xf32>
    %c0_64 = arith.constant 0 : index
    %c0_65 = arith.constant 0 : index
    %138 = vector.load %arg11[%c0_64, %c0_65] : memref<1x128xf32, #tpu.memory_space<vmem>>, vector<1x128xf32>
    %c0_66 = arith.constant 0 : index
    %c0_67 = arith.constant 0 : index
    %139 = vector.load %arg12[%c0_66, %c0_67] : memref<1x128xf32, #tpu.memory_space<vmem>>, vector<1x128xf32>
    %cst_68 = arith.constant dense<0.000000e+00> : vector<16xf32>
    %140 = vector.multi_reduction <add>, %137, %cst_68 [1] : vector<16x128xf32> to vector<16xf32>
    %141 = vector.shape_cast %140 : vector<16xf32> to vector<16x1xf32>
    %cst_69 = arith.constant 1.280000e+02 : f32
    %142 = vector.broadcast %cst_69 : f32 to vector<16x1xf32>
    %143 = arith.divf %141, %142 : vector<16x1xf32>
    %144 = vector.broadcast %143 : vector<16x1xf32> to vector<16x128xf32>
    %145 = arith.subf %137, %144 : vector<16x128xf32>
    %146 = arith.mulf %145, %145 : vector<16x128xf32>
    %cst_70 = arith.constant dense<0.000000e+00> : vector<16xf32>
    %147 = vector.multi_reduction <add>, %146, %cst_70 [1] : vector<16x128xf32> to vector<16xf32>
    %148 = vector.shape_cast %147 : vector<16xf32> to vector<16x1xf32>
    %cst_71 = arith.constant 1.280000e+02 : f32
    %149 = vector.broadcast %cst_71 : f32 to vector<16x1xf32>
    %150 = arith.divf %148, %149 : vector<16x1xf32>
    %151 = vector.broadcast %143 : vector<16x1xf32> to vector<16x128xf32>
    %152 = arith.subf %137, %151 : vector<16x128xf32>
    %cst_72 = arith.constant 9.99999974E-6 : f32
    %153 = vector.broadcast %cst_72 : f32 to vector<16x1xf32>
    %154 = arith.addf %150, %153 : vector<16x1xf32>
    %155 = math.rsqrt %154 : vector<16x1xf32>
    %156 = vector.broadcast %155 : vector<16x1xf32> to vector<16x128xf32>
    %157 = arith.mulf %152, %156 : vector<16x128xf32>
    %158 = vector.broadcast %138 : vector<1x128xf32> to vector<16x128xf32>
    %159 = arith.mulf %157, %158 : vector<16x128xf32>
    %160 = vector.broadcast %139 : vector<1x128xf32> to vector<16x128xf32>
    %161 = arith.addf %159, %160 : vector<16x128xf32>
    %162 = arith.truncf %161 : vector<16x128xf32> to vector<16x128xbf16>
    %c0_73 = arith.constant 0 : index
    %c0_74 = arith.constant 0 : index
    %163 = vector.load %arg13[%c0_73, %c0_74] : memref<128x512xbf16, #tpu.memory_space<vmem>>, vector<128x512xbf16>
    %cst_75 = arith.constant dense<0.000000e+00> : vector<16x512xf32>
    %164 = tpu.matmul %162, %163, %cst_75 {dimension_numbers = #tpu.dot_dimension_numbers<[1], [0], [0], [1], [0, 0, 1, 1], [], []>} : vector<16x128xbf16>, vector<128x512xbf16>, vector<16x512xf32> -> vector<16x512xf32>
    %c0_76 = arith.constant 0 : index
    %c0_77 = arith.constant 0 : index
    %165 = vector.load %arg14[%c0_76, %c0_77] : memref<1x512xf32, #tpu.memory_space<vmem>>, vector<1x512xf32>
    %166 = vector.broadcast %165 : vector<1x512xf32> to vector<16x512xf32>
    %167 = arith.addf %164, %166 : vector<16x512xf32>
    %cst_78 = arith.constant 5.000000e-01 : f32
    %168 = vector.broadcast %cst_78 : f32 to vector<16x512xf32>
    %169 = arith.mulf %168, %167 : vector<16x512xf32>
    %cst_79 = arith.constant 4.471500e-02 : f32
    %170 = vector.broadcast %cst_79 : f32 to vector<16x512xf32>
    %171 = arith.mulf %170, %167 : vector<16x512xf32>
    %172 = arith.mulf %171, %167 : vector<16x512xf32>
    %173 = arith.mulf %172, %167 : vector<16x512xf32>
    %174 = arith.addf %167, %173 : vector<16x512xf32>
    %cst_80 = arith.constant 0.797884583 : f32
    %175 = vector.broadcast %cst_80 : f32 to vector<16x512xf32>
    %176 = arith.mulf %175, %174 : vector<16x512xf32>
    %177 = math.tanh %176 : vector<16x512xf32>
    %cst_81 = arith.constant 1.000000e+00 : f32
    %178 = vector.broadcast %cst_81 : f32 to vector<16x512xf32>
    %179 = arith.addf %178, %177 : vector<16x512xf32>
    %180 = arith.mulf %169, %179 : vector<16x512xf32>
    %181 = arith.truncf %180 : vector<16x512xf32> to vector<16x512xbf16>
    %c0_82 = arith.constant 0 : index
    %c0_83 = arith.constant 0 : index
    %182 = vector.load %arg15[%c0_82, %c0_83] : memref<512x128xbf16, #tpu.memory_space<vmem>>, vector<512x128xbf16>
    %cst_84 = arith.constant dense<0.000000e+00> : vector<16x128xf32>
    %183 = tpu.matmul %181, %182, %cst_84 {dimension_numbers = #tpu.dot_dimension_numbers<[1], [0], [0], [1], [0, 0, 1, 1], [], []>} : vector<16x512xbf16>, vector<512x128xbf16>, vector<16x128xf32> -> vector<16x128xf32>
    %c0_85 = arith.constant 0 : index
    %c0_86 = arith.constant 0 : index
    %184 = vector.load %arg16[%c0_85, %c0_86] : memref<1x128xf32, #tpu.memory_space<vmem>>, vector<1x128xf32>
    %185 = vector.broadcast %184 : vector<1x128xf32> to vector<16x128xf32>
    %186 = arith.addf %183, %185 : vector<16x128xf32>
    %187 = arith.addf %137, %186 : vector<16x128xf32>
    %c0_87 = arith.constant 0 : index
    %c0_88 = arith.constant 0 : index
    %c0_89 = arith.constant 0 : index
    %188 = vector.load %arg4[%c0_87, %c0_88, %c0_89] : memref<1x16x1xf32, #tpu.memory_space<vmem>>, vector<1x16x1xf32>
    %189 = vector.shape_cast %188 : vector<1x16x1xf32> to vector<16x1xf32>
    %190 = vector.broadcast %189 : vector<16x1xf32> to vector<16x128xf32>
    %191 = arith.mulf %187, %190 : vector<16x128xf32>
    %c0_90 = arith.constant 0 : index
    %c0_91 = arith.constant 0 : index
    %c0_92 = arith.constant 0 : index
    %192 = vector.load %arg17[%c0_90, %c0_91, %c0_92] : memref<1x16x128xf32, #tpu.memory_space<vmem>>, vector<1x16x128xf32>
    %193 = vector.shape_cast %192 : vector<1x16x128xf32> to vector<16x128xf32>
    %194 = vector.shape_cast %191 : vector<16x128xf32> to vector<1x16x128xf32>
    tpu.vector_store %arg17[%c0_90, %c0_91, %c0_92], %194 {strides = array<i32>} : memref<1x16x128xf32, #tpu.memory_space<vmem>>, vector<1x16x128xf32>,
    return
  }
  func.func @transform_0(%arg0: i32, %arg1: i32) -> (i32, i32, i32) {
    %c0_i32 = arith.constant 0 : i32
    %c0_i32_0 = arith.constant 0 : i32
    %c0_i32_1 = arith.constant 0 : i32
    return %arg0, %c0_i32, %c0_i32_0 : i32, i32, i32
  }
  func.func @transform_1(%arg0: i32, %arg1: i32) -> (i32, i32) {
    %c0_i32 = arith.constant 0 : i32
    %c0_i32_0 = arith.constant 0 : i32
    return %arg1, %c0_i32 : i32, i32
  }
  func.func @transform_2(%arg0: i32, %arg1: i32) -> (i32, i32, i32) {
    %c0_i32 = arith.constant 0 : i32
    %c0_i32_0 = arith.constant 0 : i32
    return %arg0, %arg1, %c0_i32 : i32, i32, i32
  }
  func.func @transform_3(%arg0: i32, %arg1: i32) -> (i32, i32) {
    %c0_i32 = arith.constant 0 : i32
    %c0_i32_0 = arith.constant 0 : i32
    %c0_i32_1 = arith.constant 0 : i32
    return %c0_i32, %c0_i32_0 : i32, i32
  }
  func.func @transform_4(%arg0: i32, %arg1: i32) -> (i32, i32) {
    %c0_i32 = arith.constant 0 : i32
    %c0_i32_0 = arith.constant 0 : i32
    %c0_i32_1 = arith.constant 0 : i32
    return %c0_i32, %c0_i32_0 : i32, i32
  }
  func.func @transform_5(%arg0: i32, %arg1: i32) -> (i32, i32) {
    %c0_i32 = arith.constant 0 : i32
    %c0_i32_0 = arith.constant 0 : i32
    %c0_i32_1 = arith.constant 0 : i32
    return %c0_i32, %c0_i32_0 : i32, i32
  }
  func.func @transform_6(%arg0: i32, %arg1: i32) -> (i32, i32) {
    %c0_i32 = arith.constant 0 : i32
    %c0_i32_0 = arith.constant 0 : i32
    %c0_i32_1 = arith.constant 0 : i32
    return %c0_i32, %c0_i32_0 : i32, i32
  }
  func.func @transform_7(%arg0: i32, %arg1: i32) -> (i32, i32) {
    %c0_i32 = arith.constant 0 : i32
    %c0_i32_0 = arith.constant 0 : i32
    %c0_i32_1 = arith.constant 0 : i32
    return %c0_i32, %c0_i32_0 : i32, i32
  }
  func.func @transform_8(%arg0: i32, %arg1: i32) -> (i32, i32) {
    %c0_i32 = arith.constant 0 : i32
    %c0_i32_0 = arith.constant 0 : i32
    %c0_i32_1 = arith.constant 0 : i32
    return %c0_i32, %c0_i32_0 : i32, i32
  }
  func.func @transform_9(%arg0: i32, %arg1: i32) -> (i32, i32) {
    %c0_i32 = arith.constant 0 : i32
    %c0_i32_0 = arith.constant 0 : i32
    %c0_i32_1 = arith.constant 0 : i32
    return %c0_i32, %c0_i32_0 : i32, i32
  }
  func.func @transform_10(%arg0: i32, %arg1: i32) -> (i32, i32) {
    %c0_i32 = arith.constant 0 : i32
    %c0_i32_0 = arith.constant 0 : i32
    %c0_i32_1 = arith.constant 0 : i32
    return %c0_i32, %c0_i32_0 : i32, i32
  }
  func.func @transform_11(%arg0: i32, %arg1: i32) -> (i32, i32) {
    %c0_i32 = arith.constant 0 : i32
    %c0_i32_0 = arith.constant 0 : i32
    %c0_i32_1 = arith.constant 0 : i32
    return %c0_i32, %c0_i32_0 : i32, i32
  }
  func.func @transform_12(%arg0: i32, %arg1: i32) -> (i32, i32) {
    %c0_i32 = arith.constant 0 : i32
    %c0_i32_0 = arith.constant 0 : i32
    %c0_i32_1 = arith.constant 0 : i32
    return %c0_i32, %c0_i32_0 : i32, i32
  }
  func.func @transform_13(%arg0: i32, %arg1: i32) -> (i32, i32) {
    %c0_i32 = arith.constant 0 : i32
    %c0_i32_0 = arith.constant 0 : i32
    %c0_i32_1 = arith.constant 0 : i32
    return %c0_i32, %c0_i32_0 : i32, i32
  }
  func.func @transform_14(%arg0: i32, %arg1: i32) -> (i32, i32) {
    %c0_i32 = arith.constant 0 : i32
    %c0_i32_0 = arith.constant 0 : i32
    %c0_i32_1 = arith.constant 0 : i32
    return %c0_i32, %c0_i32_0 : i32, i32
  }
  func.func @transform_15(%arg0: i32, %arg1: i32) -> (i32, i32, i32) {
    %c0_i32 = arith.constant 0 : i32
    %c0_i32_0 = arith.constant 0 : i32
    return %arg0, %arg1, %c0_i32 : i32, i32, i32
  }
}

module attributes {stable_mosaic.version = 11 : i64} {
  func.func @_layer_kernel(%arg0: i32, %arg1: i32, %arg2: memref<1x32x128xf32, #tpu.memory_space<vmem>>, %arg3: memref<16x32xf32, #tpu.memory_space<vmem>>, %arg4: memref<1x16x1xf32, #tpu.memory_space<vmem>>, %arg5: memref<1x128xf32, #tpu.memory_space<vmem>>, %arg6: memref<1x128xf32, #tpu.memory_space<vmem>>, %arg7: memref<128x384xbf16, #tpu.memory_space<vmem>>, %arg8: memref<1x384xf32, #tpu.memory_space<vmem>>, %arg9: memref<128x128xbf16, #tpu.memory_space<vmem>>, %arg10: memref<1x128xf32, #tpu.memory_space<vmem>>, %arg11: memref<1x128xf32, #tpu.memory_space<vmem>>, %arg12: memref<1x128xf32, #tpu.memory_space<vmem>>, %arg13: memref<128x512xbf16, #tpu.memory_space<vmem>>, %arg14: memref<1x512xf32, #tpu.memory_space<vmem>>, %arg15: memref<512x128xbf16, #tpu.memory_space<vmem>>, %arg16: memref<1x128xf32, #tpu.memory_space<vmem>>, %arg17: memref<1x16x128xf32, #tpu.memory_space<vmem>>, %arg18: memref<32x128xbf16, #tpu.memory_space<vmem>>, %arg19: memref<32x128xbf16, #tpu.memory_space<vmem>>, %arg20: memref<16x128xbf16, #tpu.memory_space<vmem>>) attributes {dimension_semantics = [#tpu.dimension_semantics<parallel>, #tpu.dimension_semantics<arbitrary>], iteration_bounds = array<i64: 2, 2>, scalar_prefetch = 0 : i64, scratch_operands = 3 : i64, tpu.core_type = #tpu.core_type<tc>, window_params = [{transform_indices = @transform_0, window_bounds = array<i64: 1, 32, 128>}, {transform_indices = @transform_1, window_bounds = array<i64: 16, 32>}, {transform_indices = @transform_2, window_bounds = array<i64: 1, 16, 1>}, {pipeline_mode = #tpu.pipeline_mode<synchronous>, transform_indices = @transform_3, window_bounds = array<i64: 1, 128>}, {pipeline_mode = #tpu.pipeline_mode<synchronous>, transform_indices = @transform_4, window_bounds = array<i64: 1, 128>}, {pipeline_mode = #tpu.pipeline_mode<synchronous>, transform_indices = @transform_5, window_bounds = array<i64: 128, 384>}, {pipeline_mode = #tpu.pipeline_mode<synchronous>, transform_indices = @transform_6, window_bounds = array<i64: 1, 384>}, {pipeline_mode = #tpu.pipeline_mode<synchronous>, transform_indices = @transform_7, window_bounds = array<i64: 128, 128>}, {pipeline_mode = #tpu.pipeline_mode<synchronous>, transform_indices = @transform_8, window_bounds = array<i64: 1, 128>}, {pipeline_mode = #tpu.pipeline_mode<synchronous>, transform_indices = @transform_9, window_bounds = array<i64: 1, 128>}, {pipeline_mode = #tpu.pipeline_mode<synchronous>, transform_indices = @transform_10, window_bounds = array<i64: 1, 128>}, {pipeline_mode = #tpu.pipeline_mode<synchronous>, transform_indices = @transform_11, window_bounds = array<i64: 128, 512>}, {pipeline_mode = #tpu.pipeline_mode<synchronous>, transform_indices = @transform_12, window_bounds = array<i64: 1, 512>}, {pipeline_mode = #tpu.pipeline_mode<synchronous>, transform_indices = @transform_13, window_bounds = array<i64: 512, 128>}, {pipeline_mode = #tpu.pipeline_mode<synchronous>, transform_indices = @transform_14, window_bounds = array<i64: 1, 128>}, {transform_indices = @transform_15, window_bounds = array<i64: 1, 16, 128>}]} {
    %c0_i32 = arith.constant 0 : i32
    %0 = arith.cmpi eq, %arg1, %c0_i32 : i32
    %1 = arith.extui %0 : i1 to i32
    %c0_i32_0 = arith.constant 0 : i32
    %2 = arith.cmpi ne, %1, %c0_i32_0 : i32
    scf.if %2 {
      %c0_93 = arith.constant 0 : index
      %c0_94 = arith.constant 0 : index
      %c0_95 = arith.constant 0 : index
      %195 = vector.load %arg2[%c0_93, %c0_94, %c0_95] : memref<1x32x128xf32, #tpu.memory_space<vmem>>, vector<1x32x128xf32>
      %196 = vector.shape_cast %195 : vector<1x32x128xf32> to vector<32x128xf32>
      %c0_96 = arith.constant 0 : index
      %c0_97 = arith.constant 0 : index
      %197 = vector.load %arg5[%c0_96, %c0_97] : memref<1x128xf32, #tpu.memory_space<vmem>>, vector<1x128xf32>
      %c0_98 = arith.constant 0 : index
      %c0_99 = arith.constant 0 : index
      %198 = vector.load %arg6[%c0_98, %c0_99] : memref<1x128xf32, #tpu.memory_space<vmem>>, vector<1x128xf32>
      %cst_100 = arith.constant dense<0.000000e+00> : vector<32xf32>
      %199 = vector.multi_reduction <add>, %196, %cst_100 [1] : vector<32x128xf32> to vector<32xf32>
      %200 = vector.shape_cast %199 : vector<32xf32> to vector<32x1xf32>
      %cst_101 = arith.constant 1.280000e+02 : f32
      %201 = vector.broadcast %cst_101 : f32 to vector<32x1xf32>
      %202 = arith.divf %200, %201 : vector<32x1xf32>
      %203 = vector.broadcast %202 : vector<32x1xf32> to vector<32x128xf32>
      %204 = arith.subf %196, %203 : vector<32x128xf32>
      %205 = arith.mulf %204, %204 : vector<32x128xf32>
      %cst_102 = arith.constant dense<0.000000e+00> : vector<32xf32>
      %206 = vector.multi_reduction <add>, %205, %cst_102 [1] : vector<32x128xf32> to vector<32xf32>
      %207 = vector.shape_cast %206 : vector<32xf32> to vector<32x1xf32>
      %cst_103 = arith.constant 1.280000e+02 : f32
      %208 = vector.broadcast %cst_103 : f32 to vector<32x1xf32>
      %209 = arith.divf %207, %208 : vector<32x1xf32>
      %210 = vector.broadcast %202 : vector<32x1xf32> to vector<32x128xf32>
      %211 = arith.subf %196, %210 : vector<32x128xf32>
      %cst_104 = arith.constant 9.99999974E-6 : f32
      %212 = vector.broadcast %cst_104 : f32 to vector<32x1xf32>
      %213 = arith.addf %209, %212 : vector<32x1xf32>
      %214 = math.rsqrt %213 : vector<32x1xf32>
      %215 = vector.broadcast %214 : vector<32x1xf32> to vector<32x128xf32>
      %216 = arith.mulf %211, %215 : vector<32x128xf32>
      %217 = vector.broadcast %197 : vector<1x128xf32> to vector<32x128xf32>
      %218 = arith.mulf %216, %217 : vector<32x128xf32>
      %219 = vector.broadcast %198 : vector<1x128xf32> to vector<32x128xf32>
      %220 = arith.addf %218, %219 : vector<32x128xf32>
      %221 = arith.truncf %220 : vector<32x128xf32> to vector<32x128xbf16>
      %c0_105 = arith.constant 0 : index
      %c128 = arith.constant 128 : index
      %222 = vector.load %arg7[%c0_105, %c128] : memref<128x384xbf16, #tpu.memory_space<vmem>>, vector<128x256xbf16>
      %cst_106 = arith.constant dense<0.000000e+00> : vector<32x256xf32>
      %223 = tpu.matmul %221, %222, %cst_106 {dimension_numbers = #tpu.dot_dimension_numbers<[1], [0], [0], [1], [0, 0, 1, 1], [], []>} : vector<32x128xbf16>, vector<128x256xbf16>, vector<32x256xf32> -> vector<32x256xf32>
      %c0_107 = arith.constant 0 : index
      %c128_108 = arith.constant 128 : index
      %224 = vector.load %arg8[%c0_107, %c128_108] : memref<1x384xf32, #tpu.memory_space<vmem>>, vector<1x256xf32>
      %225 = vector.broadcast %224 : vector<1x256xf32> to vector<32x256xf32>
      %226 = arith.addf %223, %225 : vector<32x256xf32>
      %227 = vector.extract_strided_slice %226 {offsets = [0, 0], sizes = [32, 128], strides = [1, 1]} : vector<32x256xf32> to vector<32x128xf32>
      %228 = arith.truncf %227 : vector<32x128xf32> to vector<32x128xbf16>
      %c0_109 = arith.constant 0 : index
      %c0_110 = arith.constant 0 : index
      %229 = vector.load %arg18[%c0_109, %c0_110] : memref<32x128xbf16, #tpu.memory_space<vmem>>, vector<32x128xbf16>
      tpu.vector_store %arg18[%c0_109, %c0_110], %228 {strides = array<i32>} : memref<32x128xbf16, #tpu.memory_space<vmem>>, vector<32x128xbf16>,
      %230 = vector.extract_strided_slice %226 {offsets = [0, 128], sizes = [32, 128], strides = [1, 1]} : vector<32x256xf32> to vector<32x128xf32>
      %231 = arith.truncf %230 : vector<32x128xf32> to vector<32x128xbf16>
      %c0_111 = arith.constant 0 : index
      %c0_112 = arith.constant 0 : index
      %232 = vector.load %arg19[%c0_111, %c0_112] : memref<32x128xbf16, #tpu.memory_space<vmem>>, vector<32x128xbf16>
      tpu.vector_store %arg19[%c0_111, %c0_112], %231 {strides = array<i32>} : memref<32x128xbf16, #tpu.memory_space<vmem>>, vector<32x128xbf16>,
    } else {
    }
    %c16_i32 = arith.constant 16 : i32
    %3 = arith.muli %arg1, %c16_i32 : i32
    %4 = tpu.assume_multiple %3, 16 : i32
    %c0 = arith.constant 0 : index
    %5 = arith.index_cast %4 : i32 to index
    %c0_1 = arith.constant 0 : index
    %6 = vector.load %arg2[%c0, %5, %c0_1] : memref<1x32x128xf32, #tpu.memory_space<vmem>>, vector<1x16x128xf32>
    %7 = vector.shape_cast %6 : vector<1x16x128xf32> to vector<16x128xf32>
    %c0_2 = arith.constant 0 : index
    %c0_3 = arith.constant 0 : index
    %8 = vector.load %arg5[%c0_2, %c0_3] : memref<1x128xf32, #tpu.memory_space<vmem>>, vector<1x128xf32>
    %c0_4 = arith.constant 0 : index
    %c0_5 = arith.constant 0 : index
    %9 = vector.load %arg6[%c0_4, %c0_5] : memref<1x128xf32, #tpu.memory_space<vmem>>, vector<1x128xf32>
    %cst = arith.constant dense<0.000000e+00> : vector<16xf32>
    %10 = vector.multi_reduction <add>, %7, %cst [1] : vector<16x128xf32> to vector<16xf32>
    %11 = vector.shape_cast %10 : vector<16xf32> to vector<16x1xf32>
    %cst_6 = arith.constant 1.280000e+02 : f32
    %12 = vector.broadcast %cst_6 : f32 to vector<16x1xf32>
    %13 = arith.divf %11, %12 : vector<16x1xf32>
    %14 = vector.broadcast %13 : vector<16x1xf32> to vector<16x128xf32>
    %15 = arith.subf %7, %14 : vector<16x128xf32>
    %16 = arith.mulf %15, %15 : vector<16x128xf32>
    %cst_7 = arith.constant dense<0.000000e+00> : vector<16xf32>
    %17 = vector.multi_reduction <add>, %16, %cst_7 [1] : vector<16x128xf32> to vector<16xf32>
    %18 = vector.shape_cast %17 : vector<16xf32> to vector<16x1xf32>
    %cst_8 = arith.constant 1.280000e+02 : f32
    %19 = vector.broadcast %cst_8 : f32 to vector<16x1xf32>
    %20 = arith.divf %18, %19 : vector<16x1xf32>
    %21 = vector.broadcast %13 : vector<16x1xf32> to vector<16x128xf32>
    %22 = arith.subf %7, %21 : vector<16x128xf32>
    %cst_9 = arith.constant 9.99999974E-6 : f32
    %23 = vector.broadcast %cst_9 : f32 to vector<16x1xf32>
    %24 = arith.addf %20, %23 : vector<16x1xf32>
    %25 = math.rsqrt %24 : vector<16x1xf32>
    %26 = vector.broadcast %25 : vector<16x1xf32> to vector<16x128xf32>
    %27 = arith.mulf %22, %26 : vector<16x128xf32>
    %28 = vector.broadcast %8 : vector<1x128xf32> to vector<16x128xf32>
    %29 = arith.mulf %27, %28 : vector<16x128xf32>
    %30 = vector.broadcast %9 : vector<1x128xf32> to vector<16x128xf32>
    %31 = arith.addf %29, %30 : vector<16x128xf32>
    %32 = arith.truncf %31 : vector<16x128xf32> to vector<16x128xbf16>
    %c0_10 = arith.constant 0 : index
    %c0_11 = arith.constant 0 : index
    %33 = vector.load %arg7[%c0_10, %c0_11] : memref<128x384xbf16, #tpu.memory_space<vmem>>, vector<128x128xbf16>
    %cst_12 = arith.constant dense<0.000000e+00> : vector<16x128xf32>
    %34 = tpu.matmul %32, %33, %cst_12 {dimension_numbers = #tpu.dot_dimension_numbers<[1], [0], [0], [1], [0, 0, 1, 1], [], []>} : vector<16x128xbf16>, vector<128x128xbf16>, vector<16x128xf32> -> vector<16x128xf32>
    %c0_13 = arith.constant 0 : index
    %c0_14 = arith.constant 0 : index
    %35 = vector.load %arg8[%c0_13, %c0_14] : memref<1x384xf32, #tpu.memory_space<vmem>>, vector<1x128xf32>
    %36 = vector.broadcast %35 : vector<1x128xf32> to vector<16x128xf32>
    %37 = arith.addf %34, %36 : vector<16x128xf32>
    %cst_15 = arith.constant 0.176776692 : f32
    %38 = vector.broadcast %cst_15 : f32 to vector<16x128xf32>
    %39 = arith.mulf %37, %38 : vector<16x128xf32>
    %40 = arith.truncf %39 : vector<16x128xf32> to vector<16x128xbf16>
    %41 = tpu.iota {dimensions = array<i32: 0>} : vector<16x32xi32>
    %42 = vector.broadcast %4 : i32 to vector<16x32xi32>
    %43 = arith.addi %42, %41 : vector<16x32xi32>
    %44 = tpu.iota {dimensions = array<i32: 1>} : vector<16x32xi32>
    %c0_16 = arith.constant 0 : index
    %c0_17 = arith.constant 0 : index
    %45 = vector.load %arg3[%c0_16, %c0_17] : memref<16x32xf32, #tpu.memory_space<vmem>>, vector<16x32xf32>
    %46 = arith.cmpi sle, %44, %43 : vector<16x32xi32>
    %cst_18 = arith.constant 0.000000e+00 : f32
    %cst_19 = arith.constant -1.000000e+09 : f32
    %47 = vector.broadcast %cst_18 : f32 to vector<16x32xf32>
    %48 = vector.broadcast %cst_19 : f32 to vector<16x32xf32>
    %49 = arith.select %46, %47, %48 : vector<16x32xi1>, vector<16x32xf32>
    %50 = arith.addf %45, %49 : vector<16x32xf32>
    %51 = vector.extract_strided_slice %40 {offsets = [0, 0], sizes = [16, 32], strides = [1, 1]} : vector<16x128xbf16> to vector<16x32xbf16>
    %c0_20 = arith.constant 0 : index
    %c0_21 = arith.constant 0 : index
    %52 = vector.load %arg18[%c0_20, %c0_21] : memref<32x128xbf16, #tpu.memory_space<vmem>>, vector<32x32xbf16>
    %cst_22 = arith.constant dense<0.000000e+00> : vector<16x32xf32>
    %53 = tpu.matmul %51, %52, %cst_22 {dimension_numbers = #tpu.dot_dimension_numbers<[1], [1], [0], [0], [0, 0, 1, 0], [], []>} : vector<16x32xbf16>, vector<32x32xbf16>, vector<16x32xf32> -> vector<16x32xf32>
    %54 = arith.addf %53, %50 : vector<16x32xf32>
    %cst_23 = arith.constant dense<0xFF800000> : vector<16xf32>
    %55 = vector.multi_reduction <maximumf>, %54, %cst_23 [1] : vector<16x32xf32> to vector<16xf32>
    %56 = vector.shape_cast %55 : vector<16xf32> to vector<16x1xf32>
    %57 = vector.broadcast %56 : vector<16x1xf32> to vector<16x32xf32>
    %58 = arith.subf %54, %57 : vector<16x32xf32>
    %59 = arith.truncf %58 : vector<16x32xf32> to vector<16x32xbf16>
    %60 = math.exp %59 : vector<16x32xbf16>
    %61 = arith.extf %60 : vector<16x32xbf16> to vector<16x32xf32>
    %cst_24 = arith.constant dense<0.000000e+00> : vector<16xf32>
    %62 = vector.multi_reduction <add>, %61, %cst_24 [1] : vector<16x32xf32> to vector<16xf32>
    %63 = vector.shape_cast %62 : vector<16xf32> to vector<16x1xf32>
    %c0_25 = arith.constant 0 : index
    %c0_26 = arith.constant 0 : index
    %64 = vector.load %arg19[%c0_25, %c0_26] : memref<32x128xbf16, #tpu.memory_space<vmem>>, vector<32x32xbf16>
    %cst_27 = arith.constant dense<0.000000e+00> : vector<16x32xf32>
    %65 = tpu.matmul %60, %64, %cst_27 {dimension_numbers = #tpu.dot_dimension_numbers<[1], [0], [0], [1], [0, 0, 1, 1], [], []>} : vector<16x32xbf16>, vector<32x32xbf16>, vector<16x32xf32> -> vector<16x32xf32>
    %66 = tpu.reciprocal %63 {approx = true} : vector<16x1xf32> -> vector<16x1xf32>
    %67 = vector.broadcast %66 : vector<16x1xf32> to vector<16x32xf32>
    %68 = arith.mulf %65, %67 : vector<16x32xf32>
    %69 = arith.truncf %68 : vector<16x32xf32> to vector<16x32xbf16>
    %c0_28 = arith.constant 0 : index
    %c0_29 = arith.constant 0 : index
    %70 = vector.load %arg20[%c0_28, %c0_29] : memref<16x128xbf16, #tpu.memory_space<vmem>>, vector<16x32xbf16>
    tpu.vector_store %arg20[%c0_28, %c0_29], %69 {strides = array<i32>} : memref<16x128xbf16, #tpu.memory_space<vmem>>, vector<16x32xbf16>,
    %71 = vector.extract_strided_slice %40 {offsets = [0, 32], sizes = [16, 32], strides = [1, 1]} : vector<16x128xbf16> to vector<16x32xbf16>
    %c0_30 = arith.constant 0 : index
    %c32 = arith.constant 32 : index
    %72 = vector.load %arg18[%c0_30, %c32] : memref<32x128xbf16, #tpu.memory_space<vmem>>, vector<32x32xbf16>
    %cst_31 = arith.constant dense<0.000000e+00> : vector<16x32xf32>
    %73 = tpu.matmul %71, %72, %cst_31 {dimension_numbers = #tpu.dot_dimension_numbers<[1], [1], [0], [0], [0, 0, 1, 0], [], []>} : vector<16x32xbf16>, vector<32x32xbf16>, vector<16x32xf32> -> vector<16x32xf32>
    %74 = arith.addf %73, %50 : vector<16x32xf32>
    %cst_32 = arith.constant dense<0xFF800000> : vector<16xf32>
    %75 = vector.multi_reduction <maximumf>, %74, %cst_32 [1] : vector<16x32xf32> to vector<16xf32>
    %76 = vector.shape_cast %75 : vector<16xf32> to vector<16x1xf32>
    %77 = vector.broadcast %76 : vector<16x1xf32> to vector<16x32xf32>
    %78 = arith.subf %74, %77 : vector<16x32xf32>
    %79 = arith.truncf %78 : vector<16x32xf32> to vector<16x32xbf16>
    %80 = math.exp %79 : vector<16x32xbf16>
    %81 = arith.extf %80 : vector<16x32xbf16> to vector<16x32xf32>
    %cst_33 = arith.constant dense<0.000000e+00> : vector<16xf32>
    %82 = vector.multi_reduction <add>, %81, %cst_33 [1] : vector<16x32xf32> to vector<16xf32>
    %83 = vector.shape_cast %82 : vector<16xf32> to vector<16x1xf32>
    %c0_34 = arith.constant 0 : index
    %c32_35 = arith.constant 32 : index
    %84 = vector.load %arg19[%c0_34, %c32_35] : memref<32x128xbf16, #tpu.memory_space<vmem>>, vector<32x32xbf16>
    %cst_36 = arith.constant dense<0.000000e+00> : vector<16x32xf32>
    %85 = tpu.matmul %80, %84, %cst_36 {dimension_numbers = #tpu.dot_dimension_numbers<[1], [0], [0], [1], [0, 0, 1, 1], [], []>} : vector<16x32xbf16>, vector<32x32xbf16>, vector<16x32xf32> -> vector<16x32xf32>
    %86 = tpu.reciprocal %83 {approx = true} : vector<16x1xf32> -> vector<16x1xf32>
    %87 = vector.broadcast %86 : vector<16x1xf32> to vector<16x32xf32>
    %88 = arith.mulf %85, %87 : vector<16x32xf32>
    %89 = arith.truncf %88 : vector<16x32xf32> to vector<16x32xbf16>
    %c0_37 = arith.constant 0 : index
    %c32_38 = arith.constant 32 : index
    %90 = vector.load %arg20[%c0_37, %c32_38] : memref<16x128xbf16, #tpu.memory_space<vmem>>, vector<16x32xbf16>
    tpu.vector_store %arg20[%c0_37, %c32_38], %89 {strides = array<i32>} : memref<16x128xbf16, #tpu.memory_space<vmem>>, vector<16x32xbf16>,
    %91 = vector.extract_strided_slice %40 {offsets = [0, 64], sizes = [16, 32], strides = [1, 1]} : vector<16x128xbf16> to vector<16x32xbf16>
    %c0_39 = arith.constant 0 : index
    %c64 = arith.constant 64 : index
    %92 = vector.load %arg18[%c0_39, %c64] : memref<32x128xbf16, #tpu.memory_space<vmem>>, vector<32x32xbf16>
    %cst_40 = arith.constant dense<0.000000e+00> : vector<16x32xf32>
    %93 = tpu.matmul %91, %92, %cst_40 {dimension_numbers = #tpu.dot_dimension_numbers<[1], [1], [0], [0], [0, 0, 1, 0], [], []>} : vector<16x32xbf16>, vector<32x32xbf16>, vector<16x32xf32> -> vector<16x32xf32>
    %94 = arith.addf %93, %50 : vector<16x32xf32>
    %cst_41 = arith.constant dense<0xFF800000> : vector<16xf32>
    %95 = vector.multi_reduction <maximumf>, %94, %cst_41 [1] : vector<16x32xf32> to vector<16xf32>
    %96 = vector.shape_cast %95 : vector<16xf32> to vector<16x1xf32>
    %97 = vector.broadcast %96 : vector<16x1xf32> to vector<16x32xf32>
    %98 = arith.subf %94, %97 : vector<16x32xf32>
    %99 = arith.truncf %98 : vector<16x32xf32> to vector<16x32xbf16>
    %100 = math.exp %99 : vector<16x32xbf16>
    %101 = arith.extf %100 : vector<16x32xbf16> to vector<16x32xf32>
    %cst_42 = arith.constant dense<0.000000e+00> : vector<16xf32>
    %102 = vector.multi_reduction <add>, %101, %cst_42 [1] : vector<16x32xf32> to vector<16xf32>
    %103 = vector.shape_cast %102 : vector<16xf32> to vector<16x1xf32>
    %c0_43 = arith.constant 0 : index
    %c64_44 = arith.constant 64 : index
    %104 = vector.load %arg19[%c0_43, %c64_44] : memref<32x128xbf16, #tpu.memory_space<vmem>>, vector<32x32xbf16>
    %cst_45 = arith.constant dense<0.000000e+00> : vector<16x32xf32>
    %105 = tpu.matmul %100, %104, %cst_45 {dimension_numbers = #tpu.dot_dimension_numbers<[1], [0], [0], [1], [0, 0, 1, 1], [], []>} : vector<16x32xbf16>, vector<32x32xbf16>, vector<16x32xf32> -> vector<16x32xf32>
    %106 = tpu.reciprocal %103 {approx = true} : vector<16x1xf32> -> vector<16x1xf32>
    %107 = vector.broadcast %106 : vector<16x1xf32> to vector<16x32xf32>
    %108 = arith.mulf %105, %107 : vector<16x32xf32>
    %109 = arith.truncf %108 : vector<16x32xf32> to vector<16x32xbf16>
    %c0_46 = arith.constant 0 : index
    %c64_47 = arith.constant 64 : index
    %110 = vector.load %arg20[%c0_46, %c64_47] : memref<16x128xbf16, #tpu.memory_space<vmem>>, vector<16x32xbf16>
    tpu.vector_store %arg20[%c0_46, %c64_47], %109 {strides = array<i32>} : memref<16x128xbf16, #tpu.memory_space<vmem>>, vector<16x32xbf16>,
    %111 = vector.extract_strided_slice %40 {offsets = [0, 96], sizes = [16, 32], strides = [1, 1]} : vector<16x128xbf16> to vector<16x32xbf16>
    %c0_48 = arith.constant 0 : index
    %c96 = arith.constant 96 : index
    %112 = vector.load %arg18[%c0_48, %c96] : memref<32x128xbf16, #tpu.memory_space<vmem>>, vector<32x32xbf16>
    %cst_49 = arith.constant dense<0.000000e+00> : vector<16x32xf32>
    %113 = tpu.matmul %111, %112, %cst_49 {dimension_numbers = #tpu.dot_dimension_numbers<[1], [1], [0], [0], [0, 0, 1, 0], [], []>} : vector<16x32xbf16>, vector<32x32xbf16>, vector<16x32xf32> -> vector<16x32xf32>
    %114 = arith.addf %113, %50 : vector<16x32xf32>
    %cst_50 = arith.constant dense<0xFF800000> : vector<16xf32>
    %115 = vector.multi_reduction <maximumf>, %114, %cst_50 [1] : vector<16x32xf32> to vector<16xf32>
    %116 = vector.shape_cast %115 : vector<16xf32> to vector<16x1xf32>
    %117 = vector.broadcast %116 : vector<16x1xf32> to vector<16x32xf32>
    %118 = arith.subf %114, %117 : vector<16x32xf32>
    %119 = arith.truncf %118 : vector<16x32xf32> to vector<16x32xbf16>
    %120 = math.exp %119 : vector<16x32xbf16>
    %121 = arith.extf %120 : vector<16x32xbf16> to vector<16x32xf32>
    %cst_51 = arith.constant dense<0.000000e+00> : vector<16xf32>
    %122 = vector.multi_reduction <add>, %121, %cst_51 [1] : vector<16x32xf32> to vector<16xf32>
    %123 = vector.shape_cast %122 : vector<16xf32> to vector<16x1xf32>
    %c0_52 = arith.constant 0 : index
    %c96_53 = arith.constant 96 : index
    %124 = vector.load %arg19[%c0_52, %c96_53] : memref<32x128xbf16, #tpu.memory_space<vmem>>, vector<32x32xbf16>
    %cst_54 = arith.constant dense<0.000000e+00> : vector<16x32xf32>
    %125 = tpu.matmul %120, %124, %cst_54 {dimension_numbers = #tpu.dot_dimension_numbers<[1], [0], [0], [1], [0, 0, 1, 1], [], []>} : vector<16x32xbf16>, vector<32x32xbf16>, vector<16x32xf32> -> vector<16x32xf32>
    %126 = tpu.reciprocal %123 {approx = true} : vector<16x1xf32> -> vector<16x1xf32>
    %127 = vector.broadcast %126 : vector<16x1xf32> to vector<16x32xf32>
    %128 = arith.mulf %125, %127 : vector<16x32xf32>
    %129 = arith.truncf %128 : vector<16x32xf32> to vector<16x32xbf16>
    %c0_55 = arith.constant 0 : index
    %c96_56 = arith.constant 96 : index
    %130 = vector.load %arg20[%c0_55, %c96_56] : memref<16x128xbf16, #tpu.memory_space<vmem>>, vector<16x32xbf16>
    tpu.vector_store %arg20[%c0_55, %c96_56], %129 {strides = array<i32>} : memref<16x128xbf16, #tpu.memory_space<vmem>>, vector<16x32xbf16>,
    %c0_57 = arith.constant 0 : index
    %c0_58 = arith.constant 0 : index
    %131 = vector.load %arg20[%c0_57, %c0_58] : memref<16x128xbf16, #tpu.memory_space<vmem>>, vector<16x128xbf16>
    %c0_59 = arith.constant 0 : index
    %c0_60 = arith.constant 0 : index
    %132 = vector.load %arg9[%c0_59, %c0_60] : memref<128x128xbf16, #tpu.memory_space<vmem>>, vector<128x128xbf16>
    %cst_61 = arith.constant dense<0.000000e+00> : vector<16x128xf32>
    %133 = tpu.matmul %131, %132, %cst_61 {dimension_numbers = #tpu.dot_dimension_numbers<[1], [0], [0], [1], [0, 0, 1, 1], [], []>} : vector<16x128xbf16>, vector<128x128xbf16>, vector<16x128xf32> -> vector<16x128xf32>
    %c0_62 = arith.constant 0 : index
    %c0_63 = arith.constant 0 : index
    %134 = vector.load %arg10[%c0_62, %c0_63] : memref<1x128xf32, #tpu.memory_space<vmem>>, vector<1x128xf32>
    %135 = vector.broadcast %134 : vector<1x128xf32> to vector<16x128xf32>
    %136 = arith.addf %133, %135 : vector<16x128xf32>
    %137 = arith.addf %7, %136 : vector<16x128xf32>
    %c0_64 = arith.constant 0 : index
    %c0_65 = arith.constant 0 : index
    %138 = vector.load %arg11[%c0_64, %c0_65] : memref<1x128xf32, #tpu.memory_space<vmem>>, vector<1x128xf32>
    %c0_66 = arith.constant 0 : index
    %c0_67 = arith.constant 0 : index
    %139 = vector.load %arg12[%c0_66, %c0_67] : memref<1x128xf32, #tpu.memory_space<vmem>>, vector<1x128xf32>
    %cst_68 = arith.constant dense<0.000000e+00> : vector<16xf32>
    %140 = vector.multi_reduction <add>, %137, %cst_68 [1] : vector<16x128xf32> to vector<16xf32>
    %141 = vector.shape_cast %140 : vector<16xf32> to vector<16x1xf32>
    %cst_69 = arith.constant 1.280000e+02 : f32
    %142 = vector.broadcast %cst_69 : f32 to vector<16x1xf32>
    %143 = arith.divf %141, %142 : vector<16x1xf32>
    %144 = vector.broadcast %143 : vector<16x1xf32> to vector<16x128xf32>
    %145 = arith.subf %137, %144 : vector<16x128xf32>
    %146 = arith.mulf %145, %145 : vector<16x128xf32>
    %cst_70 = arith.constant dense<0.000000e+00> : vector<16xf32>
    %147 = vector.multi_reduction <add>, %146, %cst_70 [1] : vector<16x128xf32> to vector<16xf32>
    %148 = vector.shape_cast %147 : vector<16xf32> to vector<16x1xf32>
    %cst_71 = arith.constant 1.280000e+02 : f32
    %149 = vector.broadcast %cst_71 : f32 to vector<16x1xf32>
    %150 = arith.divf %148, %149 : vector<16x1xf32>
    %151 = vector.broadcast %143 : vector<16x1xf32> to vector<16x128xf32>
    %152 = arith.subf %137, %151 : vector<16x128xf32>
    %cst_72 = arith.constant 9.99999974E-6 : f32
    %153 = vector.broadcast %cst_72 : f32 to vector<16x1xf32>
    %154 = arith.addf %150, %153 : vector<16x1xf32>
    %155 = math.rsqrt %154 : vector<16x1xf32>
    %156 = vector.broadcast %155 : vector<16x1xf32> to vector<16x128xf32>
    %157 = arith.mulf %152, %156 : vector<16x128xf32>
    %158 = vector.broadcast %138 : vector<1x128xf32> to vector<16x128xf32>
    %159 = arith.mulf %157, %158 : vector<16x128xf32>
    %160 = vector.broadcast %139 : vector<1x128xf32> to vector<16x128xf32>
    %161 = arith.addf %159, %160 : vector<16x128xf32>
    %162 = arith.truncf %161 : vector<16x128xf32> to vector<16x128xbf16>
    %c0_73 = arith.constant 0 : index
    %c0_74 = arith.constant 0 : index
    %163 = vector.load %arg13[%c0_73, %c0_74] : memref<128x512xbf16, #tpu.memory_space<vmem>>, vector<128x512xbf16>
    %cst_75 = arith.constant dense<0.000000e+00> : vector<16x512xf32>
    %164 = tpu.matmul %162, %163, %cst_75 {dimension_numbers = #tpu.dot_dimension_numbers<[1], [0], [0], [1], [0, 0, 1, 1], [], []>} : vector<16x128xbf16>, vector<128x512xbf16>, vector<16x512xf32> -> vector<16x512xf32>
    %c0_76 = arith.constant 0 : index
    %c0_77 = arith.constant 0 : index
    %165 = vector.load %arg14[%c0_76, %c0_77] : memref<1x512xf32, #tpu.memory_space<vmem>>, vector<1x512xf32>
    %166 = vector.broadcast %165 : vector<1x512xf32> to vector<16x512xf32>
    %167 = arith.addf %164, %166 : vector<16x512xf32>
    %cst_78 = arith.constant 5.000000e-01 : f32
    %168 = vector.broadcast %cst_78 : f32 to vector<16x512xf32>
    %169 = arith.mulf %168, %167 : vector<16x512xf32>
    %cst_79 = arith.constant 4.471500e-02 : f32
    %170 = vector.broadcast %cst_79 : f32 to vector<16x512xf32>
    %171 = arith.mulf %170, %167 : vector<16x512xf32>
    %172 = arith.mulf %171, %167 : vector<16x512xf32>
    %173 = arith.mulf %172, %167 : vector<16x512xf32>
    %174 = arith.addf %167, %173 : vector<16x512xf32>
    %cst_80 = arith.constant 0.797884583 : f32
    %175 = vector.broadcast %cst_80 : f32 to vector<16x512xf32>
    %176 = arith.mulf %175, %174 : vector<16x512xf32>
    %177 = math.tanh %176 : vector<16x512xf32>
    %cst_81 = arith.constant 1.000000e+00 : f32
    %178 = vector.broadcast %cst_81 : f32 to vector<16x512xf32>
    %179 = arith.addf %178, %177 : vector<16x512xf32>
    %180 = arith.mulf %169, %179 : vector<16x512xf32>
    %181 = arith.truncf %180 : vector<16x512xf32> to vector<16x512xbf16>
    %c0_82 = arith.constant 0 : index
    %c0_83 = arith.constant 0 : index
    %182 = vector.load %arg15[%c0_82, %c0_83] : memref<512x128xbf16, #tpu.memory_space<vmem>>, vector<512x128xbf16>
    %cst_84 = arith.constant dense<0.000000e+00> : vector<16x128xf32>
    %183 = tpu.matmul %181, %182, %cst_84 {dimension_numbers = #tpu.dot_dimension_numbers<[1], [0], [0], [1], [0, 0, 1, 1], [], []>} : vector<16x512xbf16>, vector<512x128xbf16>, vector<16x128xf32> -> vector<16x128xf32>
    %c0_85 = arith.constant 0 : index
    %c0_86 = arith.constant 0 : index
    %184 = vector.load %arg16[%c0_85, %c0_86] : memref<1x128xf32, #tpu.memory_space<vmem>>, vector<1x128xf32>
    %185 = vector.broadcast %184 : vector<1x128xf32> to vector<16x128xf32>
    %186 = arith.addf %183, %185 : vector<16x128xf32>
    %187 = arith.addf %137, %186 : vector<16x128xf32>
    %c0_87 = arith.constant 0 : index
    %c0_88 = arith.constant 0 : index
    %c0_89 = arith.constant 0 : index
    %188 = vector.load %arg4[%c0_87, %c0_88, %c0_89] : memref<1x16x1xf32, #tpu.memory_space<vmem>>, vector<1x16x1xf32>
    %189 = vector.shape_cast %188 : vector<1x16x1xf32> to vector<16x1xf32>
    %190 = vector.broadcast %189 : vector<16x1xf32> to vector<16x128xf32>
    %191 = arith.mulf %187, %190 : vector<16x128xf32>
    %c0_90 = arith.constant 0 : index
    %c0_91 = arith.constant 0 : index
    %c0_92 = arith.constant 0 : index
    %192 = vector.load %arg17[%c0_90, %c0_91, %c0_92] : memref<1x16x128xf32, #tpu.memory_space<vmem>>, vector<1x16x128xf32>
    %193 = vector.shape_cast %192 : vector<1x16x128xf32> to vector<16x128xf32>
    %194 = vector.shape_cast %191 : vector<16x128xf32> to vector<1x16x128xf32>
    tpu.vector_store %arg17[%c0_90, %c0_91, %c0_92], %194 {strides = array<i32>} : memref<1x16x128xf32, #tpu.memory_space<vmem>>, vector<1x16x128xf32>,
    return
  }
  func.func @transform_0(%arg0: i32, %arg1: i32) -> (i32, i32, i32) {
    %c0_i32 = arith.constant 0 : i32
    %c0_i32_0 = arith.constant 0 : i32
    %c0_i32_1 = arith.constant 0 : i32
    return %arg0, %c0_i32, %c0_i32_0 : i32, i32, i32
  }
  func.func @transform_1(%arg0: i32, %arg1: i32) -> (i32, i32) {
    %c0_i32 = arith.constant 0 : i32
    %c0_i32_0 = arith.constant 0 : i32
    return %arg1, %c0_i32 : i32, i32
  }
  func.func @transform_2(%arg0: i32, %arg1: i32) -> (i32, i32, i32) {
    %c0_i32 = arith.constant 0 : i32
    %c0_i32_0 = arith.constant 0 : i32
    return %arg0, %arg1, %c0_i32 : i32, i32, i32
  }
  func.func @transform_3(%arg0: i32, %arg1: i32) -> (i32, i32) {
    %c0_i32 = arith.constant 0 : i32
    %c0_i32_0 = arith.constant 0 : i32
    %c0_i32_1 = arith.constant 0 : i32
    return %c0_i32, %c0_i32_0 : i32, i32
  }
  func.func @transform_4(%arg0: i32, %arg1: i32) -> (i32, i32) {
    %c0_i32 = arith.constant 0 : i32
    %c0_i32_0 = arith.constant 0 : i32
    %c0_i32_1 = arith.constant 0 : i32
    return %c0_i32, %c0_i32_0 : i32, i32
  }
  func.func @transform_5(%arg0: i32, %arg1: i32) -> (i32, i32) {
    %c0_i32 = arith.constant 0 : i32
    %c0_i32_0 = arith.constant 0 : i32
    %c0_i32_1 = arith.constant 0 : i32
    return %c0_i32, %c0_i32_0 : i32, i32
  }
  func.func @transform_6(%arg0: i32, %arg1: i32) -> (i32, i32) {
    %c0_i32 = arith.constant 0 : i32
    %c0_i32_0 = arith.constant 0 : i32
    %c0_i32_1 = arith.constant 0 : i32
    return %c0_i32, %c0_i32_0 : i32, i32
  }
  func.func @transform_7(%arg0: i32, %arg1: i32) -> (i32, i32) {
    %c0_i32 = arith.constant 0 : i32
    %c0_i32_0 = arith.constant 0 : i32
    %c0_i32_1 = arith.constant 0 : i32
    return %c0_i32, %c0_i32_0 : i32, i32
  }
  func.func @transform_8(%arg0: i32, %arg1: i32) -> (i32, i32) {
    %c0_i32 = arith.constant 0 : i32
    %c0_i32_0 = arith.constant 0 : i32
    %c0_i32_1 = arith.constant 0 : i32
    return %c0_i32, %c0_i32_0 : i32, i32
  }
  func.func @transform_9(%arg0: i32, %arg1: i32) -> (i32, i32) {
    %c0_i32 = arith.constant 0 : i32
    %c0_i32_0 = arith.constant 0 : i32
    %c0_i32_1 = arith.constant 0 : i32
    return %c0_i32, %c0_i32_0 : i32, i32
  }
  func.func @transform_10(%arg0: i32, %arg1: i32) -> (i32, i32) {
    %c0_i32 = arith.constant 0 : i32
    %c0_i32_0 = arith.constant 0 : i32
    %c0_i32_1 = arith.constant 0 : i32
    return %c0_i32, %c0_i32_0 : i32, i32
  }
  func.func @transform_11(%arg0: i32, %arg1: i32) -> (i32, i32) {
    %c0_i32 = arith.constant 0 : i32
    %c0_i32_0 = arith.constant 0 : i32
    %c0_i32_1 = arith.constant 0 : i32
    return %c0_i32, %c0_i32_0 : i32, i32
  }
  func.func @transform_12(%arg0: i32, %arg1: i32) -> (i32, i32) {
    %c0_i32 = arith.constant 0 : i32
    %c0_i32_0 = arith.constant 0 : i32
    %c0_i32_1 = arith.constant 0 : i32
    return %c0_i32, %c0_i32_0 : i32, i32
  }
  func.func @transform_13(%arg0: i32, %arg1: i32) -> (i32, i32) {
    %c0_i32 = arith.constant 0 : i32
    %c0_i32_0 = arith.constant 0 : i32
    %c0_i32_1 = arith.constant 0 : i32
    return %c0_i32, %c0_i32_0 : i32, i32
  }
  func.func @transform_14(%arg0: i32, %arg1: i32) -> (i32, i32) {
    %c0_i32 = arith.constant 0 : i32
    %c0_i32_0 = arith.constant 0 : i32
    %c0_i32_1 = arith.constant 0 : i32
    return %c0_i32, %c0_i32_0 : i32, i32
  }
  func.func @transform_15(%arg0: i32, %arg1: i32) -> (i32, i32, i32) {
    %c0_i32 = arith.constant 0 : i32
    %c0_i32_0 = arith.constant 0 : i32
    return %arg0, %arg1, %c0_i32 : i32, i32, i32
  }
}

</mosaic_0001>

<llo_original>
// kernel: tpu_custom_call.1
$region0: #{tpu_custom_call.1}
  #allocation0 [shape = 'u32[]', space=smem, size = 0x4, offset = 0x4, fixed_abs, tag = 'smem constant byte address 0x4 - core index']
  #allocation1 [shape = 'u32[72,128]{1,0:T(1,128)}', space=vmem, size = 0x9000, scoped, tag = 'internal scratch']
  #allocation2 [shape = 'bf16[32,128]{1,0:T(8,128)(2,1)}', space=vmem, size = 0x2000, scoped, tag = 'scratch operand']
  #allocation3 [shape = 'bf16[32,128]{1,0:T(8,128)(2,1)}', space=vmem, size = 0x2000, scoped, tag = 'scratch operand']
  #allocation4 [shape = 'bf16[16,128]{1,0:T(8,128)(2,1)}', space=vmem, size = 0x1000, scoped, tag = 'scratch operand']
  %s0 = inlined_call_operand.vmem [shape: f32[2,32,128], index: 0, kind: input, shape index: {}]
  %s1 = inlined_call_operand.hbm [shape: f32[32,32], index: 1, kind: input, shape index: {}]
  %s2 = inlined_call_operand.vmem [shape: f32[2,32,1], index: 2, kind: input, shape index: {}]
  %s3 = inlined_call_operand.hbm [shape: f32[1,128], index: 3, kind: input, shape index: {}]
  %s4 = inlined_call_operand.hbm [shape: f32[1,128], index: 4, kind: input, shape index: {}]
  %s5 = inlined_call_operand.hbm [shape: bf16[128,384], index: 5, kind: input, shape index: {}]
  %s6 = inlined_call_operand.vmem [shape: f32[1,384], index: 6, kind: input, shape index: {}]
  %s7 = inlined_call_operand.hbm [shape: bf16[128,128], index: 7, kind: input, shape index: {}]
  %s8 = inlined_call_operand.vmem [shape: f32[1,128], index: 8, kind: input, shape index: {}]
  %s9 = inlined_call_operand.vmem [shape: f32[1,128], index: 9, kind: input, shape index: {}]
  %s10 = inlined_call_operand.vmem [shape: f32[1,128], index: 10, kind: input, shape index: {}]
  %s11 = inlined_call_operand.hbm [shape: bf16[128,512], index: 11, kind: input, shape index: {}]
  %s12 = inlined_call_operand.vmem [shape: f32[1,512], index: 12, kind: input, shape index: {}]
  %s13 = inlined_call_operand.hbm [shape: bf16[512,128], index: 13, kind: input, shape index: {}]
  %s14 = inlined_call_operand.vmem [shape: f32[1,128], index: 14, kind: input, shape index: {}]
  %s15 = inlined_call_operand.hbm [shape: f32[2,32,128], index: 15, kind: output, shape index: {}]
  %s16 = sld [smem:[#allocation0]]
  $region125: #{tpu_custom_call.1} parent=0
    _
  %s18 = ssub.s32 1, %s16
  %s19 = scalar_select 0, %s18, %s16
  $region1: #{tpu_custom_call.1} parent=0
    #allocation5 [shape = 'u8[16384]{0}', space=vmem, size = 0x4000, scoped, tag = 'input window, operand 1']
    #allocation6 [shape = 's32[2]{0}', space=sflag, size = 0x8, scoped, tag = 'scoped memory for tpu_custom_call.1']
    #allocation7 [shape = 's32[2]{0}', space=sflag, size = 0x8, scoped, tag = 'scoped memory for tpu_custom_call.1']
    #allocation8 [shape = 'u8[512]{0}', space=vmem, size = 0x400, scoped, tag = 'input window, operand 3, single buffered']
    #allocation9 [shape = 's32[1]{0}', space=sflag, size = 0x4, scoped, tag = 'scoped memory for tpu_custom_call.1']
    #allocation10 [shape = 'u8[512]{0}', space=vmem, size = 0x400, scoped, tag = 'input window, operand 4, single buffered']
    #allocation11 [shape = 'u8[98304]{0}', space=vmem, size = 0x18000, scoped, tag = 'input window, operand 5, single buffered']
    #allocation12 [shape = 's32[1]{0}', space=sflag, size = 0x4, scoped, tag = 'scoped memory for tpu_custom_call.1']
    #allocation13 [shape = 'u8[32768]{0}', space=vmem, size = 0x8000, scoped, tag = 'input window, operand 7, single buffered']
    #allocation14 [shape = 'u8[131072]{0}', space=vmem, size = 0x20000, scoped, tag = 'input window, operand 11, single buffered']
    #allocation15 [shape = 's32[1]{0}', space=sflag, size = 0x4, scoped, tag = 'scoped memory for tpu_custom_call.1']
    #allocation16 [shape = 'u8[131072]{0}', space=vmem, size = 0x20000, scoped, tag = 'input window, operand 13, single buffered']
    #allocation17 [shape = 'u8[16384]{0}', space=vmem, size = 0x4000, scoped, tag = 'output window, operand 0']
    %20 = vsyncpa [#allocation6], 0
    %s21 = scalar_lea.sflag [#allocation6], 1
    %22 = vsyncpa %s21, 0
    %23 = vsyncpa [#allocation9], 0
    %24 = vsyncpa [#allocation12], 0
    %25 = vsyncpa [#allocation15], 0
    %26 = vsyncpa [#allocation7], 0
    %s27 = scalar_lea.sflag [#allocation7], 1
    %28 = vsyncpa %s27, 0
    loop: start=0, step=1, limit=6
    $region2: #{tpu_custom_call.1} parent=1 // loop_pre_header
      _
    $region3: #{tpu_custom_call.1} parent=1 // loop_header
      %s30 = sphi 0, %s34
      %p31 = scmp.ge.s32.totalorder %s30, 6
      %s37 = sphi 0, %s49
      %s38 = sphi 0, %s45
      %s39 = sphi 0, %s37
      %s40 = sphi 0, %s38
      %s41 = sphi 0, %s39
      %s42 = sphi 0, %s40
      %s52 = sphi 0, %s54
      %s55 = sphi 0, %s52
      %s56 = sphi 0, %s55
      %s72 = sphi 0, %s56
      %s78 = sphi 0, %s80
      %s81 = sphi 0, %s78
      %s82 = sphi 0, %s81
      %s98 = sphi 0, %s82
      %s106 = sphi 0, %s108
      %s109 = sphi 0, %s106
      %s110 = sphi 0, %s109
      %s126 = sphi 0, %s110
      %s130 = sphi 0, %s130
      %s132 = sphi 0, %s130
      %s133 = sphi 0, %s132
      %s147 = sphi 0, %s133
      %s151 = sphi 0, %s151
      %s153 = sphi 0, %s151
      %s154 = sphi 0, %s153
      %s168 = sphi 0, %s154
      %s172 = sphi 0, %s172
      %s174 = sphi 0, %s172
      %s175 = sphi 0, %s174
      %s189 = sphi 0, %s175
      %s193 = sphi 0, %s193
      %s195 = sphi 0, %s193
      %s196 = sphi 0, %s195
      %s210 = sphi 0, %s196
      %s214 = sphi 0, %s214
      %s216 = sphi 0, %s214
      %s217 = sphi 0, %s216
      %s231 = sphi 0, %s217
      %s235 = sphi 0, %s235
      %s237 = sphi 0, %s235
      %s238 = sphi 0, %s237
      %s252 = sphi 0, %s238
      %s256 = sphi 0, %s256
      %s258 = sphi 0, %s256
      %s259 = sphi 0, %s258
      %s273 = sphi 0, %s259
      %s277 = sphi 0, %s277
      %s279 = sphi 0, %s277
      %s280 = sphi 0, %s279
      %s294 = sphi 0, %s280
      %s298 = sphi 0, %s298
      %s300 = sphi 0, %s298
      %s301 = sphi 0, %s300
      %s315 = sphi 0, %s301
      %s319 = sphi 0, %s319
      %s321 = sphi 0, %s319
      %s322 = sphi 0, %s321
      %s336 = sphi 0, %s322
      %s340 = sphi 0, %s340
      %s342 = sphi 0, %s340
      %s343 = sphi 0, %s342
      %s357 = sphi 0, %s343
      %s361 = sphi 0, %s361
      %s363 = sphi 0, %s361
      %s364 = sphi 0, %s363
      %s378 = sphi 0, %s364
      %s386 = sphi 0, %s388
      %s389 = sphi 0, %s386
      %s390 = sphi 0, %s389
      %s406 = sphi 0, %s390
    $region4: #{tpu_custom_call.1} parent=1 // loop_header_branch
      %33 = sbr.rel (%p31) target = $region8
    $region5: #{tpu_custom_call.1} parent=1 // loop_body
      %s35 = ssub.s32 %s30, 1
      %s36 = ssub.s32 %s30, 2
      %s43 = sadd.s32 1, %s38
      %p44 = scmp.ge.s32.totalorder %s43, 2
      %s45 = scalar_select %p44, 0, %s43
      %s46 = sadd.s32 1, %s37
      %s47 = scalar_select %p44, %s46, %s37
      %p48 = scmp.ge.s32.totalorder %s47, 2
      %s49 = scalar_select %p48, 0, %s47
      %s50 = ssub.s32 %s37, %s49
      %p51 = scmp.eq.s32.totalorder %s50, 0
      %s53 = sadd.s32 %s52, 1
      %s54 = scalar_select %p51, %s52, %s53
      %p57 = pneg %p51
      %p58 = scmp.eq.s32.totalorder %s30, 3
      %p59 = por %p57, %p58
      %p60 = scmp.ne.s32.totalorder %s52, %s55
      %p61 = scmp.eq.s32.totalorder %s30, 0
      %p62 = por %p60, %p61
      %p63 = scmp.ne.s32.totalorder %s52, %s55
      %p64 = scmp.eq.s32.totalorder %s35, 3
      %p65 = por %p63, %p64
      %p66 = scmp.ne.s32.totalorder %s55, %s56
      %p67 = scmp.eq.s32.totalorder %s35, 0
      %p68 = por %p66, %p67
      %p69 = scmp.ne.s32.totalorder %s55, %s56
      %p70 = scmp.eq.s32.totalorder %s36, 3
      %p71 = por %p69, %p70
      %p73 = scmp.ne.s32.totalorder %s56, %s72
      %p74 = scmp.eq.s32.totalorder %s36, 0
      %p75 = por %p73, %p74
      %s76 = ssub.s32 %s38, %s45
      %p77 = scmp.eq.s32.totalorder %s76, 0
      %s79 = sadd.s32 %s78, 1
      %s80 = scalar_select %p77, %s78, %s79
      %p83 = pneg %p77
      %p84 = scmp.eq.s32.totalorder %s30, 3
      %p85 = por %p83, %p84
      %p86 = scmp.ne.s32.totalorder %s78, %s81
      %p87 = scmp.eq.s32.totalorder %s30, 0
      %p88 = por %p86, %p87
      %p89 = scmp.ne.s32.totalorder %s78, %s81
      %p90 = scmp.eq.s32.totalorder %s35, 3
      %p91 = por %p89, %p90
      %p92 = scmp.ne.s32.totalorder %s81, %s82
      %p93 = scmp.eq.s32.totalorder %s35, 0
      %p94 = por %p92, %p93
      %p95 = scmp.ne.s32.totalorder %s81, %s82
      %p96 = scmp.eq.s32.totalorder %s36, 3
      %p97 = por %p95, %p96
      %p99 = scmp.ne.s32.totalorder %s82, %s98
      %p100 = scmp.eq.s32.totalorder %s36, 0
      %p101 = por %p99, %p100
      %s102 = ssub.s32 %s37, %s49
      %s103 = ssub.s32 %s38, %s45
      %s104 = sor.u32 %s102, %s103
      %p105 = scmp.eq.s32.totalorder %s104, 0
      %s107 = sadd.s32 %s106, 1
      %s108 = scalar_select %p105, %s106, %s107
      %p111 = pneg %p105
      %p112 = scmp.eq.s32.totalorder %s30, 3
      %p113 = por %p111, %p112
      %p114 = scmp.ne.s32.totalorder %s106, %s109
      %p115 = scmp.eq.s32.totalorder %s30, 0
      %p116 = por %p114, %p115
      %p117 = scmp.ne.s32.totalorder %s106, %s109
      %p118 = scmp.eq.s32.totalorder %s35, 3
      %p119 = por %p117, %p118
      %p120 = scmp.ne.s32.totalorder %s109, %s110
      %p121 = scmp.eq.s32.totalorder %s35, 0
      %p122 = por %p120, %p121
      %p123 = scmp.ne.s32.totalorder %s109, %s110
      %p124 = scmp.eq.s32.totalorder %s36, 3
      %p125 = por %p123, %p124
      %p127 = scmp.ne.s32.totalorder %s110, %s126
      %p128 = scmp.eq.s32.totalorder %s36, 0
      %p129 = por %p127, %p128
      %s131 = sadd.s32 %s130, 1
      %p134 = scmp.eq.s32.totalorder %s30, 3
      %p135 = scmp.ne.s32.totalorder %s130, %s132
      %p136 = scmp.eq.s32.totalorder %s30, 0
      %p137 = por %p135, %p136
      %p138 = scmp.ne.s32.totalorder %s130, %s132
      %p139 = scmp.eq.s32.totalorder %s35, 3
      %p140 = por %p138, %p139
      %p141 = scmp.ne.s32.totalorder %s132, %s133
      %p142 = scmp.eq.s32.totalorder %s35, 0
      %p143 = por %p141, %p142
      %p144 = scmp.ne.s32.totalorder %s132, %s133
      %p145 = scmp.eq.s32.totalorder %s36, 3
      %p146 = por %p144, %p145
      %p148 = scmp.ne.s32.totalorder %s133, %s147
      %p149 = scmp.eq.s32.totalorder %s36, 0
      %p150 = por %p148, %p149
      %s152 = sadd.s32 %s151, 1
      %p155 = scmp.eq.s32.totalorder %s30, 3
      %p156 = scmp.ne.s32.totalorder %s151, %s153
      %p157 = scmp.eq.s32.totalorder %s30, 0
      %p158 = por %p156, %p157
      %p159 = scmp.ne.s32.totalorder %s151, %s153
      %p160 = scmp.eq.s32.totalorder %s35, 3
      %p161 = por %p159, %p160
      %p162 = scmp.ne.s32.totalorder %s153, %s154
      %p163 = scmp.eq.s32.totalorder %s35, 0
      %p164 = por %p162, %p163
      %p165 = scmp.ne.s32.totalorder %s153, %s154
      %p166 = scmp.eq.s32.totalorder %s36, 3
      %p167 = por %p165, %p166
      %p169 = scmp.ne.s32.totalorder %s154, %s168
      %p170 = scmp.eq.s32.totalorder %s36, 0
      %p171 = por %p169, %p170
      %s173 = sadd.s32 %s172, 1
      %p176 = scmp.eq.s32.totalorder %s30, 3
      %p177 = scmp.ne.s32.totalorder %s172, %s174
      %p178 = scmp.eq.s32.totalorder %s30, 0
      %p179 = por %p177, %p178
      %p180 = scmp.ne.s32.totalorder %s172, %s174
      %p181 = scmp.eq.s32.totalorder %s35, 3
      %p182 = por %p180, %p181
      %p183 = scmp.ne.s32.totalorder %s174, %s175
      %p184 = scmp.eq.s32.totalorder %s35, 0
      %p185 = por %p183, %p184
      %p186 = scmp.ne.s32.totalorder %s174, %s175
      %p187 = scmp.eq.s32.totalorder %s36, 3
      %p188 = por %p186, %p187
      %p190 = scmp.ne.s32.totalorder %s175, %s189
      %p191 = scmp.eq.s32.totalorder %s36, 0
      %p192 = por %p190, %p191
      %s194 = sadd.s32 %s193, 1
      %p197 = scmp.eq.s32.totalorder %s30, 3
      %p198 = scmp.ne.s32.totalorder %s193, %s195
      %p199 = scmp.eq.s32.totalorder %s30, 0
      %p200 = por %p198, %p199
      %p201 = scmp.ne.s32.totalorder %s193, %s195
      %p202 = scmp.eq.s32.totalorder %s35, 3
      %p203 = por %p201, %p202
      %p204 = scmp.ne.s32.totalorder %s195, %s196
      %p205 = scmp.eq.s32.totalorder %s35, 0
      %p206 = por %p204, %p205
      %p207 = scmp.ne.s32.totalorder %s195, %s196
      %p208 = scmp.eq.s32.totalorder %s36, 3
      %p209 = por %p207, %p208
      %p211 = scmp.ne.s32.totalorder %s196, %s210
      %p212 = scmp.eq.s32.totalorder %s36, 0
      %p213 = por %p211, %p212
      %s215 = sadd.s32 %s214, 1
      %p218 = scmp.eq.s32.totalorder %s30, 3
      %p219 = scmp.ne.s32.totalorder %s214, %s216
      %p220 = scmp.eq.s32.totalorder %s30, 0
      %p221 = por %p219, %p220
      %p222 = scmp.ne.s32.totalorder %s214, %s216
      %p223 = scmp.eq.s32.totalorder %s35, 3
      %p224 = por %p222, %p223
      %p225 = scmp.ne.s32.totalorder %s216, %s217
      %p226 = scmp.eq.s32.totalorder %s35, 0
      %p227 = por %p225, %p226
      %p228 = scmp.ne.s32.totalorder %s216, %s217
      %p229 = scmp.eq.s32.totalorder %s36, 3
      %p230 = por %p228, %p229
      %p232 = scmp.ne.s32.totalorder %s217, %s231
      %p233 = scmp.eq.s32.totalorder %s36, 0
      %p234 = por %p232, %p233
      %s236 = sadd.s32 %s235, 1
      %p239 = scmp.eq.s32.totalorder %s30, 3
      %p240 = scmp.ne.s32.totalorder %s235, %s237
      %p241 = scmp.eq.s32.totalorder %s30, 0
      %p242 = por %p240, %p241
      %p243 = scmp.ne.s32.totalorder %s235, %s237
      %p244 = scmp.eq.s32.totalorder %s35, 3
      %p245 = por %p243, %p244
      %p246 = scmp.ne.s32.totalorder %s237, %s238
      %p247 = scmp.eq.s32.totalorder %s35, 0
      %p248 = por %p246, %p247
      %p249 = scmp.ne.s32.totalorder %s237, %s238
      %p250 = scmp.eq.s32.totalorder %s36, 3
      %p251 = por %p249, %p250
      %p253 = scmp.ne.s32.totalorder %s238, %s252
      %p254 = scmp.eq.s32.totalorder %s36, 0
      %p255 = por %p253, %p254
      %s257 = sadd.s32 %s256, 1
      %p260 = scmp.eq.s32.totalorder %s30, 3
      %p261 = scmp.ne.s32.totalorder %s256, %s258
      %p262 = scmp.eq.s32.totalorder %s30, 0
      %p263 = por %p261, %p262
      %p264 = scmp.ne.s32.totalorder %s256, %s258
      %p265 = scmp.eq.s32.totalorder %s35, 3
      %p266 = por %p264, %p265
      %p267 = scmp.ne.s32.totalorder %s258, %s259
      %p268 = scmp.eq.s32.totalorder %s35, 0
      %p269 = por %p267, %p268
      %p270 = scmp.ne.s32.totalorder %s258, %s259
      %p271 = scmp.eq.s32.totalorder %s36, 3
      %p272 = por %p270, %p271
      %p274 = scmp.ne.s32.totalorder %s259, %s273
      %p275 = scmp.eq.s32.totalorder %s36, 0
      %p276 = por %p274, %p275
      %s278 = sadd.s32 %s277, 1
      %p281 = scmp.eq.s32.totalorder %s30, 3
      %p282 = scmp.ne.s32.totalorder %s277, %s279
      %p283 = scmp.eq.s32.totalorder %s30, 0
      %p284 = por %p282, %p283
      %p285 = scmp.ne.s32.totalorder %s277, %s279
      %p286 = scmp.eq.s32.totalorder %s35, 3
      %p287 = por %p285, %p286
      %p288 = scmp.ne.s32.totalorder %s279, %s280
      %p289 = scmp.eq.s32.totalorder %s35, 0
      %p290 = por %p288, %p289
      %p291 = scmp.ne.s32.totalorder %s279, %s280
      %p292 = scmp.eq.s32.totalorder %s36, 3
      %p293 = por %p291, %p292
      %p295 = scmp.ne.s32.totalorder %s280, %s294
      %p296 = scmp.eq.s32.totalorder %s36, 0
      %p297 = por %p295, %p296
      %s299 = sadd.s32 %s298, 1
      %p302 = scmp.eq.s32.totalorder %s30, 3
      %p303 = scmp.ne.s32.totalorder %s298, %s300
      %p304 = scmp.eq.s32.totalorder %s30, 0
      %p305 = por %p303, %p304
      %p306 = scmp.ne.s32.totalorder %s298, %s300
      %p307 = scmp.eq.s32.totalorder %s35, 3
      %p308 = por %p306, %p307
      %p309 = scmp.ne.s32.totalorder %s300, %s301
      %p310 = scmp.eq.s32.totalorder %s35, 0
      %p311 = por %p309, %p310
      %p312 = scmp.ne.s32.totalorder %s300, %s301
      %p313 = scmp.eq.s32.totalorder %s36, 3
      %p314 = por %p312, %p313
      %p316 = scmp.ne.s32.totalorder %s301, %s315
      %p317 = scmp.eq.s32.totalorder %s36, 0
      %p318 = por %p316, %p317
      %s320 = sadd.s32 %s319, 1
      %p323 = scmp.eq.s32.totalorder %s30, 3
      %p324 = scmp.ne.s32.totalorder %s319, %s321
      %p325 = scmp.eq.s32.totalorder %s30, 0
      %p326 = por %p324, %p325
      %p327 = scmp.ne.s32.totalorder %s319, %s321
      %p328 = scmp.eq.s32.totalorder %s35, 3
      %p329 = por %p327, %p328
      %p330 = scmp.ne.s32.totalorder %s321, %s322
      %p331 = scmp.eq.s32.totalorder %s35, 0
      %p332 = por %p330, %p331
      %p333 = scmp.ne.s32.totalorder %s321, %s322
      %p334 = scmp.eq.s32.totalorder %s36, 3
      %p335 = por %p333, %p334
      %p337 = scmp.ne.s32.totalorder %s322, %s336
      %p338 = scmp.eq.s32.totalorder %s36, 0
      %p339 = por %p337, %p338
      %s341 = sadd.s32 %s340, 1
      %p344 = scmp.eq.s32.totalorder %s30, 3
      %p345 = scmp.ne.s32.totalorder %s340, %s342
      %p346 = scmp.eq.s32.totalorder %s30, 0
      %p347 = por %p345, %p346
      %p348 = scmp.ne.s32.totalorder %s340, %s342
      %p349 = scmp.eq.s32.totalorder %s35, 3
      %p350 = por %p348, %p349
      %p351 = scmp.ne.s32.totalorder %s342, %s343
      %p352 = scmp.eq.s32.totalorder %s35, 0
      %p353 = por %p351, %p352
      %p354 = scmp.ne.s32.totalorder %s342, %s343
      %p355 = scmp.eq.s32.totalorder %s36, 3
      %p356 = por %p354, %p355
      %p358 = scmp.ne.s32.totalorder %s343, %s357
      %p359 = scmp.eq.s32.totalorder %s36, 0
      %p360 = por %p358, %p359
      %s362 = sadd.s32 %s361, 1
      %p365 = scmp.eq.s32.totalorder %s30, 3
      %p366 = scmp.ne.s32.totalorder %s361, %s363
      %p367 = scmp.eq.s32.totalorder %s30, 0
      %p368 = por %p366, %p367
      %p369 = scmp.ne.s32.totalorder %s361, %s363
      %p370 = scmp.eq.s32.totalorder %s35, 3
      %p371 = por %p369, %p370
      %p372 = scmp.ne.s32.totalorder %s363, %s364
      %p373 = scmp.eq.s32.totalorder %s35, 0
      %p374 = por %p372, %p373
      %p375 = scmp.ne.s32.totalorder %s363, %s364
      %p376 = scmp.eq.s32.totalorder %s36, 3
      %p377 = por %p375, %p376
      %p379 = scmp.ne.s32.totalorder %s364, %s378
      %p380 = scmp.eq.s32.totalorder %s36, 0
      %p381 = por %p379, %p380
      %s382 = ssub.s32 %s37, %s49
      %s383 = ssub.s32 %s38, %s45
      %s384 = sor.u32 %s382, %s383
      %p385 = scmp.eq.s32.totalorder %s384, 0
      %s387 = sadd.s32 %s386, 1
      %s388 = scalar_select %p385, %s386, %s387
      %p391 = pneg %p385
      %p392 = scmp.eq.s32.totalorder %s30, 3
      %p393 = por %p391, %p392
      %p394 = scmp.ne.s32.totalorder %s386, %s389
      %p395 = scmp.eq.s32.totalorder %s30, 0
      %p396 = por %p394, %p395
      %p397 = scmp.ne.s32.totalorder %s386, %s389
      %p398 = scmp.eq.s32.totalorder %s35, 3
      %p399 = por %p397, %p398
      %p400 = scmp.ne.s32.totalorder %s389, %s390
      %p401 = scmp.eq.s32.totalorder %s35, 0
      %p402 = por %p400, %p401
      %p403 = scmp.ne.s32.totalorder %s389, %s390
      %p404 = scmp.eq.s32.totalorder %s36, 3
      %p405 = por %p403, %p404
      %p407 = scmp.ne.s32.totalorder %s390, %s406
      %p408 = scmp.eq.s32.totalorder %s36, 0
      %p409 = por %p407, %p408
      %p410 = scmp.le.s32.totalorder 1, %s30
      %p411 = scmp.lt.s32.totalorder %s30, 5
      %p412 = pnand %p410, %p411
      %p413 = pneg %p412
      // Predicated region
      $region9: #{tpu_custom_call.1} parent=5 // pred_check
        _
      $region10: #{tpu_custom_call.1} parent=5 // pred_check_branch
        %415 = sbr.rel (%p412) target = $region12
      $region11: #{tpu_custom_call.1} parent=5 // pred_region
        %s416 = ssub.s32 %s30, 1
        // Predicated region
        $region13: #{tpu_custom_call.1} parent=11 // pred_check
          %p417 = pneg %p143
        $region14: #{tpu_custom_call.1} parent=11 // pred_check_branch
          %419 = sbr.rel (%p417) target = $region16
        $region15: #{tpu_custom_call.1} parent=11 // pred_region
          %421 = vsyncadd [#allocation9], 0
          %s423 = sshll.u32 %s3, 4
          %s424 = int_to_ptr.hbm [resolvable:$true] %s423
          %s425 = sshll.u32 [#allocation8], 4
          %s426 = int_to_ptr.vmem [resolvable:$true] %s425
          %428 = dma.hbm_to_vmem [thread:$0]  %s424, 16, %s426, [#allocation9]
        $region16: #{tpu_custom_call.1} parent=11 // pred_fallthru
          _
        // Predicated region
        $region17: #{tpu_custom_call.1} parent=11 // pred_check
          %p429 = pneg %p164
        $region18: #{tpu_custom_call.1} parent=11 // pred_check_branch
          %431 = sbr.rel (%p429) target = $region20
        $region19: #{tpu_custom_call.1} parent=11 // pred_region
          %433 = vsyncadd [#allocation9], 0
          %s435 = sshll.u32 %s4, 4
          %s436 = int_to_ptr.hbm [resolvable:$true] %s435
          %s437 = sshll.u32 [#allocation10], 4
          %s438 = int_to_ptr.vmem [resolvable:$true] %s437
          %440 = dma.hbm_to_vmem [thread:$0]  %s436, 16, %s438, [#allocation9]
        $region20: #{tpu_custom_call.1} parent=11 // pred_fallthru
          _
        // Predicated region
        $region21: #{tpu_custom_call.1} parent=11 // pred_check
          %p441 = pneg %p185
        $region22: #{tpu_custom_call.1} parent=11 // pred_check_branch
          %443 = sbr.rel (%p441) target = $region24
        $region23: #{tpu_custom_call.1} parent=11 // pred_region
          %445 = vsyncadd [#allocation12], 0
          %s446 = sshll.u32 %s5, 4
          %s447 = int_to_ptr.hbm [resolvable:$true] %s446
          %s448 = sshll.u32 [#allocation11], 4
          %s449 = int_to_ptr.vmem [resolvable:$true] %s448
          %454 = dma.hbm_to_vmem [thread:$0]  %s447, 3072, %s449, [#allocation12], 192, 192, 12
        $region24: #{tpu_custom_call.1} parent=11 // pred_fallthru
          _
        // Predicated region
        $region25: #{tpu_custom_call.1} parent=11 // pred_check
          %p455 = pneg %p206
        $region26: #{tpu_custom_call.1} parent=11 // pred_check_branch
          %457 = sbr.rel (%p455) target = $region28
        $region27: #{tpu_custom_call.1} parent=11 // pred_region
          _
        $region28: #{tpu_custom_call.1} parent=11 // pred_fallthru
          _
        // Predicated region
        $region29: #{tpu_custom_call.1} parent=11 // pred_check
          %p458 = pneg %p227
        $region30: #{tpu_custom_call.1} parent=11 // pred_check_branch
          %460 = sbr.rel (%p458) target = $region32
        $region31: #{tpu_custom_call.1} parent=11 // pred_region
          %462 = vsyncadd [#allocation12], 0
          %s463 = sshll.u32 %s7, 4
          %s464 = int_to_ptr.hbm [resolvable:$true] %s463
          %s465 = sshll.u32 [#allocation13], 4
          %s466 = int_to_ptr.vmem [resolvable:$true] %s465
          %471 = dma.hbm_to_vmem [thread:$0]  %s464, 1024, %s466, [#allocation12], 64, 64, 4
        $region32: #{tpu_custom_call.1} parent=11 // pred_fallthru
          _
        // Predicated region
        $region33: #{tpu_custom_call.1} parent=11 // pred_check
          %p472 = pneg %p248
        $region34: #{tpu_custom_call.1} parent=11 // pred_check_branch
          %474 = sbr.rel (%p472) target = $region36
        $region35: #{tpu_custom_call.1} parent=11 // pred_region
          _
        $region36: #{tpu_custom_call.1} parent=11 // pred_fallthru
          _
        // Predicated region
        $region37: #{tpu_custom_call.1} parent=11 // pred_check
          %p475 = pneg %p269
        $region38: #{tpu_custom_call.1} parent=11 // pred_check_branch
          %477 = sbr.rel (%p475) target = $region40
        $region39: #{tpu_custom_call.1} parent=11 // pred_region
          _
        $region40: #{tpu_custom_call.1} parent=11 // pred_fallthru
          _
        // Predicated region
        $region41: #{tpu_custom_call.1} parent=11 // pred_check
          %p478 = pneg %p290
        $region42: #{tpu_custom_call.1} parent=11 // pred_check_branch
          %480 = sbr.rel (%p478) target = $region44
        $region43: #{tpu_custom_call.1} parent=11 // pred_region
          _
        $region44: #{tpu_custom_call.1} parent=11 // pred_fallthru
          _
        // Predicated region
        $region45: #{tpu_custom_call.1} parent=11 // pred_check
          %p481 = pneg %p311
        $region46: #{tpu_custom_call.1} parent=11 // pred_check_branch
          %483 = sbr.rel (%p481) target = $region48
        $region47: #{tpu_custom_call.1} parent=11 // pred_region
          %485 = vsyncadd [#allocation15], 0
          %s486 = sshll.u32 %s11, 4
          %s487 = int_to_ptr.hbm [resolvable:$true] %s486
          %s488 = sshll.u32 [#allocation14], 4
          %s489 = int_to_ptr.vmem [resolvable:$true] %s488
          %494 = dma.hbm_to_vmem [thread:$0]  %s487, 4096, %s489, [#allocation15], 256, 256, 16
        $region48: #{tpu_custom_call.1} parent=11 // pred_fallthru
          _
        // Predicated region
        $region49: #{tpu_custom_call.1} parent=11 // pred_check
          %p495 = pneg %p332
        $region50: #{tpu_custom_call.1} parent=11 // pred_check_branch
          %497 = sbr.rel (%p495) target = $region52
        $region51: #{tpu_custom_call.1} parent=11 // pred_region
          _
        $region52: #{tpu_custom_call.1} parent=11 // pred_fallthru
          _
        // Predicated region
        $region53: #{tpu_custom_call.1} parent=11 // pred_check
          %p498 = pneg %p353
        $region54: #{tpu_custom_call.1} parent=11 // pred_check_branch
          %500 = sbr.rel (%p498) target = $region56
        $region55: #{tpu_custom_call.1} parent=11 // pred_region
          %502 = vsyncadd [#allocation15], 0
          %s503 = sshll.u32 %s13, 4
          %s504 = int_to_ptr.hbm [resolvable:$true] %s503
          %s505 = sshll.u32 [#allocation16], 4
          %s506 = int_to_ptr.vmem [resolvable:$true] %s505
          %511 = dma.hbm_to_vmem [thread:$0]  %s504, 4096, %s506, [#allocation15], 64, 64, 4
        $region56: #{tpu_custom_call.1} parent=11 // pred_fallthru
          _
        // Predicated region
        $region57: #{tpu_custom_call.1} parent=11 // pred_check
          %p512 = pneg %p374
        $region58: #{tpu_custom_call.1} parent=11 // pred_check_branch
          %514 = sbr.rel (%p512) target = $region60
        $region59: #{tpu_custom_call.1} parent=11 // pred_region
          _
        $region60: #{tpu_custom_call.1} parent=11 // pred_fallthru
          _
      $region12: #{tpu_custom_call.1} parent=5 // pred_fallthru
        _
      %p515 = scmp.lt.s32.totalorder %s30, 4
      // Predicated region
      $region61: #{tpu_custom_call.1} parent=5 // pred_check
        %p516 = pneg %p515
      $region62: #{tpu_custom_call.1} parent=5 // pred_check_branch
        %518 = sbr.rel (%p516) target = $region64
      $region63: #{tpu_custom_call.1} parent=5 // pred_region
        // Predicated region
        $region65: #{tpu_custom_call.1} parent=63 // pred_check
          %p519 = pneg %p62
        $region66: #{tpu_custom_call.1} parent=63 // pred_check_branch
          %521 = sbr.rel (%p519) target = $region68
        $region67: #{tpu_custom_call.1} parent=63 // pred_region
          %p522 = scmp.lt.s32.totalorder %s37, 1
          %s523 = scalar_select %p522, %s37, 1
          %s524 = smul.addr %s523, 4
          %s525 = smul.addr %s524, 8
          %s526 = scalar_lea.vmem %s0, %s525
        $region68: #{tpu_custom_call.1} parent=63 // pred_fallthru
          _
        // Predicated region
        $region69: #{tpu_custom_call.1} parent=63 // pred_check
          %p527 = pneg %p88
        $region70: #{tpu_custom_call.1} parent=63 // pred_check_branch
          %529 = sbr.rel (%p527) target = $region72
        $region71: #{tpu_custom_call.1} parent=63 // pred_region
          %s530 = sand.u32 %s78, 1
          %s531 = scalar_lea.sflag [#allocation6], %s530
          %s532 = sand.u32 %s78, 1
          %s533 = smul.addr %s532, 16
          %s534 = scalar_lea.vmem [#allocation5], %s533
          %s535 = smul.u32 2, %s38
          %537 = vsyncadd %s531, 0
          %s538 = smul.addr %s535, 8
          %s539 = scalar_lea.hbm %s1, %s538
          %s540 = sshll.u32 %s539, 4
          %s541 = int_to_ptr.hbm [resolvable:$true] %s540
          %s542 = sshll.u32 %s534, 4
          %s543 = int_to_ptr.vmem [resolvable:$true] %s542
          %548 = dma.hbm_to_vmem [thread:$0]  %s541, 256, %s543, %s531, 128, 128, 8
        $region72: #{tpu_custom_call.1} parent=63 // pred_fallthru
          _
        // Predicated region
        $region73: #{tpu_custom_call.1} parent=63 // pred_check
          %p549 = pneg %p116
        $region74: #{tpu_custom_call.1} parent=63 // pred_check_branch
          %551 = sbr.rel (%p549) target = $region76
        $region75: #{tpu_custom_call.1} parent=63 // pred_region
          %s552 = smul.u32 2, %s38
          %p553 = scmp.lt.s32.totalorder %s37, 1
          %s554 = scalar_select %p553, %s37, 1
          %p555 = scmp.lt.s32.totalorder %s552, 3
          %s556 = scalar_select %p555, %s552, 3
          %s557 = smul.addr %s554, 4
          %s558 = sadd.s32 %s556, %s557
          %s559 = smul.addr %s558, 8
          %s560 = scalar_lea.vmem %s2, %s559
          %s561 = smul.u32 2, %s38
        $region76: #{tpu_custom_call.1} parent=63 // pred_fallthru
          _
      $region64: #{tpu_custom_call.1} parent=5 // pred_fallthru
        _
      %p562 = scmp.le.s32.totalorder 1, %s30
      %p563 = scmp.lt.s32.totalorder %s30, 5
      %p564 = pnand %p562, %p563
      %p565 = pneg %p564
      // Predicated region
      $region77: #{tpu_custom_call.1} parent=5 // pred_check
        _
      $region78: #{tpu_custom_call.1} parent=5 // pred_check_branch
        %567 = sbr.rel (%p564) target = $region80
      $region79: #{tpu_custom_call.1} parent=5 // pred_region
        %s568 = ssub.s32 %s30, 1
        %s569 = sand.u32 %s81, 1
        %s570 = scalar_lea.sflag [#allocation6], %s569
        %s571 = sand.u32 %s81, 1
        %s572 = smul.addr %s571, 16
        %s573 = scalar_lea.vmem [#allocation5], %s572
        // Predicated region
        $region81: #{tpu_custom_call.1} parent=79 // pred_check
          %p574 = pneg %p94
        $region82: #{tpu_custom_call.1} parent=79 // pred_check_branch
          %576 = sbr.rel (%p574) target = $region84
        $region83: #{tpu_custom_call.1} parent=79 // pred_region
          %578 = dma.done %s570, 256
        $region84: #{tpu_custom_call.1} parent=79 // pred_fallthru
          _
        // Predicated region
        $region85: #{tpu_custom_call.1} parent=79 // pred_check
          %p579 = pneg %p143
        $region86: #{tpu_custom_call.1} parent=79 // pred_check_branch
          %581 = sbr.rel (%p579) target = $region88
        $region87: #{tpu_custom_call.1} parent=79 // pred_region
          %583 = dma.done [#allocation9], 16
        $region88: #{tpu_custom_call.1} parent=79 // pred_fallthru
          _
        // Predicated region
        $region89: #{tpu_custom_call.1} parent=79 // pred_check
          %p584 = pneg %p164
        $region90: #{tpu_custom_call.1} parent=79 // pred_check_branch
          %586 = sbr.rel (%p584) target = $region92
        $region91: #{tpu_custom_call.1} parent=79 // pred_region
          %588 = dma.done [#allocation9], 16
        $region92: #{tpu_custom_call.1} parent=79 // pred_fallthru
          _
        // Predicated region
        $region93: #{tpu_custom_call.1} parent=79 // pred_check
          %p589 = pneg %p185
        $region94: #{tpu_custom_call.1} parent=79 // pred_check_branch
          %591 = sbr.rel (%p589) target = $region96
        $region95: #{tpu_custom_call.1} parent=79 // pred_region
          %593 = dma.done [#allocation12], 3072
        $region96: #{tpu_custom_call.1} parent=79 // pred_fallthru
          _
        // Predicated region
        $region97: #{tpu_custom_call.1} parent=79 // pred_check
          %p594 = pneg %p227
        $region98: #{tpu_custom_call.1} parent=79 // pred_check_branch
          %596 = sbr.rel (%p594) target = $region100
        $region99: #{tpu_custom_call.1} parent=79 // pred_region
          %598 = dma.done [#allocation12], 1024
        $region100: #{tpu_custom_call.1} parent=79 // pred_fallthru
          _
        // Predicated region
        $region101: #{tpu_custom_call.1} parent=79 // pred_check
          %p599 = pneg %p311
        $region102: #{tpu_custom_call.1} parent=79 // pred_check_branch
          %601 = sbr.rel (%p599) target = $region104
        $region103: #{tpu_custom_call.1} parent=79 // pred_region
          %603 = dma.done [#allocation15], 4096
        $region104: #{tpu_custom_call.1} parent=79 // pred_fallthru
          _
        // Predicated region
        $region105: #{tpu_custom_call.1} parent=79 // pred_check
          %p604 = pneg %p353
        $region106: #{tpu_custom_call.1} parent=79 // pred_check_branch
          %606 = sbr.rel (%p604) target = $region108
        $region107: #{tpu_custom_call.1} parent=79 // pred_region
          %608 = dma.done [#allocation15], 4096
        $region108: #{tpu_custom_call.1} parent=79 // pred_fallthru
          _
        %p609 = scmp.lt.s32.totalorder %s39, 1
        %s610 = scalar_select %p609, %s39, 1
        %s611 = smul.addr %s610, 4
        %s612 = smul.addr %s611, 8
        %s613 = scalar_lea.vmem %s0, %s612
        %p614 = pneg %p68
        %p615 = pneg %p65
        %s616 = sand.u32 %s81, 1
        %s617 = scalar_lea.sflag [#allocation6], %s616
        %s618 = sand.u32 %s81, 1
        %s619 = smul.addr %s618, 16
        %s620 = scalar_lea.vmem [#allocation5], %s619
        %p621 = pneg %p94
        %p622 = pneg %p91
        %s623 = smul.u32 2, %s40
        %p624 = scmp.lt.s32.totalorder %s39, 1
        %s625 = scalar_select %p624, %s39, 1
        %p626 = scmp.lt.s32.totalorder %s623, 3
        %s627 = scalar_select %p626, %s623, 3
        %s628 = smul.addr %s625, 4
        %s629 = sadd.s32 %s627, %s628
        %s630 = smul.addr %s629, 8
        %s631 = scalar_lea.vmem %s2, %s630
        %p632 = pneg %p122
        %p633 = pneg %p119
        %p634 = pneg %p143
        %p635 = pneg %p140
        %p636 = pneg %p164
        %p637 = pneg %p161
        %p638 = pneg %p185
        %p639 = pneg %p182
        %p640 = pneg %p206
        %p641 = pneg %p203
        %p642 = pneg %p227
        %p643 = pneg %p224
        %p644 = pneg %p248
        %p645 = pneg %p245
        %p646 = pneg %p269
        %p647 = pneg %p266
        %p648 = pneg %p290
        %p649 = pneg %p287
        %p650 = pneg %p311
        %p651 = pneg %p308
        %p652 = pneg %p332
        %p653 = pneg %p329
        %p654 = pneg %p353
        %p655 = pneg %p350
        %p656 = pneg %p374
        %p657 = pneg %p371
        %p658 = pneg %p402
        %p659 = pneg %p399
        %s660 = sand.u32 %s389, 1
        %s661 = scalar_lea.sflag [#allocation7], %s660
        %s662 = sand.u32 %s389, 1
        %s663 = smul.addr %s662, 16
        %s664 = scalar_lea.vmem [#allocation17], %s663
        %p665 = scmp.lt.s32.totalorder %s39, 1
        %s666 = scalar_select %p665, %s39, 1
        %s667 = smul.addr %s666, 4
        %s668 = smul.addr %s667, 8
        %s669 = scalar_lea.vmem %s0, %s668
        %s670 = smul.u32 2, %s40
        %s671 = smul.u32 2, %s40
        %p672 = scmp.lt.s32.totalorder %s39, 1
        %s673 = scalar_select %p672, %s39, 1
        %p674 = scmp.lt.s32.totalorder %s671, 3
        %s675 = scalar_select %p674, %s671, 3
        %s676 = smul.addr %s673, 4
        %s677 = sadd.s32 %s675, %s676
        %s678 = smul.addr %s677, 8
        %s679 = scalar_lea.vmem %s2, %s678
        %s680 = smul.u32 2, %s40
        %s681 = smul.u32 2, %s40
        %p683 = scmp.eq.s32.totalorder %s40, 0
        // Predicated region
        $region109: #{tpu_custom_call.1} parent=79 // pred_check
          %p684 = pneg %p683
        $region110: #{tpu_custom_call.1} parent=79 // pred_check_branch
          %686 = sbr.rel (%p684) target = $region112
        $region111: #{tpu_custom_call.1} parent=79 // pred_region
          %v687 = vld [vmem:[%s669] sm:$0xff]
          %v688 = vld [vmem:[%s669 + $0x8] sm:$0xff]
          %v689 = vld [vmem:[%s669 + $0x10] sm:$0xff]
          %v690 = vld [vmem:[%s669 + $0x18] sm:$0xff]
          %v691 = vld [vmem:[#allocation8] sm:$0x1]
          %v692 = vld [vmem:[#allocation10] sm:$0x1]
          %693 = vadd.xlane.f32.xlu0 %v687
          %v694 = vpop.xlane.xlu0 %693
          %695 = vadd.xlane.f32.xlu0 %v688
          %v696 = vpop.xlane.xlu0 %695
          %697 = vadd.xlane.f32.xlu0 %v689
          %v698 = vpop.xlane.xlu0 %697
          %699 = vadd.xlane.f32.xlu0 %v690
          %v700 = vpop.xlane.xlu0 %699
          %v701 = vrcp.pop 128.0
          %v702 = vmul.f32 128.0, %v701
          %v703 = vsub.f32 1.0, %v702
          %v704 = vmul.f32 %v701, %v703
          %v705 = vadd.f32 %v701, %v704
          %vm706 = vweird.f32 %v701
          %v707 = vsel %vm706, %v701, %v705
          %v708 = vmul.f32 %v694, %v707
          %v709 = vmul.f32 %v696, %v707
          %v710 = vmul.f32 %v698, %v707
          %v711 = vmul.f32 %v700, %v707
          %v712 = vsub.f32 %v687, %v708
          %v713 = vsub.f32 %v688, %v709
          %v714 = vsub.f32 %v689, %v710
          %v715 = vsub.f32 %v690, %v711
          %v716 = vmul.f32 %v712, %v712
          %v717 = vmul.f32 %v713, %v713
          %v718 = vmul.f32 %v714, %v714
          %v719 = vmul.f32 %v715, %v715
          %720 = vadd.xlane.f32.xlu0 %v716
          %v721 = vpop.xlane.xlu0 %720
          %722 = vadd.xlane.f32.xlu0 %v717
          %v723 = vpop.xlane.xlu0 %722
          %724 = vadd.xlane.f32.xlu0 %v718
          %v725 = vpop.xlane.xlu0 %724
          %726 = vadd.xlane.f32.xlu0 %v719
          %v727 = vpop.xlane.xlu0 %726
          %v728 = vmul.f32 %v721, %v707
          %v729 = vmul.f32 %v723, %v707
          %v730 = vmul.f32 %v725, %v707
          %v731 = vmul.f32 %v727, %v707
          %v732 = vadd.f32 %v728, 1e-05
          %v733 = vadd.f32 %v729, 1e-05
          %v734 = vadd.f32 %v730, 1e-05
          %v735 = vadd.f32 %v731, 1e-05
          %v736 = vrsqrt.pop %v732
          %v737 = vmul.f32 %v736, %v732
          %v738 = vmul.f32 %v737, %v736
          %v739 = vmul.f32 0.5, %v738
          %v740 = vsub.f32 1.5, %v739
          %v741 = vmul.f32 %v736, %v740
          %vm742 = vweird.f32 %v732
          %vm743 = vweird.f32 %v736
          %vm744 = vmor %vm742, %vm743
          %v745 = vsel %vm744, %v736, %v741
          %v746 = vrsqrt.pop %v733
          %v747 = vmul.f32 %v746, %v733
          %v748 = vmul.f32 %v747, %v746
          %v749 = vmul.f32 0.5, %v748
          %v750 = vsub.f32 1.5, %v749
          %v751 = vmul.f32 %v746, %v750
          %vm752 = vweird.f32 %v733
          %vm753 = vweird.f32 %v746
          %vm754 = vmor %vm752, %vm753
          %v755 = vsel %vm754, %v746, %v751
          %v756 = vrsqrt.pop %v734
          %v757 = vmul.f32 %v756, %v734
          %v758 = vmul.f32 %v757, %v756
          %v759 = vmul.f32 0.5, %v758
          %v760 = vsub.f32 1.5, %v759
          %v761 = vmul.f32 %v756, %v760
          %vm762 = vweird.f32 %v734
          %vm763 = vweird.f32 %v756
          %vm764 = vmor %vm762, %vm763
          %v765 = vsel %vm764, %v756, %v761
          %v766 = vrsqrt.pop %v735
          %v767 = vmul.f32 %v766, %v735
          %v768 = vmul.f32 %v767, %v766
          %v769 = vmul.f32 0.5, %v768
          %v770 = vsub.f32 1.5, %v769
          %v771 = vmul.f32 %v766, %v770
          %vm772 = vweird.f32 %v735
          %vm773 = vweird.f32 %v766
          %vm774 = vmor %vm772, %vm773
          %v775 = vsel %vm774, %v766, %v771
          %v776 = vmul.f32 %v712, %v745
          %v777 = vmul.f32 %v713, %v755
          %v778 = vmul.f32 %v714, %v765
          %v779 = vmul.f32 %v715, %v775
          %v781 = vperm.slane %v691, 0
          %v783 = vmul.f32 %v776, %v781
          %v784 = vmul.f32 %v777, %v781
          %v785 = vmul.f32 %v778, %v781
          %v786 = vmul.f32 %v779, %v781
          %v788 = vperm.slane %v692, 0
          %v790 = vadd.f32 %v783, %v788
          %v791 = vadd.f32 %v784, %v788
          %v792 = vadd.f32 %v785, %v788
          %v793 = vadd.f32 %v786, %v788
          %v794 = vpack.c.bf16 %v791, %v790
          %v795 = vpack.c.bf16 %v793, %v792
          %v796 = vld [vmem:[#allocation11 + $0x4] sm:$0xff]
          %v797 = vld [vmem:[#allocation11 + $0x10] sm:$0xff]
          %v798 = vld [vmem:[#allocation11 + $0x1c] sm:$0xff]
          %v799 = vld [vmem:[#allocation11 + $0x28] sm:$0xff]
          %v800 = vld [vmem:[#allocation11 + $0x34] sm:$0xff]
          %v801 = vld [vmem:[#allocation11 + $0x40] sm:$0xff]
          %v802 = vld [vmem:[#allocation11 + $0x4c] sm:$0xff]
          %v803 = vld [vmem:[#allocation11 + $0x58] sm:$0xff]
          %v804 = vld [vmem:[#allocation11 + $0x64] sm:$0xff]
          %v805 = vld [vmem:[#allocation11 + $0x70] sm:$0xff]
          %v806 = vld [vmem:[#allocation11 + $0x7c] sm:$0xff]
          %v807 = vld [vmem:[#allocation11 + $0x88] sm:$0xff]
          %v808 = vld [vmem:[#allocation11 + $0x94] sm:$0xff]
          %v809 = vld [vmem:[#allocation11 + $0xa0] sm:$0xff]
          %v810 = vld [vmem:[#allocation11 + $0xac] sm:$0xff]
          %v811 = vld [vmem:[#allocation11 + $0xb8] sm:$0xff]
          %v812 = vld [vmem:[%s6 + $0x1] sm:$0x3]
          %v814 = vperm.slane %v812, 0
          %v815 = vperm.slane %v812, 1
          %v834 = vunpack.c.l.b16 %v796
          %v835 = vunpack.c.h.b16 %v796
          %v836 = vunpack.c.l.b16 %v797
          %v837 = vunpack.c.h.b16 %v797
          %v838 = vunpack.c.l.b16 %v798
          %v839 = vunpack.c.h.b16 %v798
          %v840 = vunpack.c.l.b16 %v799
          %v841 = vunpack.c.h.b16 %v799
          %v842 = vunpack.c.l.b16 %v800
          %v843 = vunpack.c.h.b16 %v800
          %v844 = vunpack.c.l.b16 %v801
          %v845 = vunpack.c.h.b16 %v801
          %v846 = vunpack.c.l.b16 %v802
          %v847 = vunpack.c.h.b16 %v802
          %v848 = vunpack.c.l.b16 %v803
          %v849 = vunpack.c.h.b16 %v803
          %v850 = vunpack.c.l.b16 %v804
          %v851 = vunpack.c.h.b16 %v804
          %v852 = vunpack.c.l.b16 %v805
          %v853 = vunpack.c.h.b16 %v805
          %v854 = vunpack.c.l.b16 %v806
          %v855 = vunpack.c.h.b16 %v806
          %v856 = vunpack.c.l.b16 %v807
          %v857 = vunpack.c.h.b16 %v807
          %v858 = vunpack.c.l.b16 %v808
          %v859 = vunpack.c.h.b16 %v808
          %v860 = vunpack.c.l.b16 %v809
          %v861 = vunpack.c.h.b16 %v809
          %v862 = vunpack.c.l.b16 %v810
          %v863 = vunpack.c.h.b16 %v810
          %v864 = vunpack.c.l.b16 %v811
          %v865 = vunpack.c.h.b16 %v811
          %v866 = vpack.c.b16 %v836, %v834
          %v867 = vpack.c.b16 %v837, %v835
          %v868 = vpack.c.b16 %v840, %v838
          %v869 = vpack.c.b16 %v841, %v839
          %v870 = vpack.c.b16 %v844, %v842
          %v871 = vpack.c.b16 %v845, %v843
          %v872 = vpack.c.b16 %v848, %v846
          %v873 = vpack.c.b16 %v849, %v847
          %v874 = vpack.c.b16 %v852, %v850
          %v875 = vpack.c.b16 %v853, %v851
          %v876 = vpack.c.b16 %v856, %v854
          %v877 = vpack.c.b16 %v857, %v855
          %v878 = vpack.c.b16 %v860, %v858
          %v879 = vpack.c.b16 %v861, %v859
          %v880 = vpack.c.b16 %v864, %v862
          %v881 = vpack.c.b16 %v865, %v863
          %898 = vmatpush.bf16.msra.mxu0 %v880
          %899 = vmatpush.bf16.msra.mxu0 %v878
          %900 = vmatpush.bf16.msra.mxu0 %v876
          %901 = vmatpush.bf16.msra.mxu0 %v874
          %902 = vmatpush.bf16.msra.mxu0 %v872
          %903 = vmatpush.bf16.msra.mxu0 %v870
          %904 = vmatpush.bf16.msra.mxu0 %v868
          %905 = vmatpush.bf16.msra.mxu0 %v866
          %906 = vmatmul.bf16.gmra.mxu0 %v794
          %v907 = vpop.f32.mrf.mxu0
          %v908 = vadd.f32 %v814, %v907
          %v909 = vpop.f32.mrf.mxu0
          %v910 = vadd.f32 %v814, %v909
          %911 = vmatmul.bf16.gmra.mxu0 %v795
          %v912 = vpop.f32.mrf.mxu0
          %v913 = vadd.f32 %v814, %v912
          %v914 = vpop.f32.mrf.mxu0
          %v915 = vadd.f32 %v814, %v914
          %916 = vdwg.mxu0
          %917 = vmatpush.bf16.msra.mxu0 %v881
          %918 = vmatpush.bf16.msra.mxu0 %v879
          %919 = vmatpush.bf16.msra.mxu0 %v877
          %920 = vmatpush.bf16.msra.mxu0 %v875
          %921 = vmatpush.bf16.msra.mxu0 %v873
          %922 = vmatpush.bf16.msra.mxu0 %v871
          %923 = vmatpush.bf16.msra.mxu0 %v869
          %924 = vmatpush.bf16.msra.mxu0 %v867
          %925 = vmatmul.bf16.gmra.mxu0 %v794
          %v926 = vpop.f32.mrf.mxu0
          %v927 = vadd.f32 %v815, %v926
          %v928 = vpop.f32.mrf.mxu0
          %v929 = vadd.f32 %v815, %v928
          %930 = vmatmul.bf16.gmra.mxu0 %v795
          %v931 = vpop.f32.mrf.mxu0
          %v932 = vadd.f32 %v815, %v931
          %v933 = vpop.f32.mrf.mxu0
          %v934 = vadd.f32 %v815, %v933
          %935 = vdwg.mxu0
          %v936 = vpack.c.bf16 %v908, %v908
          %v937 = vpack.c.bf16 %v910, %v910
          %v938 = vpack.c.bf16 %v913, %v913
          %v939 = vpack.c.bf16 %v915, %v915
          %940 = vst [vmem:[#allocation2] sm:$0xf] %v936
          %941 = vst [vmem:[#allocation2 + $0x4] sm:$0xf] %v937
          %942 = vst [vmem:[#allocation2 + $0x8] sm:$0xf] %v938
          %943 = vst [vmem:[#allocation2 + $0xc] sm:$0xf] %v939
          %v944 = vpack.c.bf16 %v927, %v927
          %v945 = vpack.c.bf16 %v929, %v929
          %v946 = vpack.c.bf16 %v932, %v932
          %v947 = vpack.c.bf16 %v934, %v934
          %948 = vst [vmem:[#allocation3] sm:$0xf] %v944
          %949 = vst [vmem:[#allocation3 + $0x4] sm:$0xf] %v945
          %950 = vst [vmem:[#allocation3 + $0x8] sm:$0xf] %v946
          %951 = vst [vmem:[#allocation3 + $0xc] sm:$0xf] %v947
        $region112: #{tpu_custom_call.1} parent=79 // pred_fallthru
          _
        %s952 = smul.u32 %s40, 16
        %s953 = scalar_lea.vmem %s669, %s952
        %v954 = vld [vmem:[%s953] sm:$0xff]
        %v955 = vld [vmem:[%s953 + $0x8] sm:$0xff]
        %v956 = vld [vmem:[#allocation8] sm:$0x1]
        %v957 = vld [vmem:[#allocation10] sm:$0x1]
        %958 = vadd.xlane.f32.xlu0 %v954
        %v959 = vpop.xlane.xlu0 %958
        %960 = vadd.xlane.f32.xlu0 %v955
        %v961 = vpop.xlane.xlu0 %960
        %v962 = vrcp.pop 128.0
        %v963 = vmul.f32 128.0, %v962
        %v964 = vsub.f32 1.0, %v963
        %v965 = vmul.f32 %v962, %v964
        %v966 = vadd.f32 %v962, %v965
        %vm967 = vweird.f32 %v962
        %v968 = vsel %vm967, %v962, %v966
        %v969 = vmul.f32 %v959, %v968
        %v970 = vmul.f32 %v961, %v968
        %v971 = vsub.f32 %v954, %v969
        %v972 = vsub.f32 %v955, %v970
        %v973 = vmul.f32 %v971, %v971
        %v974 = vmul.f32 %v972, %v972
        %975 = vadd.xlane.f32.xlu0 %v973
        %v976 = vpop.xlane.xlu0 %975
        %977 = vadd.xlane.f32.xlu0 %v974
        %v978 = vpop.xlane.xlu0 %977
        %v979 = vmul.f32 %v976, %v968
        %v980 = vmul.f32 %v978, %v968
        %v981 = vadd.f32 %v979, 1e-05
        %v982 = vadd.f32 %v980, 1e-05
        %v983 = vrsqrt.pop %v981
        %v984 = vmul.f32 %v983, %v981
        %v985 = vmul.f32 %v984, %v983
        %v986 = vmul.f32 0.5, %v985
        %v987 = vsub.f32 1.5, %v986
        %v988 = vmul.f32 %v983, %v987
        %vm989 = vweird.f32 %v981
        %vm990 = vweird.f32 %v983
        %vm991 = vmor %vm989, %vm990
        %v992 = vsel %vm991, %v983, %v988
        %v993 = vrsqrt.pop %v982
        %v994 = vmul.f32 %v993, %v982
        %v995 = vmul.f32 %v994, %v993
        %v996 = vmul.f32 0.5, %v995
        %v997 = vsub.f32 1.5, %v996
        %v998 = vmul.f32 %v993, %v997
        %vm999 = vweird.f32 %v982
        %vm1000 = vweird.f32 %v993
        %vm1001 = vmor %vm999, %vm1000
        %v1002 = vsel %vm1001, %v993, %v998
        %v1003 = vmul.f32 %v971, %v992
        %v1004 = vmul.f32 %v972, %v1002
        %v1006 = vperm.slane %v956, 0
        %v1008 = vmul.f32 %v1003, %v1006
        %v1009 = vmul.f32 %v1004, %v1006
        %v1011 = vperm.slane %v957, 0
        %v1013 = vadd.f32 %v1008, %v1011
        %v1014 = vadd.f32 %v1009, %v1011
        %v1015 = vpack.c.bf16 %v1014, %v1013
        %v1016 = vld [vmem:[#allocation11] sm:$0xf]
        %v1017 = vld [vmem:[#allocation11 + $0xc] sm:$0xf]
        %v1018 = vld [vmem:[#allocation11 + $0x18] sm:$0xf]
        %v1019 = vld [vmem:[#allocation11 + $0x24] sm:$0xf]
        %v1020 = vld [vmem:[#allocation11 + $0x30] sm:$0xf]
        %v1021 = vld [vmem:[#allocation11 + $0x3c] sm:$0xf]
        %v1022 = vld [vmem:[#allocation11 + $0x48] sm:$0xf]
        %v1023 = vld [vmem:[#allocation11 + $0x54] sm:$0xf]
        %v1024 = vld [vmem:[#allocation11 + $0x60] sm:$0xf]
        %v1025 = vld [vmem:[#allocation11 + $0x6c] sm:$0xf]
        %v1026 = vld [vmem:[#allocation11 + $0x78] sm:$0xf]
        %v1027 = vld [vmem:[#allocation11 + $0x84] sm:$0xf]
        %v1028 = vld [vmem:[#allocation11 + $0x90] sm:$0xf]
        %v1029 = vld [vmem:[#allocation11 + $0x9c] sm:$0xf]
        %v1030 = vld [vmem:[#allocation11 + $0xa8] sm:$0xf]
        %v1031 = vld [vmem:[#allocation11 + $0xb4] sm:$0xf]
        %v1032 = vld [vmem:[%s6] sm:$0x1]
        %v1034 = vperm.slane %v1032, 0
        %v1052 = vunpack.c.l.b16 %v1016
        %v1053 = vunpack.c.l.b16 %v1017
        %v1054 = vunpack.c.l.b16 %v1018
        %v1055 = vunpack.c.l.b16 %v1019
        %v1056 = vunpack.c.l.b16 %v1020
        %v1057 = vunpack.c.l.b16 %v1021
        %v1058 = vunpack.c.l.b16 %v1022
        %v1059 = vunpack.c.l.b16 %v1023
        %v1060 = vunpack.c.l.b16 %v1024
        %v1061 = vunpack.c.l.b16 %v1025
        %v1062 = vunpack.c.l.b16 %v1026
        %v1063 = vunpack.c.l.b16 %v1027
        %v1064 = vunpack.c.l.b16 %v1028
        %v1065 = vunpack.c.l.b16 %v1029
        %v1066 = vunpack.c.l.b16 %v1030
        %v1067 = vunpack.c.l.b16 %v1031
        %v1068 = vpack.c.b16 %v1053, %v1052
        %v1069 = vpack.c.b16 %v1055, %v1054
        %v1070 = vpack.c.b16 %v1057, %v1056
        %v1071 = vpack.c.b16 %v1059, %v1058
        %v1072 = vpack.c.b16 %v1061, %v1060
        %v1073 = vpack.c.b16 %v1063, %v1062
        %v1074 = vpack.c.b16 %v1065, %v1064
        %v1075 = vpack.c.b16 %v1067, %v1066
        %1084 = vmatpush.bf16.msra.mxu0 %v1075
        %1085 = vmatpush.bf16.msra.mxu0 %v1074
        %1086 = vmatpush.bf16.msra.mxu0 %v1073
        %1087 = vmatpush.bf16.msra.mxu0 %v1072
        %1088 = vmatpush.bf16.msra.mxu0 %v1071
        %1089 = vmatpush.bf16.msra.mxu0 %v1070
        %1090 = vmatpush.bf16.msra.mxu0 %v1069
        %1091 = vmatpush.bf16.msra.mxu0 %v1068
        %1092 = vmatmul.bf16.gmra.mxu0 %v1015
        %v1093 = vpop.f32.mrf.mxu0
        %v1094 = vadd.f32 %v1034, %v1093
        %v1095 = vpop.f32.mrf.mxu0
        %v1096 = vadd.f32 %v1034, %v1095
        %1097 = vdwg.mxu0
        %v1098 = vmul.f32 %v1094, 0.17677669
        %v1099 = vmul.f32 %v1096, 0.17677669
        %v1100 = vpack.c.bf16 %v1098, %v1098
        %v1101 = vpack.c.bf16 %v1099, %v1099
        %v1102 = vlaneseq
        %v1103 = vshrl.u32 %v1102, 7
        %v1104 = vadd.s32 %v1103, 8
        %v1105 = vstv %s952
        %v1106 = vadd.s32 %v1105, %v1103
        %v1107 = vadd.s32 %v1105, %v1104
        %v1108 = vlaneseq
        %v1109 = vand.u32 %v1108, 127
        %v1110 = vld [vmem:[%s573] sm:$0xff]
        %v1111 = vld [vmem:[%s573 + $0x8] sm:$0xff]
        %vm1112 = vcmp.le.s32.totalorder %v1109, %v1106
        %vm1113 = vcmp.le.s32.totalorder %v1109, %v1107
        %v1114 = vsel %vm1112, 0.0, -1e+09
        %v1115 = vsel %vm1113, 0.0, -1e+09
        %v1116 = vadd.f32 %v1110, %v1114
        %v1117 = vadd.f32 %v1111, %v1115
        %v1118 = vld [vmem:[#allocation2] sm:$0xf]
        %v1119 = vld [vmem:[#allocation2 + $0x4] sm:$0xf]
        %v1120 = vld [vmem:[#allocation2 + $0x8] sm:$0xf]
        %v1121 = vld [vmem:[#allocation2 + $0xc] sm:$0xf]
        %v1124 = vunpack.c.l.b16 %v1100
        %v1125 = vunpack.c.l.b16 %v1101
        %v1126 = vpack.c.b16 %v1125, %v1124
        %v1131 = vunpack.c.l.b16 %v1118
        %v1132 = vunpack.c.l.b16 %v1119
        %v1133 = vunpack.c.l.b16 %v1120
        %v1134 = vunpack.c.l.b16 %v1121
        %v1135 = vpack.c.b16 %v1132, %v1131
        %v1136 = vpack.c.b16 %v1134, %v1133
        %vm1137 = vcmask 261120
        %v1139 = vsel %vm1137, %v1126, 0
        %v1142 = vsel %vm1137, %v1135, 0
        %v1145 = vsel %vm1137, %v1136, 0
        %1147 = vmatpush.bf16.xpose.msra.mxu0 0
        %1148 = vmatpush.bf16.xpose.msra.mxu0 0
        %1149 = vmatpush.bf16.xpose.msra.mxu0 0
        %1150 = vmatpush.bf16.xpose.msra.mxu0 0
        %1151 = vmatpush.bf16.xpose.msra.mxu0 0
        %1152 = vmatpush.bf16.xpose.msra.mxu0 0
        %1153 = vmatpush.bf16.xpose.msra.mxu0 %v1145
        %1154 = vmatpush.bf16.xpose.msra.mxu0 %v1142
        %1155 = vmatmul.bf16.gmra.mxu0 %v1139
        %v1156 = vpop.f32.mrf.mxu0
        %v1157 = vadd.f32 %v1116, %v1156
        %v1158 = vpop.f32.mrf.mxu0
        %v1159 = vadd.f32 %v1117, %v1158
        %1160 = vdwg.mxu0
        %v1161 = vsel %vm1137, %v1157, -inf
        %1162 = vmax.xlane.f32.xlu0 %v1161
        %v1163 = vpop.xlane.xlu0 %1162
        %v1164 = vsel %vm1137, %v1159, -inf
        %1165 = vmax.xlane.f32.xlu0 %v1164
        %v1166 = vpop.xlane.xlu0 %1165
        %v1167 = vsub.f32 %v1157, %v1163
        %v1168 = vsub.f32 %v1159, %v1166
        %v1169 = vpack.c.bf16 %v1168, %v1167
        %v1170 = vunpack.c.l.bf16 %v1169
        %v1171 = vunpack.c.h.bf16 %v1169
        %v1172 = vmul.f32 %v1170, 1.442695
        %v1173 = vpow.pop %v1172
        %v1174 = vmul.f32 %v1171, 1.442695
        %v1175 = vpow.pop %v1174
        %v1176 = vpack.c.bf16 %v1175, %v1173
        %v1177 = vunpack.c.l.bf16 %v1176
        %v1178 = vunpack.c.h.bf16 %v1176
        %v1179 = vsel %vm1137, %v1177, 0.0
        %1180 = vadd.xlane.f32.xlu0 %v1179
        %v1181 = vpop.xlane.xlu0 %1180
        %v1182 = vsel %vm1137, %v1178, 0.0
        %1183 = vadd.xlane.f32.xlu0 %v1182
        %v1184 = vpop.xlane.xlu0 %1183
        %v1185 = vld [vmem:[#allocation3] sm:$0xf]
        %v1186 = vld [vmem:[#allocation3 + $0x4] sm:$0xf]
        %v1187 = vld [vmem:[#allocation3 + $0x8] sm:$0xf]
        %v1188 = vld [vmem:[#allocation3 + $0xc] sm:$0xf]
        %v1193 = vunpack.c.l.b16 %v1185
        %v1194 = vunpack.c.l.b16 %v1186
        %v1195 = vunpack.c.l.b16 %v1187
        %v1196 = vunpack.c.l.b16 %v1188
        %v1197 = vpack.c.b16 %v1194, %v1193
        %v1198 = vpack.c.b16 %v1196, %v1195
        %v1202 = vsel %vm1137, %v1176, 0
        %1204 = vmatpush.bf16.msra.mxu0 0
        %1205 = vmatpush.bf16.msra.mxu0 0
        %1206 = vmatpush.bf16.msra.mxu0 0
        %1207 = vmatpush.bf16.msra.mxu0 0
        %1208 = vmatpush.bf16.msra.mxu0 0
        %1209 = vmatpush.bf16.msra.mxu0 0
        %1210 = vmatpush.bf16.msra.mxu0 %v1198
        %1211 = vmatpush.bf16.msra.mxu0 %v1197
        %1212 = vmatmul.bf16.gmra.mxu0 %v1202
        %v1213 = vpop.f32.mrf.mxu0
        %v1214 = vadd.f32 0.0, %v1213
        %v1215 = vpop.f32.mrf.mxu0
        %v1216 = vadd.f32 0.0, %v1215
        %1217 = vdwg.mxu0
        %v1218 = vrcp.pop %v1181
        %v1219 = vrcp.pop %v1184
        %v1220 = vmul.f32 %v1214, %v1218
        %v1221 = vmul.f32 %v1216, %v1219
        %v1222 = vpack.c.bf16 %v1220, %v1220
        %v1223 = vpack.c.bf16 %v1221, %v1221
        %vm1224 = vcmask 257024
        %1225 = vst.msk [vmem:[#allocation4] sm:$0xf] %vm1224, %v1222
        %1226 = vst.msk [vmem:[#allocation4 + $0x4] sm:$0xf] %vm1224, %v1223
        %v1227 = vld [vmem:[#allocation2] sm:$0xf]
        %v1228 = vld [vmem:[#allocation2 + $0x4] sm:$0xf]
        %v1229 = vld [vmem:[#allocation2 + $0x8] sm:$0xf]
        %v1230 = vld [vmem:[#allocation2 + $0xc] sm:$0xf]
        %1231 = vrot.lane.b32.xlu0 %v1126, 96
        %v1232 = vpop.permute.xlu0 %1231
        %v1237 = vunpack.c.l.b16 %v1227
        %v1238 = vunpack.c.l.b16 %v1228
        %v1239 = vunpack.c.l.b16 %v1229
        %v1240 = vunpack.c.l.b16 %v1230
        %v1241 = vpack.c.b16 %v1238, %v1237
        %v1242 = vpack.c.b16 %v1240, %v1239
        %1243 = vrot.lane.b32.xlu0 %v1241, 96
        %v1244 = vpop.permute.xlu0 %1243
        %1245 = vrot.lane.b32.xlu0 %v1242, 96
        %v1246 = vpop.permute.xlu0 %1245
        %v1248 = vsel %vm1137, %v1232, 0
        %v1251 = vsel %vm1137, %v1244, 0
        %v1254 = vsel %vm1137, %v1246, 0
        %1256 = vmatpush.bf16.xpose.msra.mxu0 0
        %1257 = vmatpush.bf16.xpose.msra.mxu0 0
        %1258 = vmatpush.bf16.xpose.msra.mxu0 0
        %1259 = vmatpush.bf16.xpose.msra.mxu0 0
        %1260 = vmatpush.bf16.xpose.msra.mxu0 0
        %1261 = vmatpush.bf16.xpose.msra.mxu0 0
        %1262 = vmatpush.bf16.xpose.msra.mxu0 %v1254
        %1263 = vmatpush.bf16.xpose.msra.mxu0 %v1251
        %1264 = vmatmul.bf16.gmra.mxu0 %v1248
        %v1265 = vpop.f32.mrf.mxu0
        %v1266 = vadd.f32 %v1116, %v1265
        %v1267 = vpop.f32.mrf.mxu0
        %v1268 = vadd.f32 %v1117, %v1267
        %1269 = vdwg.mxu0
        %v1270 = vsel %vm1137, %v1266, -inf
        %1271 = vmax.xlane.f32.xlu0 %v1270
        %v1272 = vpop.xlane.xlu0 %1271
        %v1273 = vsel %vm1137, %v1268, -inf
        %1274 = vmax.xlane.f32.xlu0 %v1273
        %v1275 = vpop.xlane.xlu0 %1274
        %v1276 = vsub.f32 %v1266, %v1272
        %v1277 = vsub.f32 %v1268, %v1275
        %v1278 = vpack.c.bf16 %v1277, %v1276
        %v1279 = vunpack.c.l.bf16 %v1278
        %v1280 = vunpack.c.h.bf16 %v1278
        %v1281 = vmul.f32 %v1279, 1.442695
        %v1282 = vpow.pop %v1281
        %v1283 = vmul.f32 %v1280, 1.442695
        %v1284 = vpow.pop %v1283
        %v1285 = vpack.c.bf16 %v1284, %v1282
        %v1286 = vunpack.c.l.bf16 %v1285
        %v1287 = vunpack.c.h.bf16 %v1285
        %v1288 = vsel %vm1137, %v1286, 0.0
        %1289 = vadd.xlane.f32.xlu0 %v1288
        %v1290 = vpop.xlane.xlu0 %1289
        %v1291 = vsel %vm1137, %v1287, 0.0
        %1292 = vadd.xlane.f32.xlu0 %v1291
        %v1293 = vpop.xlane.xlu0 %1292
        %v1294 = vld [vmem:[#allocation3] sm:$0xf]
        %v1295 = vld [vmem:[#allocation3 + $0x4] sm:$0xf]
        %v1296 = vld [vmem:[#allocation3 + $0x8] sm:$0xf]
        %v1297 = vld [vmem:[#allocation3 + $0xc] sm:$0xf]
        %v1302 = vunpack.c.l.b16 %v1294
        %v1303 = vunpack.c.l.b16 %v1295
        %v1304 = vunpack.c.l.b16 %v1296
        %v1305 = vunpack.c.l.b16 %v1297
        %v1306 = vpack.c.b16 %v1303, %v1302
        %v1307 = vpack.c.b16 %v1305, %v1304
        %1308 = vrot.lane.b32.xlu0 %v1306, 96
        %v1309 = vpop.permute.xlu0 %1308
        %1310 = vrot.lane.b32.xlu0 %v1307, 96
        %v1311 = vpop.permute.xlu0 %1310
        %v1315 = vsel %vm1137, %v1285, 0
        %1317 = vmatpush.bf16.msra.mxu0 0
        %1318 = vmatpush.bf16.msra.mxu0 0
        %1319 = vmatpush.bf16.msra.mxu0 0
        %1320 = vmatpush.bf16.msra.mxu0 0
        %1321 = vmatpush.bf16.msra.mxu0 0
        %1322 = vmatpush.bf16.msra.mxu0 0
        %1323 = vmatpush.bf16.msra.mxu0 %v1311
        %1324 = vmatpush.bf16.msra.mxu0 %v1309
        %1325 = vmatmul.bf16.gmra.mxu0 %v1315
        %v1326 = vpop.f32.mrf.mxu0
        %v1327 = vadd.f32 0.0, %v1326
        %v1328 = vpop.f32.mrf.mxu0
        %v1329 = vadd.f32 0.0, %v1328
        %1330 = vdwg.mxu0
        %v1331 = vrcp.pop %v1290
        %v1332 = vrcp.pop %v1293
        %v1333 = vmul.f32 %v1327, %v1331
        %v1334 = vmul.f32 %v1329, %v1332
        %v1335 = vpack.c.bf16 %v1333, %v1333
        %v1336 = vpack.c.bf16 %v1334, %v1334
        %1339 = vrot.lane.b32.xlu0 %v1335, 32
        %v1340 = vpop.permute.xlu0 %1339
        %1341 = vrot.lane.b32.xlu0 %v1336, 32
        %v1342 = vpop.permute.xlu0 %1341
        %vm1345 = vcmask 519424
        %1346 = vst.msk [vmem:[#allocation4] sm:$0xf] %vm1345, %v1340
        %1347 = vst.msk [vmem:[#allocation4 + $0x4] sm:$0xf] %vm1345, %v1342
        %v1348 = vld [vmem:[#allocation2] sm:$0xf]
        %v1349 = vld [vmem:[#allocation2 + $0x4] sm:$0xf]
        %v1350 = vld [vmem:[#allocation2 + $0x8] sm:$0xf]
        %v1351 = vld [vmem:[#allocation2 + $0xc] sm:$0xf]
        %1352 = vrot.lane.b32.xlu0 %v1126, 64
        %v1353 = vpop.permute.xlu0 %1352
        %v1358 = vunpack.c.l.b16 %v1348
        %v1359 = vunpack.c.l.b16 %v1349
        %v1360 = vunpack.c.l.b16 %v1350
        %v1361 = vunpack.c.l.b16 %v1351
        %v1362 = vpack.c.b16 %v1359, %v1358
        %v1363 = vpack.c.b16 %v1361, %v1360
        %1364 = vrot.lane.b32.xlu0 %v1362, 64
        %v1365 = vpop.permute.xlu0 %1364
        %1366 = vrot.lane.b32.xlu0 %v1363, 64
        %v1367 = vpop.permute.xlu0 %1366
        %v1369 = vsel %vm1137, %v1353, 0
        %v1372 = vsel %vm1137, %v1365, 0
        %v1375 = vsel %vm1137, %v1367, 0
        %1377 = vmatpush.bf16.xpose.msra.mxu0 0
        %1378 = vmatpush.bf16.xpose.msra.mxu0 0
        %1379 = vmatpush.bf16.xpose.msra.mxu0 0
        %1380 = vmatpush.bf16.xpose.msra.mxu0 0
        %1381 = vmatpush.bf16.xpose.msra.mxu0 0
        %1382 = vmatpush.bf16.xpose.msra.mxu0 0
        %1383 = vmatpush.bf16.xpose.msra.mxu0 %v1375
        %1384 = vmatpush.bf16.xpose.msra.mxu0 %v1372
        %1385 = vmatmul.bf16.gmra.mxu0 %v1369
        %v1386 = vpop.f32.mrf.mxu0
        %v1387 = vadd.f32 %v1116, %v1386
        %v1388 = vpop.f32.mrf.mxu0
        %v1389 = vadd.f32 %v1117, %v1388
        %1390 = vdwg.mxu0
        %v1391 = vsel %vm1137, %v1387, -inf
        %1392 = vmax.xlane.f32.xlu0 %v1391
        %v1393 = vpop.xlane.xlu0 %1392
        %v1394 = vsel %vm1137, %v1389, -inf
        %1395 = vmax.xlane.f32.xlu0 %v1394
        %v1396 = vpop.xlane.xlu0 %1395
        %v1397 = vsub.f32 %v1387, %v1393
        %v1398 = vsub.f32 %v1389, %v1396
        %v1399 = vpack.c.bf16 %v1398, %v1397
        %v1400 = vunpack.c.l.bf16 %v1399
        %v1401 = vunpack.c.h.bf16 %v1399
        %v1402 = vmul.f32 %v1400, 1.442695
        %v1403 = vpow.pop %v1402
        %v1404 = vmul.f32 %v1401, 1.442695
        %v1405 = vpow.pop %v1404
        %v1406 = vpack.c.bf16 %v1405, %v1403
        %v1407 = vunpack.c.l.bf16 %v1406
        %v1408 = vunpack.c.h.bf16 %v1406
        %v1409 = vsel %vm1137, %v1407, 0.0
        %1410 = vadd.xlane.f32.xlu0 %v1409
        %v1411 = vpop.xlane.xlu0 %1410
        %v1412 = vsel %vm1137, %v1408, 0.0
        %1413 = vadd.xlane.f32.xlu0 %v1412
        %v1414 = vpop.xlane.xlu0 %1413
        %v1415 = vld [vmem:[#allocation3] sm:$0xf]
        %v1416 = vld [vmem:[#allocation3 + $0x4] sm:$0xf]
        %v1417 = vld [vmem:[#allocation3 + $0x8] sm:$0xf]
        %v1418 = vld [vmem:[#allocation3 + $0xc] sm:$0xf]
        %v1423 = vunpack.c.l.b16 %v1415
        %v1424 = vunpack.c.l.b16 %v1416
        %v1425 = vunpack.c.l.b16 %v1417
        %v1426 = vunpack.c.l.b16 %v1418
        %v1427 = vpack.c.b16 %v1424, %v1423
        %v1428 = vpack.c.b16 %v1426, %v1425
        %1429 = vrot.lane.b32.xlu0 %v1427, 64
        %v1430 = vpop.permute.xlu0 %1429
        %1431 = vrot.lane.b32.xlu0 %v1428, 64
        %v1432 = vpop.permute.xlu0 %1431
        %v1436 = vsel %vm1137, %v1406, 0
        %1438 = vmatpush.bf16.msra.mxu0 0
        %1439 = vmatpush.bf16.msra.mxu0 0
        %1440 = vmatpush.bf16.msra.mxu0 0
        %1441 = vmatpush.bf16.msra.mxu0 0
        %1442 = vmatpush.bf16.msra.mxu0 0
        %1443 = vmatpush.bf16.msra.mxu0 0
        %1444 = vmatpush.bf16.msra.mxu0 %v1432
        %1445 = vmatpush.bf16.msra.mxu0 %v1430
        %1446 = vmatmul.bf16.gmra.mxu0 %v1436
        %v1447 = vpop.f32.mrf.mxu0
        %v1448 = vadd.f32 0.0, %v1447
        %v1449 = vpop.f32.mrf.mxu0
        %v1450 = vadd.f32 0.0, %v1449
        %1451 = vdwg.mxu0
        %v1452 = vrcp.pop %v1411
        %v1453 = vrcp.pop %v1414
        %v1454 = vmul.f32 %v1448, %v1452
        %v1455 = vmul.f32 %v1450, %v1453
        %v1456 = vpack.c.bf16 %v1454, %v1454
        %v1457 = vpack.c.bf16 %v1455, %v1455
        %1460 = vrot.lane.b32.xlu0 %v1456, 64
        %v1461 = vpop.permute.xlu0 %1460
        %1462 = vrot.lane.b32.xlu0 %v1457, 64
        %v1463 = vpop.permute.xlu0 %1462
        %vm1466 = vcmask 781824
        %1467 = vst.msk [vmem:[#allocation4] sm:$0xf] %vm1466, %v1461
        %1468 = vst.msk [vmem:[#allocation4 + $0x4] sm:$0xf] %vm1466, %v1463
        %v1469 = vld [vmem:[#allocation2] sm:$0xf]
        %v1470 = vld [vmem:[#allocation2 + $0x4] sm:$0xf]
        %v1471 = vld [vmem:[#allocation2 + $0x8] sm:$0xf]
        %v1472 = vld [vmem:[#allocation2 + $0xc] sm:$0xf]
        %1473 = vrot.lane.b32.xlu0 %v1126, 32
        %v1474 = vpop.permute.xlu0 %1473
        %v1479 = vunpack.c.l.b16 %v1469
        %v1480 = vunpack.c.l.b16 %v1470
        %v1481 = vunpack.c.l.b16 %v1471
        %v1482 = vunpack.c.l.b16 %v1472
        %v1483 = vpack.c.b16 %v1480, %v1479
        %v1484 = vpack.c.b16 %v1482, %v1481
        %1485 = vrot.lane.b32.xlu0 %v1483, 32
        %v1486 = vpop.permute.xlu0 %1485
        %1487 = vrot.lane.b32.xlu0 %v1484, 32
        %v1488 = vpop.permute.xlu0 %1487
        %v1490 = vsel %vm1137, %v1474, 0
        %v1493 = vsel %vm1137, %v1486, 0
        %v1496 = vsel %vm1137, %v1488, 0
        %1498 = vmatpush.bf16.xpose.msra.mxu0 0
        %1499 = vmatpush.bf16.xpose.msra.mxu0 0
        %1500 = vmatpush.bf16.xpose.msra.mxu0 0
        %1501 = vmatpush.bf16.xpose.msra.mxu0 0
        %1502 = vmatpush.bf16.xpose.msra.mxu0 0
        %1503 = vmatpush.bf16.xpose.msra.mxu0 0
        %1504 = vmatpush.bf16.xpose.msra.mxu0 %v1496
        %1505 = vmatpush.bf16.xpose.msra.mxu0 %v1493
        %1506 = vmatmul.bf16.gmra.mxu0 %v1490
        %v1507 = vpop.f32.mrf.mxu0
        %v1508 = vadd.f32 %v1116, %v1507
        %v1509 = vpop.f32.mrf.mxu0
        %v1510 = vadd.f32 %v1117, %v1509
        %1511 = vdwg.mxu0
        %v1512 = vsel %vm1137, %v1508, -inf
        %1513 = vmax.xlane.f32.xlu0 %v1512
        %v1514 = vpop.xlane.xlu0 %1513
        %v1515 = vsel %vm1137, %v1510, -inf
        %1516 = vmax.xlane.f32.xlu0 %v1515
        %v1517 = vpop.xlane.xlu0 %1516
        %v1518 = vsub.f32 %v1508, %v1514
        %v1519 = vsub.f32 %v1510, %v1517
        %v1520 = vpack.c.bf16 %v1519, %v1518
        %v1521 = vunpack.c.l.bf16 %v1520
        %v1522 = vunpack.c.h.bf16 %v1520
        %v1523 = vmul.f32 %v1521, 1.442695
        %v1524 = vpow.pop %v1523
        %v1525 = vmul.f32 %v1522, 1.442695
        %v1526 = vpow.pop %v1525
        %v1527 = vpack.c.bf16 %v1526, %v1524
        %v1528 = vunpack.c.l.bf16 %v1527
        %v1529 = vunpack.c.h.bf16 %v1527
        %v1530 = vsel %vm1137, %v1528, 0.0
        %1531 = vadd.xlane.f32.xlu0 %v1530
        %v1532 = vpop.xlane.xlu0 %1531
        %v1533 = vsel %vm1137, %v1529, 0.0
        %1534 = vadd.xlane.f32.xlu0 %v1533
        %v1535 = vpop.xlane.xlu0 %1534
        %v1536 = vld [vmem:[#allocation3] sm:$0xf]
        %v1537 = vld [vmem:[#allocation3 + $0x4] sm:$0xf]
        %v1538 = vld [vmem:[#allocation3 + $0x8] sm:$0xf]
        %v1539 = vld [vmem:[#allocation3 + $0xc] sm:$0xf]
        %v1544 = vunpack.c.l.b16 %v1536
        %v1545 = vunpack.c.l.b16 %v1537
        %v1546 = vunpack.c.l.b16 %v1538
        %v1547 = vunpack.c.l.b16 %v1539
        %v1548 = vpack.c.b16 %v1545, %v1544
        %v1549 = vpack.c.b16 %v1547, %v1546
        %1550 = vrot.lane.b32.xlu0 %v1548, 32
        %v1551 = vpop.permute.xlu0 %1550
        %1552 = vrot.lane.b32.xlu0 %v1549, 32
        %v1553 = vpop.permute.xlu0 %1552
        %v1557 = vsel %vm1137, %v1527, 0
        %1559 = vmatpush.bf16.msra.mxu0 0
        %1560 = vmatpush.bf16.msra.mxu0 0
        %1561 = vmatpush.bf16.msra.mxu0 0
        %1562 = vmatpush.bf16.msra.mxu0 0
        %1563 = vmatpush.bf16.msra.mxu0 0
        %1564 = vmatpush.bf16.msra.mxu0 0
        %1565 = vmatpush.bf16.msra.mxu0 %v1553
        %1566 = vmatpush.bf16.msra.mxu0 %v1551
        %1567 = vmatmul.bf16.gmra.mxu0 %v1557
        %v1568 = vpop.f32.mrf.mxu0
        %v1569 = vadd.f32 0.0, %v1568
        %v1570 = vpop.f32.mrf.mxu0
        %v1571 = vadd.f32 0.0, %v1570
        %1572 = vdwg.mxu0
        %v1573 = vrcp.pop %v1532
        %v1574 = vrcp.pop %v1535
        %v1575 = vmul.f32 %v1569, %v1573
        %v1576 = vmul.f32 %v1571, %v1574
        %v1577 = vpack.c.bf16 %v1575, %v1575
        %v1578 = vpack.c.bf16 %v1576, %v1576
        %1581 = vrot.lane.b32.xlu0 %v1577, 96
        %v1582 = vpop.permute.xlu0 %1581
        %1583 = vrot.lane.b32.xlu0 %v1578, 96
        %v1584 = vpop.permute.xlu0 %1583
        %vm1587 = vcmask 1044224
        %1588 = vst.msk [vmem:[#allocation4] sm:$0xf] %vm1587, %v1582
        %1589 = vst.msk [vmem:[#allocation4 + $0x4] sm:$0xf] %vm1587, %v1584
        %v1590 = vld [vmem:[#allocation4] sm:$0xf]
        %v1591 = vld [vmem:[#allocation4 + $0x4] sm:$0xf]
        %v1592 = vld [vmem:[#allocation13] sm:$0xf]
        %v1593 = vld [vmem:[#allocation13 + $0x4] sm:$0xf]
        %v1594 = vld [vmem:[#allocation13 + $0x8] sm:$0xf]
        %v1595 = vld [vmem:[#allocation13 + $0xc] sm:$0xf]
        %v1596 = vld [vmem:[#allocation13 + $0x10] sm:$0xf]
        %v1597 = vld [vmem:[#allocation13 + $0x14] sm:$0xf]
        %v1598 = vld [vmem:[#allocation13 + $0x18] sm:$0xf]
        %v1599 = vld [vmem:[#allocation13 + $0x1c] sm:$0xf]
        %v1600 = vld [vmem:[#allocation13 + $0x20] sm:$0xf]
        %v1601 = vld [vmem:[#allocation13 + $0x24] sm:$0xf]
        %v1602 = vld [vmem:[#allocation13 + $0x28] sm:$0xf]
        %v1603 = vld [vmem:[#allocation13 + $0x2c] sm:$0xf]
        %v1604 = vld [vmem:[#allocation13 + $0x30] sm:$0xf]
        %v1605 = vld [vmem:[#allocation13 + $0x34] sm:$0xf]
        %v1606 = vld [vmem:[#allocation13 + $0x38] sm:$0xf]
        %v1607 = vld [vmem:[#allocation13 + $0x3c] sm:$0xf]
        %v1608 = vld [vmem:[%s8] sm:$0x1]
        %v1610 = vperm.slane %v1608, 0
        %v1614 = vunpack.c.l.b16 %v1590
        %v1615 = vunpack.c.l.b16 %v1591
        %v1616 = vpack.c.b16 %v1615, %v1614
        %v1634 = vunpack.c.l.b16 %v1592
        %v1635 = vunpack.c.l.b16 %v1593
        %v1636 = vunpack.c.l.b16 %v1594
        %v1637 = vunpack.c.l.b16 %v1595
        %v1638 = vunpack.c.l.b16 %v1596
        %v1639 = vunpack.c.l.b16 %v1597
        %v1640 = vunpack.c.l.b16 %v1598
        %v1641 = vunpack.c.l.b16 %v1599
        %v1642 = vunpack.c.l.b16 %v1600
        %v1643 = vunpack.c.l.b16 %v1601
        %v1644 = vunpack.c.l.b16 %v1602
        %v1645 = vunpack.c.l.b16 %v1603
        %v1646 = vunpack.c.l.b16 %v1604
        %v1647 = vunpack.c.l.b16 %v1605
        %v1648 = vunpack.c.l.b16 %v1606
        %v1649 = vunpack.c.l.b16 %v1607
        %v1650 = vpack.c.b16 %v1635, %v1634
        %v1651 = vpack.c.b16 %v1637, %v1636
        %v1652 = vpack.c.b16 %v1639, %v1638
        %v1653 = vpack.c.b16 %v1641, %v1640
        %v1654 = vpack.c.b16 %v1643, %v1642
        %v1655 = vpack.c.b16 %v1645, %v1644
        %v1656 = vpack.c.b16 %v1647, %v1646
        %v1657 = vpack.c.b16 %v1649, %v1648
        %1666 = vmatpush.bf16.msra.mxu0 %v1657
        %1667 = vmatpush.bf16.msra.mxu0 %v1656
        %1668 = vmatpush.bf16.msra.mxu0 %v1655
        %1669 = vmatpush.bf16.msra.mxu0 %v1654
        %1670 = vmatpush.bf16.msra.mxu0 %v1653
        %1671 = vmatpush.bf16.msra.mxu0 %v1652
        %1672 = vmatpush.bf16.msra.mxu0 %v1651
        %1673 = vmatpush.bf16.msra.mxu0 %v1650
        %1674 = vmatmul.bf16.gmra.mxu0 %v1616
        %v1675 = vpop.f32.mrf.mxu0
        %v1676 = vadd.f32 %v1610, %v1675
        %v1677 = vpop.f32.mrf.mxu0
        %v1678 = vadd.f32 %v1610, %v1677
        %1679 = vdwg.mxu0
        %v1680 = vadd.f32 %v954, %v1676
        %v1681 = vadd.f32 %v955, %v1678
        %v1682 = vld [vmem:[%s9] sm:$0x1]
        %v1683 = vld [vmem:[%s10] sm:$0x1]
        %1684 = vadd.xlane.f32.xlu0 %v1680
        %v1685 = vpop.xlane.xlu0 %1684
        %1686 = vadd.xlane.f32.xlu0 %v1681
        %v1687 = vpop.xlane.xlu0 %1686
        %v1688 = vmul.f32 %v1685, %v968
        %v1689 = vmul.f32 %v1687, %v968
        %v1690 = vsub.f32 %v1680, %v1688
        %v1691 = vsub.f32 %v1681, %v1689
        %v1692 = vmul.f32 %v1690, %v1690
        %v1693 = vmul.f32 %v1691, %v1691
        %1694 = vadd.xlane.f32.xlu0 %v1692
        %v1695 = vpop.xlane.xlu0 %1694
        %1696 = vadd.xlane.f32.xlu0 %v1693
        %v1697 = vpop.xlane.xlu0 %1696
        %v1698 = vmul.f32 %v1695, %v968
        %v1699 = vmul.f32 %v1697, %v968
        %v1700 = vadd.f32 %v1698, 1e-05
        %v1701 = vadd.f32 %v1699, 1e-05
        %v1702 = vrsqrt.pop %v1700
        %v1703 = vmul.f32 %v1702, %v1700
        %v1704 = vmul.f32 %v1703, %v1702
        %v1705 = vmul.f32 0.5, %v1704
        %v1706 = vsub.f32 1.5, %v1705
        %v1707 = vmul.f32 %v1702, %v1706
        %vm1708 = vweird.f32 %v1700
        %vm1709 = vweird.f32 %v1702
        %vm1710 = vmor %vm1708, %vm1709
        %v1711 = vsel %vm1710, %v1702, %v1707
        %v1712 = vrsqrt.pop %v1701
        %v1713 = vmul.f32 %v1712, %v1701
        %v1714 = vmul.f32 %v1713, %v1712
        %v1715 = vmul.f32 0.5, %v1714
        %v1716 = vsub.f32 1.5, %v1715
        %v1717 = vmul.f32 %v1712, %v1716
        %vm1718 = vweird.f32 %v1701
        %vm1719 = vweird.f32 %v1712
        %vm1720 = vmor %vm1718, %vm1719
        %v1721 = vsel %vm1720, %v1712, %v1717
        %v1722 = vmul.f32 %v1690, %v1711
        %v1723 = vmul.f32 %v1691, %v1721
        %v1725 = vperm.slane %v1682, 0
        %v1727 = vmul.f32 %v1722, %v1725
        %v1728 = vmul.f32 %v1723, %v1725
        %v1730 = vperm.slane %v1683, 0
        %v1732 = vadd.f32 %v1727, %v1730
        %v1733 = vadd.f32 %v1728, %v1730
        %v1734 = vpack.c.bf16 %v1733, %v1732
        %v1735 = vld [vmem:[#allocation14] sm:$0xff]
        %v1736 = vld [vmem:[#allocation14 + $0x8] sm:$0xff]
        %v1737 = vld [vmem:[#allocation14 + $0x10] sm:$0xff]
        %v1738 = vld [vmem:[#allocation14 + $0x18] sm:$0xff]
        %v1739 = vld [vmem:[#allocation14 + $0x20] sm:$0xff]
        %v1740 = vld [vmem:[#allocation14 + $0x28] sm:$0xff]
        %v1741 = vld [vmem:[#allocation14 + $0x30] sm:$0xff]
        %v1742 = vld [vmem:[#allocation14 + $0x38] sm:$0xff]
        %v1743 = vld [vmem:[#allocation14 + $0x40] sm:$0xff]
        %v1744 = vld [vmem:[#allocation14 + $0x48] sm:$0xff]
        %v1745 = vld [vmem:[#allocation14 + $0x50] sm:$0xff]
        %v1746 = vld [vmem:[#allocation14 + $0x58] sm:$0xff]
        %v1747 = vld [vmem:[#allocation14 + $0x60] sm:$0xff]
        %v1748 = vld [vmem:[#allocation14 + $0x68] sm:$0xff]
        %v1749 = vld [vmem:[#allocation14 + $0x70] sm:$0xff]
        %v1750 = vld [vmem:[#allocation14 + $0x78] sm:$0xff]
        %v1751 = vld [vmem:[#allocation14 + $0x80] sm:$0xff]
        %v1752 = vld [vmem:[#allocation14 + $0x88] sm:$0xff]
        %v1753 = vld [vmem:[#allocation14 + $0x90] sm:$0xff]
        %v1754 = vld [vmem:[#allocation14 + $0x98] sm:$0xff]
        %v1755 = vld [vmem:[#allocation14 + $0xa0] sm:$0xff]
        %v1756 = vld [vmem:[#allocation14 + $0xa8] sm:$0xff]
        %v1757 = vld [vmem:[#allocation14 + $0xb0] sm:$0xff]
        %v1758 = vld [vmem:[#allocation14 + $0xb8] sm:$0xff]
        %v1759 = vld [vmem:[#allocation14 + $0xc0] sm:$0xff]
        %v1760 = vld [vmem:[#allocation14 + $0xc8] sm:$0xff]
        %v1761 = vld [vmem:[#allocation14 + $0xd0] sm:$0xff]
        %v1762 = vld [vmem:[#allocation14 + $0xd8] sm:$0xff]
        %v1763 = vld [vmem:[#allocation14 + $0xe0] sm:$0xff]
        %v1764 = vld [vmem:[#allocation14 + $0xe8] sm:$0xff]
        %v1765 = vld [vmem:[#allocation14 + $0xf0] sm:$0xff]
        %v1766 = vld [vmem:[#allocation14 + $0xf8] sm:$0xff]
        %v1767 = vld [vmem:[%s12] sm:$0xf]
        %v1769 = vperm.slane %v1767, 0
        %v1770 = vperm.slane %v1767, 1
        %v1771 = vperm.slane %v1767, 2
        %v1772 = vperm.slane %v1767, 3
        %v1809 = vunpack.c.l.b16 %v1735
        %v1810 = vunpack.c.h.b16 %v1735
        %v1811 = vunpack.c.l.b16 %v1736
        %v1812 = vunpack.c.h.b16 %v1736
        %v1813 = vunpack.c.l.b16 %v1737
        %v1814 = vunpack.c.h.b16 %v1737
        %v1815 = vunpack.c.l.b16 %v1738
        %v1816 = vunpack.c.h.b16 %v1738
        %v1817 = vunpack.c.l.b16 %v1739
        %v1818 = vunpack.c.h.b16 %v1739
        %v1819 = vunpack.c.l.b16 %v1740
        %v1820 = vunpack.c.h.b16 %v1740
        %v1821 = vunpack.c.l.b16 %v1741
        %v1822 = vunpack.c.h.b16 %v1741
        %v1823 = vunpack.c.l.b16 %v1742
        %v1824 = vunpack.c.h.b16 %v1742
        %v1825 = vunpack.c.l.b16 %v1743
        %v1826 = vunpack.c.h.b16 %v1743
        %v1827 = vunpack.c.l.b16 %v1744
        %v1828 = vunpack.c.h.b16 %v1744
        %v1829 = vunpack.c.l.b16 %v1745
        %v1830 = vunpack.c.h.b16 %v1745
        %v1831 = vunpack.c.l.b16 %v1746
        %v1832 = vunpack.c.h.b16 %v1746
        %v1833 = vunpack.c.l.b16 %v1747
        %v1834 = vunpack.c.h.b16 %v1747
        %v1835 = vunpack.c.l.b16 %v1748
        %v1836 = vunpack.c.h.b16 %v1748
        %v1837 = vunpack.c.l.b16 %v1749
        %v1838 = vunpack.c.h.b16 %v1749
        %v1839 = vunpack.c.l.b16 %v1750
        %v1840 = vunpack.c.h.b16 %v1750
        %v1841 = vunpack.c.l.b16 %v1751
        %v1842 = vunpack.c.h.b16 %v1751
        %v1843 = vunpack.c.l.b16 %v1752
        %v1844 = vunpack.c.h.b16 %v1752
        %v1845 = vunpack.c.l.b16 %v1753
        %v1846 = vunpack.c.h.b16 %v1753
        %v1847 = vunpack.c.l.b16 %v1754
        %v1848 = vunpack.c.h.b16 %v1754
        %v1849 = vunpack.c.l.b16 %v1755
        %v1850 = vunpack.c.h.b16 %v1755
        %v1851 = vunpack.c.l.b16 %v1756
        %v1852 = vunpack.c.h.b16 %v1756
        %v1853 = vunpack.c.l.b16 %v1757
        %v1854 = vunpack.c.h.b16 %v1757
        %v1855 = vunpack.c.l.b16 %v1758
        %v1856 = vunpack.c.h.b16 %v1758
        %v1857 = vunpack.c.l.b16 %v1759
        %v1858 = vunpack.c.h.b16 %v1759
        %v1859 = vunpack.c.l.b16 %v1760
        %v1860 = vunpack.c.h.b16 %v1760
        %v1861 = vunpack.c.l.b16 %v1761
        %v1862 = vunpack.c.h.b16 %v1761
        %v1863 = vunpack.c.l.b16 %v1762
        %v1864 = vunpack.c.h.b16 %v1762
        %v1865 = vunpack.c.l.b16 %v1763
        %v1866 = vunpack.c.h.b16 %v1763
        %v1867 = vunpack.c.l.b16 %v1764
        %v1868 = vunpack.c.h.b16 %v1764
        %v1869 = vunpack.c.l.b16 %v1765
        %v1870 = vunpack.c.h.b16 %v1765
        %v1871 = vunpack.c.l.b16 %v1766
        %v1872 = vunpack.c.h.b16 %v1766
        %v1873 = vpack.c.b16 %v1813, %v1809
        %v1874 = vpack.c.b16 %v1814, %v1810
        %v1875 = vpack.c.b16 %v1815, %v1811
        %v1876 = vpack.c.b16 %v1816, %v1812
        %v1877 = vpack.c.b16 %v1821, %v1817
        %v1878 = vpack.c.b16 %v1822, %v1818
        %v1879 = vpack.c.b16 %v1823, %v1819
        %v1880 = vpack.c.b16 %v1824, %v1820
        %v1881 = vpack.c.b16 %v1829, %v1825
        %v1882 = vpack.c.b16 %v1830, %v1826
        %v1883 = vpack.c.b16 %v1831, %v1827
        %v1884 = vpack.c.b16 %v1832, %v1828
        %v1885 = vpack.c.b16 %v1837, %v1833
        %v1886 = vpack.c.b16 %v1838, %v1834
        %v1887 = vpack.c.b16 %v1839, %v1835
        %v1888 = vpack.c.b16 %v1840, %v1836
        %v1889 = vpack.c.b16 %v1845, %v1841
        %v1890 = vpack.c.b16 %v1846, %v1842
        %v1891 = vpack.c.b16 %v1847, %v1843
        %v1892 = vpack.c.b16 %v1848, %v1844
        %v1893 = vpack.c.b16 %v1853, %v1849
        %v1894 = vpack.c.b16 %v1854, %v1850
        %v1895 = vpack.c.b16 %v1855, %v1851
        %v1896 = vpack.c.b16 %v1856, %v1852
        %v1897 = vpack.c.b16 %v1861, %v1857
        %v1898 = vpack.c.b16 %v1862, %v1858
        %v1899 = vpack.c.b16 %v1863, %v1859
        %v1900 = vpack.c.b16 %v1864, %v1860
        %v1901 = vpack.c.b16 %v1869, %v1865
        %v1902 = vpack.c.b16 %v1870, %v1866
        %v1903 = vpack.c.b16 %v1871, %v1867
        %v1904 = vpack.c.b16 %v1872, %v1868
        %1937 = vmatpush.bf16.msra.mxu0 %v1901
        %1938 = vmatpush.bf16.msra.mxu0 %v1897
        %1939 = vmatpush.bf16.msra.mxu0 %v1893
        %1940 = vmatpush.bf16.msra.mxu0 %v1889
        %1941 = vmatpush.bf16.msra.mxu0 %v1885
        %1942 = vmatpush.bf16.msra.mxu0 %v1881
        %1943 = vmatpush.bf16.msra.mxu0 %v1877
        %1944 = vmatpush.bf16.msra.mxu0 %v1873
        %1945 = vmatmul.bf16.gmra.mxu0 %v1734
        %v1946 = vpop.f32.mrf.mxu0
        %v1947 = vadd.f32 %v1769, %v1946
        %v1948 = vpop.f32.mrf.mxu0
        %v1949 = vadd.f32 %v1769, %v1948
        %1950 = vdwg.mxu0
        %1951 = vmatpush.bf16.msra.mxu0 %v1902
        %1952 = vmatpush.bf16.msra.mxu0 %v1898
        %1953 = vmatpush.bf16.msra.mxu0 %v1894
        %1954 = vmatpush.bf16.msra.mxu0 %v1890
        %1955 = vmatpush.bf16.msra.mxu0 %v1886
        %1956 = vmatpush.bf16.msra.mxu0 %v1882
        %1957 = vmatpush.bf16.msra.mxu0 %v1878
        %1958 = vmatpush.bf16.msra.mxu0 %v1874
        %1959 = vmatmul.bf16.gmra.mxu0 %v1734
        %v1960 = vpop.f32.mrf.mxu0
        %v1961 = vadd.f32 %v1770, %v1960
        %v1962 = vpop.f32.mrf.mxu0
        %v1963 = vadd.f32 %v1770, %v1962
        %1964 = vdwg.mxu0
        %1965 = vmatpush.bf16.msra.mxu0 %v1903
        %1966 = vmatpush.bf16.msra.mxu0 %v1899
        %1967 = vmatpush.bf16.msra.mxu0 %v1895
        %1968 = vmatpush.bf16.msra.mxu0 %v1891
        %1969 = vmatpush.bf16.msra.mxu0 %v1887
        %1970 = vmatpush.bf16.msra.mxu0 %v1883
        %1971 = vmatpush.bf16.msra.mxu0 %v1879
        %1972 = vmatpush.bf16.msra.mxu0 %v1875
        %1973 = vmatmul.bf16.gmra.mxu0 %v1734
        %v1974 = vpop.f32.mrf.mxu0
        %v1975 = vadd.f32 %v1771, %v1974
        %v1976 = vpop.f32.mrf.mxu0
        %v1977 = vadd.f32 %v1771, %v1976
        %1978 = vdwg.mxu0
        %1979 = vmatpush.bf16.msra.mxu0 %v1904
        %1980 = vmatpush.bf16.msra.mxu0 %v1900
        %1981 = vmatpush.bf16.msra.mxu0 %v1896
        %1982 = vmatpush.bf16.msra.mxu0 %v1892
        %1983 = vmatpush.bf16.msra.mxu0 %v1888
        %1984 = vmatpush.bf16.msra.mxu0 %v1884
        %1985 = vmatpush.bf16.msra.mxu0 %v1880
        %1986 = vmatpush.bf16.msra.mxu0 %v1876
        %1987 = vmatmul.bf16.gmra.mxu0 %v1734
        %v1988 = vpop.f32.mrf.mxu0
        %v1989 = vadd.f32 %v1772, %v1988
        %v1990 = vpop.f32.mrf.mxu0
        %v1991 = vadd.f32 %v1772, %v1990
        %1992 = vdwg.mxu0
        %v1993 = vmul.f32 %v1947, 0.5
        %v1994 = vmul.f32 %v1961, 0.5
        %v1995 = vmul.f32 %v1975, 0.5
        %v1996 = vmul.f32 %v1989, 0.5
        %v1997 = vmul.f32 %v1949, 0.5
        %v1998 = vmul.f32 %v1963, 0.5
        %v1999 = vmul.f32 %v1977, 0.5
        %v2000 = vmul.f32 %v1991, 0.5
        %v2001 = vmul.f32 %v1947, 0.044715
        %v2002 = vmul.f32 %v1961, 0.044715
        %v2003 = vmul.f32 %v1975, 0.044715
        %v2004 = vmul.f32 %v1989, 0.044715
        %v2005 = vmul.f32 %v1949, 0.044715
        %v2006 = vmul.f32 %v1963, 0.044715
        %v2007 = vmul.f32 %v1977, 0.044715
        %v2008 = vmul.f32 %v1991, 0.044715
        %v2009 = vmul.f32 %v2001, %v1947
        %v2010 = vmul.f32 %v2002, %v1961
        %v2011 = vmul.f32 %v2003, %v1975
        %v2012 = vmul.f32 %v2004, %v1989
        %v2013 = vmul.f32 %v2005, %v1949
        %v2014 = vmul.f32 %v2006, %v1963
        %v2015 = vmul.f32 %v2007, %v1977
        %v2016 = vmul.f32 %v2008, %v1991
        %v2017 = vmul.f32 %v2009, %v1947
        %v2018 = vmul.f32 %v2010, %v1961
        %v2019 = vmul.f32 %v2011, %v1975
        %v2020 = vmul.f32 %v2012, %v1989
        %v2021 = vmul.f32 %v2013, %v1949
        %v2022 = vmul.f32 %v2014, %v1963
        %v2023 = vmul.f32 %v2015, %v1977
        %v2024 = vmul.f32 %v2016, %v1991
        %v2025 = vadd.f32 %v1947, %v2017
        %v2026 = vadd.f32 %v1961, %v2018
        %v2027 = vadd.f32 %v1975, %v2019
        %v2028 = vadd.f32 %v1989, %v2020
        %v2029 = vadd.f32 %v1949, %v2021
        %v2030 = vadd.f32 %v1963, %v2022
        %v2031 = vadd.f32 %v1977, %v2023
        %v2032 = vadd.f32 %v1991, %v2024
        %v2033 = vmul.f32 %v2025, 0.7978846
        %v2034 = vmul.f32 %v2026, 0.7978846
        %v2035 = vmul.f32 %v2027, 0.7978846
        %v2036 = vmul.f32 %v2028, 0.7978846
        %v2037 = vmul.f32 %v2029, 0.7978846
        %v2038 = vmul.f32 %v2030, 0.7978846
        %v2039 = vmul.f32 %v2031, 0.7978846
        %v2040 = vmul.f32 %v2032, 0.7978846
        %v2041 = vtanh.pop %v2033
        %v2042 = vtanh.pop %v2034
        %v2043 = vtanh.pop %v2035
        %v2044 = vtanh.pop %v2036
        %v2045 = vtanh.pop %v2037
        %v2046 = vtanh.pop %v2038
        %v2047 = vtanh.pop %v2039
        %v2048 = vtanh.pop %v2040
        %v2049 = vadd.f32 %v2041, 1.0
        %v2050 = vadd.f32 %v2042, 1.0
        %v2051 = vadd.f32 %v2043, 1.0
        %v2052 = vadd.f32 %v2044, 1.0
        %v2053 = vadd.f32 %v2045, 1.0
        %v2054 = vadd.f32 %v2046, 1.0
        %v2055 = vadd.f32 %v2047, 1.0
        %v2056 = vadd.f32 %v2048, 1.0
        %v2057 = vmul.f32 %v1993, %v2049
        %v2058 = vmul.f32 %v1994, %v2050
        %v2059 = vmul.f32 %v1995, %v2051
        %v2060 = vmul.f32 %v1996, %v2052
        %v2061 = vmul.f32 %v1997, %v2053
        %v2062 = vmul.f32 %v1998, %v2054
        %v2063 = vmul.f32 %v1999, %v2055
        %v2064 = vmul.f32 %v2000, %v2056
        %v2065 = vpack.c.bf16 %v2061, %v2057
        %v2066 = vpack.c.bf16 %v2062, %v2058
        %v2067 = vpack.c.bf16 %v2063, %v2059
        %v2068 = vpack.c.bf16 %v2064, %v2060
        %v2069 = vld [vmem:[#allocation16] sm:$0xf]
        %v2070 = vld [vmem:[#allocation16 + $0x4] sm:$0xf]
        %v2071 = vld [vmem:[#allocation16 + $0x8] sm:$0xf]
        %v2072 = vld [vmem:[#allocation16 + $0xc] sm:$0xf]
        %v2073 = vld [vmem:[#allocation16 + $0x10] sm:$0xf]
        %v2074 = vld [vmem:[#allocation16 + $0x14] sm:$0xf]
        %v2075 = vld [vmem:[#allocation16 + $0x18] sm:$0xf]
        %v2076 = vld [vmem:[#allocation16 + $0x1c] sm:$0xf]
        %v2077 = vld [vmem:[#allocation16 + $0x20] sm:$0xf]
        %v2078 = vld [vmem:[#allocation16 + $0x24] sm:$0xf]
        %v2079 = vld [vmem:[#allocation16 + $0x28] sm:$0xf]
        %v2080 = vld [vmem:[#allocation16 + $0x2c] sm:$0xf]
        %v2081 = vld [vmem:[#allocation16 + $0x30] sm:$0xf]
        %v2082 = vld [vmem:[#allocation16 + $0x34] sm:$0xf]
        %v2083 = vld [vmem:[#allocation16 + $0x38] sm:$0xf]
        %v2084 = vld [vmem:[#allocation16 + $0x3c] sm:$0xf]
        %v2085 = vld [vmem:[#allocation16 + $0x40] sm:$0xf]
        %v2086 = vld [vmem:[#allocation16 + $0x44] sm:$0xf]
        %v2087 = vld [vmem:[#allocation16 + $0x48] sm:$0xf]
        %v2088 = vld [vmem:[#allocation16 + $0x4c] sm:$0xf]
        %v2089 = vld [vmem:[#allocation16 + $0x50] sm:$0xf]
        %v2090 = vld [vmem:[#allocation16 + $0x54] sm:$0xf]
        %v2091 = vld [vmem:[#allocation16 + $0x58] sm:$0xf]
        %v2092 = vld [vmem:[#allocation16 + $0x5c] sm:$0xf]
        %v2093 = vld [vmem:[#allocation16 + $0x60] sm:$0xf]
        %v2094 = vld [vmem:[#allocation16 + $0x64] sm:$0xf]
        %v2095 = vld [vmem:[#allocation16 + $0x68] sm:$0xf]
        %v2096 = vld [vmem:[#allocation16 + $0x6c] sm:$0xf]
        %v2097 = vld [vmem:[#allocation16 + $0x70] sm:$0xf]
        %v2098 = vld [vmem:[#allocation16 + $0x74] sm:$0xf]
        %v2099 = vld [vmem:[#allocation16 + $0x78] sm:$0xf]
        %v2100 = vld [vmem:[#allocation16 + $0x7c] sm:$0xf]
        %v2101 = vld [vmem:[#allocation16 + $0x80] sm:$0xf]
        %v2102 = vld [vmem:[#allocation16 + $0x84] sm:$0xf]
        %v2103 = vld [vmem:[#allocation16 + $0x88] sm:$0xf]
        %v2104 = vld [vmem:[#allocation16 + $0x8c] sm:$0xf]
        %v2105 = vld [vmem:[#allocation16 + $0x90] sm:$0xf]
        %v2106 = vld [vmem:[#allocation16 + $0x94] sm:$0xf]
        %v2107 = vld [vmem:[#allocation16 + $0x98] sm:$0xf]
        %v2108 = vld [vmem:[#allocation16 + $0x9c] sm:$0xf]
        %v2109 = vld [vmem:[#allocation16 + $0xa0] sm:$0xf]
        %v2110 = vld [vmem:[#allocation16 + $0xa4] sm:$0xf]
        %v2111 = vld [vmem:[#allocation16 + $0xa8] sm:$0xf]
        %v2112 = vld [vmem:[#allocation16 + $0xac] sm:$0xf]
        %v2113 = vld [vmem:[#allocation16 + $0xb0] sm:$0xf]
        %v2114 = vld [vmem:[#allocation16 + $0xb4] sm:$0xf]
        %v2115 = vld [vmem:[#allocation16 + $0xb8] sm:$0xf]
        %v2116 = vld [vmem:[#allocation16 + $0xbc] sm:$0xf]
        %v2117 = vld [vmem:[#allocation16 + $0xc0] sm:$0xf]
        %v2118 = vld [vmem:[#allocation16 + $0xc4] sm:$0xf]
        %v2119 = vld [vmem:[#allocation16 + $0xc8] sm:$0xf]
        %v2120 = vld [vmem:[#allocation16 + $0xcc] sm:$0xf]
        %v2121 = vld [vmem:[#allocation16 + $0xd0] sm:$0xf]
        %v2122 = vld [vmem:[#allocation16 + $0xd4] sm:$0xf]
        %v2123 = vld [vmem:[#allocation16 + $0xd8] sm:$0xf]
        %v2124 = vld [vmem:[#allocation16 + $0xdc] sm:$0xf]
        %v2125 = vld [vmem:[#allocation16 + $0xe0] sm:$0xf]
        %v2126 = vld [vmem:[#allocation16 + $0xe4] sm:$0xf]
        %v2127 = vld [vmem:[#allocation16 + $0xe8] sm:$0xf]
        %v2128 = vld [vmem:[#allocation16 + $0xec] sm:$0xf]
        %v2129 = vld [vmem:[#allocation16 + $0xf0] sm:$0xf]
        %v2130 = vld [vmem:[#allocation16 + $0xf4] sm:$0xf]
        %v2131 = vld [vmem:[#allocation16 + $0xf8] sm:$0xf]
        %v2132 = vld [vmem:[#allocation16 + $0xfc] sm:$0xf]
        %v2133 = vld [vmem:[%s14] sm:$0x1]
        %v2135 = vperm.slane %v2133, 0
        %v2201 = vunpack.c.l.b16 %v2069
        %v2202 = vunpack.c.l.b16 %v2070
        %v2203 = vunpack.c.l.b16 %v2071
        %v2204 = vunpack.c.l.b16 %v2072
        %v2205 = vunpack.c.l.b16 %v2073
        %v2206 = vunpack.c.l.b16 %v2074
        %v2207 = vunpack.c.l.b16 %v2075
        %v2208 = vunpack.c.l.b16 %v2076
        %v2209 = vunpack.c.l.b16 %v2077
        %v2210 = vunpack.c.l.b16 %v2078
        %v2211 = vunpack.c.l.b16 %v2079
        %v2212 = vunpack.c.l.b16 %v2080
        %v2213 = vunpack.c.l.b16 %v2081
        %v2214 = vunpack.c.l.b16 %v2082
        %v2215 = vunpack.c.l.b16 %v2083
        %v2216 = vunpack.c.l.b16 %v2084
        %v2217 = vunpack.c.l.b16 %v2085
        %v2218 = vunpack.c.l.b16 %v2086
        %v2219 = vunpack.c.l.b16 %v2087
        %v2220 = vunpack.c.l.b16 %v2088
        %v2221 = vunpack.c.l.b16 %v2089
        %v2222 = vunpack.c.l.b16 %v2090
        %v2223 = vunpack.c.l.b16 %v2091
        %v2224 = vunpack.c.l.b16 %v2092
        %v2225 = vunpack.c.l.b16 %v2093
        %v2226 = vunpack.c.l.b16 %v2094
        %v2227 = vunpack.c.l.b16 %v2095
        %v2228 = vunpack.c.l.b16 %v2096
        %v2229 = vunpack.c.l.b16 %v2097
        %v2230 = vunpack.c.l.b16 %v2098
        %v2231 = vunpack.c.l.b16 %v2099
        %v2232 = vunpack.c.l.b16 %v2100
        %v2233 = vunpack.c.l.b16 %v2101
        %v2234 = vunpack.c.l.b16 %v2102
        %v2235 = vunpack.c.l.b16 %v2103
        %v2236 = vunpack.c.l.b16 %v2104
        %v2237 = vunpack.c.l.b16 %v2105
        %v2238 = vunpack.c.l.b16 %v2106
        %v2239 = vunpack.c.l.b16 %v2107
        %v2240 = vunpack.c.l.b16 %v2108
        %v2241 = vunpack.c.l.b16 %v2109
        %v2242 = vunpack.c.l.b16 %v2110
        %v2243 = vunpack.c.l.b16 %v2111
        %v2244 = vunpack.c.l.b16 %v2112
        %v2245 = vunpack.c.l.b16 %v2113
        %v2246 = vunpack.c.l.b16 %v2114
        %v2247 = vunpack.c.l.b16 %v2115
        %v2248 = vunpack.c.l.b16 %v2116
        %v2249 = vunpack.c.l.b16 %v2117
        %v2250 = vunpack.c.l.b16 %v2118
        %v2251 = vunpack.c.l.b16 %v2119
        %v2252 = vunpack.c.l.b16 %v2120
        %v2253 = vunpack.c.l.b16 %v2121
        %v2254 = vunpack.c.l.b16 %v2122
        %v2255 = vunpack.c.l.b16 %v2123
        %v2256 = vunpack.c.l.b16 %v2124
        %v2257 = vunpack.c.l.b16 %v2125
        %v2258 = vunpack.c.l.b16 %v2126
        %v2259 = vunpack.c.l.b16 %v2127
        %v2260 = vunpack.c.l.b16 %v2128
        %v2261 = vunpack.c.l.b16 %v2129
        %v2262 = vunpack.c.l.b16 %v2130
        %v2263 = vunpack.c.l.b16 %v2131
        %v2264 = vunpack.c.l.b16 %v2132
        %v2265 = vpack.c.b16 %v2202, %v2201
        %v2266 = vpack.c.b16 %v2204, %v2203
        %v2267 = vpack.c.b16 %v2206, %v2205
        %v2268 = vpack.c.b16 %v2208, %v2207
        %v2269 = vpack.c.b16 %v2210, %v2209
        %v2270 = vpack.c.b16 %v2212, %v2211
        %v2271 = vpack.c.b16 %v2214, %v2213
        %v2272 = vpack.c.b16 %v2216, %v2215
        %v2273 = vpack.c.b16 %v2218, %v2217
        %v2274 = vpack.c.b16 %v2220, %v2219
        %v2275 = vpack.c.b16 %v2222, %v2221
        %v2276 = vpack.c.b16 %v2224, %v2223
        %v2277 = vpack.c.b16 %v2226, %v2225
        %v2278 = vpack.c.b16 %v2228, %v2227
        %v2279 = vpack.c.b16 %v2230, %v2229
        %v2280 = vpack.c.b16 %v2232, %v2231
        %v2281 = vpack.c.b16 %v2234, %v2233
        %v2282 = vpack.c.b16 %v2236, %v2235
        %v2283 = vpack.c.b16 %v2238, %v2237
        %v2284 = vpack.c.b16 %v2240, %v2239
        %v2285 = vpack.c.b16 %v2242, %v2241
        %v2286 = vpack.c.b16 %v2244, %v2243
        %v2287 = vpack.c.b16 %v2246, %v2245
        %v2288 = vpack.c.b16 %v2248, %v2247
        %v2289 = vpack.c.b16 %v2250, %v2249
        %v2290 = vpack.c.b16 %v2252, %v2251
        %v2291 = vpack.c.b16 %v2254, %v2253
        %v2292 = vpack.c.b16 %v2256, %v2255
        %v2293 = vpack.c.b16 %v2258, %v2257
        %v2294 = vpack.c.b16 %v2260, %v2259
        %v2295 = vpack.c.b16 %v2262, %v2261
        %v2296 = vpack.c.b16 %v2264, %v2263
        %2329 = vmatpush.bf16.msra.mxu0 %v2272
        %2330 = vmatpush.bf16.msra.mxu0 %v2271
        %2331 = vmatpush.bf16.msra.mxu0 %v2270
        %2332 = vmatpush.bf16.msra.mxu0 %v2269
        %2333 = vmatpush.bf16.msra.mxu0 %v2268
        %2334 = vmatpush.bf16.msra.mxu0 %v2267
        %2335 = vmatpush.bf16.msra.mxu0 %v2266
        %2336 = vmatpush.bf16.msra.mxu0 %v2265
        %2337 = vmatmul.bf16.gmra.mxu0 %v2065
        %v2338 = vpop.f32.mrf.mxu0
        %v2339 = vadd.f32 %v2135, %v2338
        %v2340 = vpop.f32.mrf.mxu0
        %v2341 = vadd.f32 %v2135, %v2340
        %2342 = vdwg.mxu0
        %2343 = vmatpush.bf16.msra.mxu0 %v2280
        %2344 = vmatpush.bf16.msra.mxu0 %v2279
        %2345 = vmatpush.bf16.msra.mxu0 %v2278
        %2346 = vmatpush.bf16.msra.mxu0 %v2277
        %2347 = vmatpush.bf16.msra.mxu0 %v2276
        %2348 = vmatpush.bf16.msra.mxu0 %v2275
        %2349 = vmatpush.bf16.msra.mxu0 %v2274
        %2350 = vmatpush.bf16.msra.mxu0 %v2273
        %2351 = vmatmul.bf16.gmra.mxu0 %v2066
        %v2352 = vpop.f32.mrf.mxu0
        %v2353 = vadd.f32 %v2339, %v2352
        %v2354 = vpop.f32.mrf.mxu0
        %v2355 = vadd.f32 %v2341, %v2354
        %2356 = vdwg.mxu0
        %2357 = vmatpush.bf16.msra.mxu0 %v2288
        %2358 = vmatpush.bf16.msra.mxu0 %v2287
        %2359 = vmatpush.bf16.msra.mxu0 %v2286
        %2360 = vmatpush.bf16.msra.mxu0 %v2285
        %2361 = vmatpush.bf16.msra.mxu0 %v2284
        %2362 = vmatpush.bf16.msra.mxu0 %v2283
        %2363 = vmatpush.bf16.msra.mxu0 %v2282
        %2364 = vmatpush.bf16.msra.mxu0 %v2281
        %2365 = vmatmul.bf16.gmra.mxu0 %v2067
        %v2366 = vpop.f32.mrf.mxu0
        %v2367 = vadd.f32 %v2353, %v2366
        %v2368 = vpop.f32.mrf.mxu0
        %v2369 = vadd.f32 %v2355, %v2368
        %2370 = vdwg.mxu0
        %2371 = vmatpush.bf16.msra.mxu0 %v2296
        %2372 = vmatpush.bf16.msra.mxu0 %v2295
        %2373 = vmatpush.bf16.msra.mxu0 %v2294
        %2374 = vmatpush.bf16.msra.mxu0 %v2293
        %2375 = vmatpush.bf16.msra.mxu0 %v2292
        %2376 = vmatpush.bf16.msra.mxu0 %v2291
        %2377 = vmatpush.bf16.msra.mxu0 %v2290
        %2378 = vmatpush.bf16.msra.mxu0 %v2289
        %2379 = vmatmul.bf16.gmra.mxu0 %v2068
        %v2380 = vpop.f32.mrf.mxu0
        %v2381 = vadd.f32 %v2367, %v2380
        %v2382 = vpop.f32.mrf.mxu0
        %v2383 = vadd.f32 %v2369, %v2382
        %2384 = vdwg.mxu0
        %v2385 = vadd.f32 %v1680, %v2381
        %v2386 = vadd.f32 %v1681, %v2383
        %v2387 = vld [vmem:[%s679] sm:$0xff]
        %v2388 = vld [vmem:[%s679 + $0x8] sm:$0xff]
        %2390 = vset.pattern.permute.xlu0 0
        %2391 = vperm.xlu0 %2390, %v2387
        %v2392 = vpop.permute.xlu0 %2391
        %2395 = vset.pattern.permute.xlu0 0
        %2396 = vperm.xlu0 %2395, %v2388
        %v2397 = vpop.permute.xlu0 %2396
        %v2399 = vmul.f32 %v2385, %v2392
        %v2400 = vmul.f32 %v2386, %v2397
        %2401 = vst [vmem:[%s664] sm:$0xff] %v2399
        %2402 = vst [vmem:[%s664 + $0x8] sm:$0xff] %v2400
        %s2403 = sand.u32 %s389, 1
        %s2404 = scalar_lea.sflag [#allocation7], %s2403
        %s2405 = sand.u32 %s389, 1
        %s2406 = smul.addr %s2405, 16
        %s2407 = scalar_lea.vmem [#allocation17], %s2406
        // Predicated region
        $region113: #{tpu_custom_call.1} parent=79 // pred_check
          %p2408 = pneg %p399
        $region114: #{tpu_custom_call.1} parent=79 // pred_check_branch
          %2410 = sbr.rel (%p2408) target = $region116
        $region115: #{tpu_custom_call.1} parent=79 // pred_region
          %s2411 = smul.u32 2, %s40
          %2413 = vsyncadd %s2404, 0
          %s2414 = smul.addr %s39, 4
          %s2415 = sadd.s32 %s2411, %s2414
          %s2416 = smul.addr %s2415, 8
          %s2417 = scalar_lea.hbm %s15, %s2416
          %s2418 = sshll.u32 %s2407, 4
          %s2419 = int_to_ptr.vmem [resolvable:$true] %s2418
          %s2420 = sshll.u32 %s2417, 4
          %s2421 = int_to_ptr.hbm [resolvable:$true] %s2420
          %2426 = dma.vmem_to_hbm [thread:$0]  %s2419, 256, %s2421, %s2404, 128, 128, 8
        $region116: #{tpu_custom_call.1} parent=79 // pred_fallthru
          _
      $region80: #{tpu_custom_call.1} parent=5 // pred_fallthru
        _
      %p2427 = scmp.le.s32.totalorder 2, %s30
      // Predicated region
      $region117: #{tpu_custom_call.1} parent=5 // pred_check
        %p2428 = pneg %p2427
      $region118: #{tpu_custom_call.1} parent=5 // pred_check_branch
        %2430 = sbr.rel (%p2428) target = $region120
      $region119: #{tpu_custom_call.1} parent=5 // pred_region
        %s2431 = ssub.s32 %s30, 2
        // Predicated region
        $region121: #{tpu_custom_call.1} parent=119 // pred_check
          %p2432 = pneg %p405
        $region122: #{tpu_custom_call.1} parent=119 // pred_check_branch
          %2434 = sbr.rel (%p2432) target = $region124
        $region123: #{tpu_custom_call.1} parent=119 // pred_region
          %s2435 = sand.u32 %s390, 1
          %s2436 = scalar_lea.sflag [#allocation7], %s2435
          %s2437 = sand.u32 %s390, 1
          %s2438 = smul.addr %s2437, 16
          %s2439 = scalar_lea.vmem [#allocation17], %s2438
          %2441 = dma.done %s2436, 256
        $region124: #{tpu_custom_call.1} parent=119 // pred_fallthru
          _
      $region120: #{tpu_custom_call.1} parent=5 // pred_fallthru
        _
    $region6: #{tpu_custom_call.1} parent=1 // loop_footer
      %s34 = sadd.s32 1, %s30
    $region7: #{tpu_custom_call.1} parent=1 // loop_footer_branch
      %29 = sbr.rel target = $region3
    $region8: #{tpu_custom_call.1} parent=1 // loop_exit
      _
    %2442 = vsyncpa [#allocation6], 1
    %s2443 = scalar_lea.sflag [#allocation6], 1
    %2444 = vsyncpa %s2443, 1
    %2445 = vsyncpa [#allocation9], 1
    %2446 = vsyncpa [#allocation12], 1
    %2447 = vsyncpa [#allocation15], 1
    %2448 = vsyncpa [#allocation7], 1
    %s2449 = scalar_lea.sflag [#allocation7], 1
    %2450 = vsyncpa %s2449, 1

// kernel: tpu_custom_call.1
$region0: #{tpu_custom_call.1}
  #allocation0 [shape = 'u32[]', space=smem, size = 0x4, offset = 0x4, fixed_abs, tag = 'smem constant byte address 0x4 - core index']
  #allocation1 [shape = 'u32[72,128]{1,0:T(1,128)}', space=vmem, size = 0x9000, scoped, tag = 'internal scratch']
  #allocation2 [shape = 'bf16[32,128]{1,0:T(8,128)(2,1)}', space=vmem, size = 0x2000, scoped, tag = 'scratch operand']
  #allocation3 [shape = 'bf16[32,128]{1,0:T(8,128)(2,1)}', space=vmem, size = 0x2000, scoped, tag = 'scratch operand']
  #allocation4 [shape = 'bf16[16,128]{1,0:T(8,128)(2,1)}', space=vmem, size = 0x1000, scoped, tag = 'scratch operand']
  %s0 = inlined_call_operand.vmem [shape: f32[2,32,128], index: 0, kind: input, shape index: {}]
  %s1 = inlined_call_operand.hbm [shape: f32[32,32], index: 1, kind: input, shape index: {}]
  %s2 = inlined_call_operand.vmem [shape: f32[2,32,1], index: 2, kind: input, shape index: {}]
  %s3 = inlined_call_operand.hbm [shape: f32[1,128], index: 3, kind: input, shape index: {}]
  %s4 = inlined_call_operand.hbm [shape: f32[1,128], index: 4, kind: input, shape index: {}]
  %s5 = inlined_call_operand.hbm [shape: bf16[128,384], index: 5, kind: input, shape index: {}]
  %s6 = inlined_call_operand.vmem [shape: f32[1,384], index: 6, kind: input, shape index: {}]
  %s7 = inlined_call_operand.hbm [shape: bf16[128,128], index: 7, kind: input, shape index: {}]
  %s8 = inlined_call_operand.vmem [shape: f32[1,128], index: 8, kind: input, shape index: {}]
  %s9 = inlined_call_operand.vmem [shape: f32[1,128], index: 9, kind: input, shape index: {}]
  %s10 = inlined_call_operand.vmem [shape: f32[1,128], index: 10, kind: input, shape index: {}]
  %s11 = inlined_call_operand.hbm [shape: bf16[128,512], index: 11, kind: input, shape index: {}]
  %s12 = inlined_call_operand.vmem [shape: f32[1,512], index: 12, kind: input, shape index: {}]
  %s13 = inlined_call_operand.hbm [shape: bf16[512,128], index: 13, kind: input, shape index: {}]
  %s14 = inlined_call_operand.vmem [shape: f32[1,128], index: 14, kind: input, shape index: {}]
  %s15 = inlined_call_operand.hbm [shape: f32[2,32,128], index: 15, kind: output, shape index: {}]
  %s16 = sld [smem:[#allocation0]]
  $region125: #{tpu_custom_call.1} parent=0
    _
  %s18 = ssub.s32 1, %s16
  %s19 = scalar_select 0, %s18, %s16
  $region1: #{tpu_custom_call.1} parent=0
    #allocation5 [shape = 'u8[16384]{0}', space=vmem, size = 0x4000, scoped, tag = 'input window, operand 1']
    #allocation6 [shape = 's32[2]{0}', space=sflag, size = 0x8, scoped, tag = 'scoped memory for tpu_custom_call.1']
    #allocation7 [shape = 's32[2]{0}', space=sflag, size = 0x8, scoped, tag = 'scoped memory for tpu_custom_call.1']
    #allocation8 [shape = 'u8[512]{0}', space=vmem, size = 0x400, scoped, tag = 'input window, operand 3, single buffered']
    #allocation9 [shape = 's32[1]{0}', space=sflag, size = 0x4, scoped, tag = 'scoped memory for tpu_custom_call.1']
    #allocation10 [shape = 'u8[512]{0}', space=vmem, size = 0x400, scoped, tag = 'input window, operand 4, single buffered']
    #allocation11 [shape = 'u8[98304]{0}', space=vmem, size = 0x18000, scoped, tag = 'input window, operand 5, single buffered']
    #allocation12 [shape = 's32[1]{0}', space=sflag, size = 0x4, scoped, tag = 'scoped memory for tpu_custom_call.1']
    #allocation13 [shape = 'u8[32768]{0}', space=vmem, size = 0x8000, scoped, tag = 'input window, operand 7, single buffered']
    #allocation14 [shape = 'u8[131072]{0}', space=vmem, size = 0x20000, scoped, tag = 'input window, operand 11, single buffered']
    #allocation15 [shape = 's32[1]{0}', space=sflag, size = 0x4, scoped, tag = 'scoped memory for tpu_custom_call.1']
    #allocation16 [shape = 'u8[131072]{0}', space=vmem, size = 0x20000, scoped, tag = 'input window, operand 13, single buffered']
    #allocation17 [shape = 'u8[16384]{0}', space=vmem, size = 0x4000, scoped, tag = 'output window, operand 0']
    %20 = vsyncpa [#allocation6], 0
    %s21 = scalar_lea.sflag [#allocation6], 1
    %22 = vsyncpa %s21, 0
    %23 = vsyncpa [#allocation9], 0
    %24 = vsyncpa [#allocation12], 0
    %25 = vsyncpa [#allocation15], 0
    %26 = vsyncpa [#allocation7], 0
    %s27 = scalar_lea.sflag [#allocation7], 1
    %28 = vsyncpa %s27, 0
    loop: start=0, step=1, limit=6
    $region2: #{tpu_custom_call.1} parent=1 // loop_pre_header
      _
    $region3: #{tpu_custom_call.1} parent=1 // loop_header
      %s30 = sphi 0, %s34
      %p31 = scmp.ge.s32.totalorder %s30, 6
      %s37 = sphi 0, %s49
      %s38 = sphi 0, %s45
      %s39 = sphi 0, %s37
      %s40 = sphi 0, %s38
      %s41 = sphi 0, %s39
      %s42 = sphi 0, %s40
      %s52 = sphi 0, %s54
      %s55 = sphi 0, %s52
      %s56 = sphi 0, %s55
      %s72 = sphi 0, %s56
      %s78 = sphi 0, %s80
      %s81 = sphi 0, %s78
      %s82 = sphi 0, %s81
      %s98 = sphi 0, %s82
      %s106 = sphi 0, %s108
      %s109 = sphi 0, %s106
      %s110 = sphi 0, %s109
      %s126 = sphi 0, %s110
      %s130 = sphi 0, %s130
      %s132 = sphi 0, %s130
      %s133 = sphi 0, %s132
      %s147 = sphi 0, %s133
      %s151 = sphi 0, %s151
      %s153 = sphi 0, %s151
      %s154 = sphi 0, %s153
      %s168 = sphi 0, %s154
      %s172 = sphi 0, %s172
      %s174 = sphi 0, %s172
      %s175 = sphi 0, %s174
      %s189 = sphi 0, %s175
      %s193 = sphi 0, %s193
      %s195 = sphi 0, %s193
      %s196 = sphi 0, %s195
      %s210 = sphi 0, %s196
      %s214 = sphi 0, %s214
      %s216 = sphi 0, %s214
      %s217 = sphi 0, %s216
      %s231 = sphi 0, %s217
      %s235 = sphi 0, %s235
      %s237 = sphi 0, %s235
      %s238 = sphi 0, %s237
      %s252 = sphi 0, %s238
      %s256 = sphi 0, %s256
      %s258 = sphi 0, %s256
      %s259 = sphi 0, %s258
      %s273 = sphi 0, %s259
      %s277 = sphi 0, %s277
      %s279 = sphi 0, %s277
      %s280 = sphi 0, %s279
      %s294 = sphi 0, %s280
      %s298 = sphi 0, %s298
      %s300 = sphi 0, %s298
      %s301 = sphi 0, %s300
      %s315 = sphi 0, %s301
      %s319 = sphi 0, %s319
      %s321 = sphi 0, %s319
      %s322 = sphi 0, %s321
      %s336 = sphi 0, %s322
      %s340 = sphi 0, %s340
      %s342 = sphi 0, %s340
      %s343 = sphi 0, %s342
      %s357 = sphi 0, %s343
      %s361 = sphi 0, %s361
      %s363 = sphi 0, %s361
      %s364 = sphi 0, %s363
      %s378 = sphi 0, %s364
      %s386 = sphi 0, %s388
      %s389 = sphi 0, %s386
      %s390 = sphi 0, %s389
      %s406 = sphi 0, %s390
    $region4: #{tpu_custom_call.1} parent=1 // loop_header_branch
      %33 = sbr.rel (%p31) target = $region8
    $region5: #{tpu_custom_call.1} parent=1 // loop_body
      %s35 = ssub.s32 %s30, 1
      %s36 = ssub.s32 %s30, 2
      %s43 = sadd.s32 1, %s38
      %p44 = scmp.ge.s32.totalorder %s43, 2
      %s45 = scalar_select %p44, 0, %s43
      %s46 = sadd.s32 1, %s37
      %s47 = scalar_select %p44, %s46, %s37
      %p48 = scmp.ge.s32.totalorder %s47, 2
      %s49 = scalar_select %p48, 0, %s47
      %s50 = ssub.s32 %s37, %s49
      %p51 = scmp.eq.s32.totalorder %s50, 0
      %s53 = sadd.s32 %s52, 1
      %s54 = scalar_select %p51, %s52, %s53
      %p57 = pneg %p51
      %p58 = scmp.eq.s32.totalorder %s30, 3
      %p59 = por %p57, %p58
      %p60 = scmp.ne.s32.totalorder %s52, %s55
      %p61 = scmp.eq.s32.totalorder %s30, 0
      %p62 = por %p60, %p61
      %p63 = scmp.ne.s32.totalorder %s52, %s55
      %p64 = scmp.eq.s32.totalorder %s35, 3
      %p65 = por %p63, %p64
      %p66 = scmp.ne.s32.totalorder %s55, %s56
      %p67 = scmp.eq.s32.totalorder %s35, 0
      %p68 = por %p66, %p67
      %p69 = scmp.ne.s32.totalorder %s55, %s56
      %p70 = scmp.eq.s32.totalorder %s36, 3
      %p71 = por %p69, %p70
      %p73 = scmp.ne.s32.totalorder %s56, %s72
      %p74 = scmp.eq.s32.totalorder %s36, 0
      %p75 = por %p73, %p74
      %s76 = ssub.s32 %s38, %s45
      %p77 = scmp.eq.s32.totalorder %s76, 0
      %s79 = sadd.s32 %s78, 1
      %s80 = scalar_select %p77, %s78, %s79
      %p83 = pneg %p77
      %p84 = scmp.eq.s32.totalorder %s30, 3
      %p85 = por %p83, %p84
      %p86 = scmp.ne.s32.totalorder %s78, %s81
      %p87 = scmp.eq.s32.totalorder %s30, 0
      %p88 = por %p86, %p87
      %p89 = scmp.ne.s32.totalorder %s78, %s81
      %p90 = scmp.eq.s32.totalorder %s35, 3
      %p91 = por %p89, %p90
      %p92 = scmp.ne.s32.totalorder %s81, %s82
      %p93 = scmp.eq.s32.totalorder %s35, 0
      %p94 = por %p92, %p93
      %p95 = scmp.ne.s32.totalorder %s81, %s82
      %p96 = scmp.eq.s32.totalorder %s36, 3
      %p97 = por %p95, %p96
      %p99 = scmp.ne.s32.totalorder %s82, %s98
      %p100 = scmp.eq.s32.totalorder %s36, 0
      %p101 = por %p99, %p100
      %s102 = ssub.s32 %s37, %s49
      %s103 = ssub.s32 %s38, %s45
      %s104 = sor.u32 %s102, %s103
      %p105 = scmp.eq.s32.totalorder %s104, 0
      %s107 = sadd.s32 %s106, 1
      %s108 = scalar_select %p105, %s106, %s107
      %p111 = pneg %p105
      %p112 = scmp.eq.s32.totalorder %s30, 3
      %p113 = por %p111, %p112
      %p114 = scmp.ne.s32.totalorder %s106, %s109
      %p115 = scmp.eq.s32.totalorder %s30, 0
      %p116 = por %p114, %p115
      %p117 = scmp.ne.s32.totalorder %s106, %s109
      %p118 = scmp.eq.s32.totalorder %s35, 3
      %p119 = por %p117, %p118
      %p120 = scmp.ne.s32.totalorder %s109, %s110
      %p121 = scmp.eq.s32.totalorder %s35, 0
      %p122 = por %p120, %p121
      %p123 = scmp.ne.s32.totalorder %s109, %s110
      %p124 = scmp.eq.s32.totalorder %s36, 3
      %p125 = por %p123, %p124
      %p127 = scmp.ne.s32.totalorder %s110, %s126
      %p128 = scmp.eq.s32.totalorder %s36, 0
      %p129 = por %p127, %p128
      %s131 = sadd.s32 %s130, 1
      %p134 = scmp.eq.s32.totalorder %s30, 3
      %p135 = scmp.ne.s32.totalorder %s130, %s132
      %p136 = scmp.eq.s32.totalorder %s30, 0
      %p137 = por %p135, %p136
      %p138 = scmp.ne.s32.totalorder %s130, %s132
      %p139 = scmp.eq.s32.totalorder %s35, 3
      %p140 = por %p138, %p139
      %p141 = scmp.ne.s32.totalorder %s132, %s133
      %p142 = scmp.eq.s32.totalorder %s35, 0
      %p143 = por %p141, %p142
      %p144 = scmp.ne.s32.totalorder %s132, %s133
      %p145 = scmp.eq.s32.totalorder %s36, 3
      %p146 = por %p144, %p145
      %p148 = scmp.ne.s32.totalorder %s133, %s147
      %p149 = scmp.eq.s32.totalorder %s36, 0
      %p150 = por %p148, %p149
      %s152 = sadd.s32 %s151, 1
      %p155 = scmp.eq.s32.totalorder %s30, 3
      %p156 = scmp.ne.s32.totalorder %s151, %s153
      %p157 = scmp.eq.s32.totalorder %s30, 0
      %p158 = por %p156, %p157
      %p159 = scmp.ne.s32.totalorder %s151, %s153
      %p160 = scmp.eq.s32.totalorder %s35, 3
      %p161 = por %p159, %p160
      %p162 = scmp.ne.s32.totalorder %s153, %s154
      %p163 = scmp.eq.s32.totalorder %s35, 0
      %p164 = por %p162, %p163
      %p165 = scmp.ne.s32.totalorder %s153, %s154
      %p166 = scmp.eq.s32.totalorder %s36, 3
      %p167 = por %p165, %p166
      %p169 = scmp.ne.s32.totalorder %s154, %s168
      %p170 = scmp.eq.s32.totalorder %s36, 0
      %p171 = por %p169, %p170
      %s173 = sadd.s32 %s172, 1
      %p176 = scmp.eq.s32.totalorder %s30, 3
      %p177 = scmp.ne.s32.totalorder %s172, %s174
      %p178 = scmp.eq.s32.totalorder %s30, 0
      %p179 = por %p177, %p178
      %p180 = scmp.ne.s32.totalorder %s172, %s174
      %p181 = scmp.eq.s32.totalorder %s35, 3
      %p182 = por %p180, %p181
      %p183 = scmp.ne.s32.totalorder %s174, %s175
      %p184 = scmp.eq.s32.totalorder %s35, 0
      %p185 = por %p183, %p184
      %p186 = scmp.ne.s32.totalorder %s174, %s175
      %p187 = scmp.eq.s32.totalorder %s36, 3
      %p188 = por %p186, %p187
      %p190 = scmp.ne.s32.totalorder %s175, %s189
      %p191 = scmp.eq.s32.totalorder %s36, 0
      %p192 = por %p190, %p191
      %s194 = sadd.s32 %s193, 1
      %p197 = scmp.eq.s32.totalorder %s30, 3
      %p198 = scmp.ne.s32.totalorder %s193, %s195
      %p199 = scmp.eq.s32.totalorder %s30, 0
      %p200 = por %p198, %p199
      %p201 = scmp.ne.s32.totalorder %s193, %s195
      %p202 = scmp.eq.s32.totalorder %s35, 3
      %p203 = por %p201, %p202
      %p204 = scmp.ne.s32.totalorder %s195, %s196
      %p205 = scmp.eq.s32.totalorder %s35, 0
      %p206 = por %p204, %p205
      %p207 = scmp.ne.s32.totalorder %s195, %s196
      %p208 = scmp.eq.s32.totalorder %s36, 3
      %p209 = por %p207, %p208
      %p211 = scmp.ne.s32.totalorder %s196, %s210
      %p212 = scmp.eq.s32.totalorder %s36, 0
      %p213 = por %p211, %p212
      %s215 = sadd.s32 %s214, 1
      %p218 = scmp.eq.s32.totalorder %s30, 3
      %p219 = scmp.ne.s32.totalorder %s214, %s216
      %p220 = scmp.eq.s32.totalorder %s30, 0
      %p221 = por %p219, %p220
      %p222 = scmp.ne.s32.totalorder %s214, %s216
      %p223 = scmp.eq.s32.totalorder %s35, 3
      %p224 = por %p222, %p223
      %p225 = scmp.ne.s32.totalorder %s216, %s217
      %p226 = scmp.eq.s32.totalorder %s35, 0
      %p227 = por %p225, %p226
      %p228 = scmp.ne.s32.totalorder %s216, %s217
      %p229 = scmp.eq.s32.totalorder %s36, 3
      %p230 = por %p228, %p229
      %p232 = scmp.ne.s32.totalorder %s217, %s231
      %p233 = scmp.eq.s32.totalorder %s36, 0
      %p234 = por %p232, %p233
      %s236 = sadd.s32 %s235, 1
      %p239 = scmp.eq.s32.totalorder %s30, 3
      %p240 = scmp.ne.s32.totalorder %s235, %s237
      %p241 = scmp.eq.s32.totalorder %s30, 0
      %p242 = por %p240, %p241
      %p243 = scmp.ne.s32.totalorder %s235, %s237
      %p244 = scmp.eq.s32.totalorder %s35, 3
      %p245 = por %p243, %p244
      %p246 = scmp.ne.s32.totalorder %s237, %s238
      %p247 = scmp.eq.s32.totalorder %s35, 0
      %p248 = por %p246, %p247
      %p249 = scmp.ne.s32.totalorder %s237, %s238
      %p250 = scmp.eq.s32.totalorder %s36, 3
      %p251 = por %p249, %p250
      %p253 = scmp.ne.s32.totalorder %s238, %s252
      %p254 = scmp.eq.s32.totalorder %s36, 0
      %p255 = por %p253, %p254
      %s257 = sadd.s32 %s256, 1
      %p260 = scmp.eq.s32.totalorder %s30, 3
      %p261 = scmp.ne.s32.totalorder %s256, %s258
      %p262 = scmp.eq.s32.totalorder %s30, 0
      %p263 = por %p261, %p262
      %p264 = scmp.ne.s32.totalorder %s256, %s258
      %p265 = scmp.eq.s32.totalorder %s35, 3
      %p266 = por %p264, %p265
      %p267 = scmp.ne.s32.totalorder %s258, %s259
      %p268 = scmp.eq.s32.totalorder %s35, 0
      %p269 = por %p267, %p268
      %p270 = scmp.ne.s32.totalorder %s258, %s259
      %p271 = scmp.eq.s32.totalorder %s36, 3
      %p272 = por %p270, %p271
      %p274 = scmp.ne.s32.totalorder %s259, %s273
      %p275 = scmp.eq.s32.totalorder %s36, 0
      %p276 = por %p274, %p275
      %s278 = sadd.s32 %s277, 1
      %p281 = scmp.eq.s32.totalorder %s30, 3
      %p282 = scmp.ne.s32.totalorder %s277, %s279
      %p283 = scmp.eq.s32.totalorder %s30, 0
      %p284 = por %p282, %p283
      %p285 = scmp.ne.s32.totalorder %s277, %s279
      %p286 = scmp.eq.s32.totalorder %s35, 3
      %p287 = por %p285, %p286
      %p288 = scmp.ne.s32.totalorder %s279, %s280
      %p289 = scmp.eq.s32.totalorder %s35, 0
      %p290 = por %p288, %p289
      %p291 = scmp.ne.s32.totalorder %s279, %s280
      %p292 = scmp.eq.s32.totalorder %s36, 3
      %p293 = por %p291, %p292
      %p295 = scmp.ne.s32.totalorder %s280, %s294
      %p296 = scmp.eq.s32.totalorder %s36, 0
      %p297 = por %p295, %p296
      %s299 = sadd.s32 %s298, 1
      %p302 = scmp.eq.s32.totalorder %s30, 3
      %p303 = scmp.ne.s32.totalorder %s298, %s300
      %p304 = scmp.eq.s32.totalorder %s30, 0
      %p305 = por %p303, %p304
      %p306 = scmp.ne.s32.totalorder %s298, %s300
      %p307 = scmp.eq.s32.totalorder %s35, 3
      %p308 = por %p306, %p307
      %p309 = scmp.ne.s32.totalorder %s300, %s301
      %p310 = scmp.eq.s32.totalorder %s35, 0
      %p311 = por %p309, %p310
      %p312 = scmp.ne.s32.totalorder %s300, %s301
      %p313 = scmp.eq.s32.totalorder %s36, 3
      %p314 = por %p312, %p313
      %p316 = scmp.ne.s32.totalorder %s301, %s315
      %p317 = scmp.eq.s32.totalorder %s36, 0
      %p318 = por %p316, %p317
      %s320 = sadd.s32 %s319, 1
      %p323 = scmp.eq.s32.totalorder %s30, 3
      %p324 = scmp.ne.s32.totalorder %s319, %s321
      %p325 = scmp.eq.s32.totalorder %s30, 0
      %p326 = por %p324, %p325
      %p327 = scmp.ne.s32.totalorder %s319, %s321
      %p328 = scmp.eq.s32.totalorder %s35, 3
      %p329 = por %p327, %p328
      %p330 = scmp.ne.s32.totalorder %s321, %s322
      %p331 = scmp.eq.s32.totalorder %s35, 0
      %p332 = por %p330, %p331
      %p333 = scmp.ne.s32.totalorder %s321, %s322
      %p334 = scmp.eq.s32.totalorder %s36, 3
      %p335 = por %p333, %p334
      %p337 = scmp.ne.s32.totalorder %s322, %s336
      %p338 = scmp.eq.s32.totalorder %s36, 0
      %p339 = por %p337, %p338
      %s341 = sadd.s32 %s340, 1
      %p344 = scmp.eq.s32.totalorder %s30, 3
      %p345 = scmp.ne.s32.totalorder %s340, %s342
      %p346 = scmp.eq.s32.totalorder %s30, 0
      %p347 = por %p345, %p346
      %p348 = scmp.ne.s32.totalorder %s340, %s342
      %p349 = scmp.eq.s32.totalorder %s35, 3
      %p350 = por %p348, %p349
      %p351 = scmp.ne.s32.totalorder %s342, %s343
      %p352 = scmp.eq.s32.totalorder %s35, 0
      %p353 = por %p351, %p352
      %p354 = scmp.ne.s32.totalorder %s342, %s343
      %p355 = scmp.eq.s32.totalorder %s36, 3
      %p356 = por %p354, %p355
      %p358 = scmp.ne.s32.totalorder %s343, %s357
      %p359 = scmp.eq.s32.totalorder %s36, 0
      %p360 = por %p358, %p359
      %s362 = sadd.s32 %s361, 1
      %p365 = scmp.eq.s32.totalorder %s30, 3
      %p366 = scmp.ne.s32.totalorder %s361, %s363
      %p367 = scmp.eq.s32.totalorder %s30, 0
      %p368 = por %p366, %p367
      %p369 = scmp.ne.s32.totalorder %s361, %s363
      %p370 = scmp.eq.s32.totalorder %s35, 3
      %p371 = por %p369, %p370
      %p372 = scmp.ne.s32.totalorder %s363, %s364
      %p373 = scmp.eq.s32.totalorder %s35, 0
      %p374 = por %p372, %p373
      %p375 = scmp.ne.s32.totalorder %s363, %s364
      %p376 = scmp.eq.s32.totalorder %s36, 3
      %p377 = por %p375, %p376
      %p379 = scmp.ne.s32.totalorder %s364, %s378
      %p380 = scmp.eq.s32.totalorder %s36, 0
      %p381 = por %p379, %p380
      %s382 = ssub.s32 %s37, %s49
      %s383 = ssub.s32 %s38, %s45
      %s384 = sor.u32 %s382, %s383
      %p385 = scmp.eq.s32.totalorder %s384, 0
      %s387 = sadd.s32 %s386, 1
      %s388 = scalar_select %p385, %s386, %s387
      %p391 = pneg %p385
      %p392 = scmp.eq.s32.totalorder %s30, 3
      %p393 = por %p391, %p392
      %p394 = scmp.ne.s32.totalorder %s386, %s389
      %p395 = scmp.eq.s32.totalorder %s30, 0
      %p396 = por %p394, %p395
      %p397 = scmp.ne.s32.totalorder %s386, %s389
      %p398 = scmp.eq.s32.totalorder %s35, 3
      %p399 = por %p397, %p398
      %p400 = scmp.ne.s32.totalorder %s389, %s390
      %p401 = scmp.eq.s32.totalorder %s35, 0
      %p402 = por %p400, %p401
      %p403 = scmp.ne.s32.totalorder %s389, %s390
      %p404 = scmp.eq.s32.totalorder %s36, 3
      %p405 = por %p403, %p404
      %p407 = scmp.ne.s32.totalorder %s390, %s406
      %p408 = scmp.eq.s32.totalorder %s36, 0
      %p409 = por %p407, %p408
      %p410 = scmp.le.s32.totalorder 1, %s30
      %p411 = scmp.lt.s32.totalorder %s30, 5
      %p412 = pnand %p410, %p411
      %p413 = pneg %p412
      // Predicated region
      $region9: #{tpu_custom_call.1} parent=5 // pred_check
        _
      $region10: #{tpu_custom_call.1} parent=5 // pred_check_branch
        %415 = sbr.rel (%p412) target = $region12
      $region11: #{tpu_custom_call.1} parent=5 // pred_region
        %s416 = ssub.s32 %s30, 1
        // Predicated region
        $region13: #{tpu_custom_call.1} parent=11 // pred_check
          %p417 = pneg %p143
        $region14: #{tpu_custom_call.1} parent=11 // pred_check_branch
          %419 = sbr.rel (%p417) target = $region16
        $region15: #{tpu_custom_call.1} parent=11 // pred_region
          %421 = vsyncadd [#allocation9], 0
          %s423 = sshll.u32 %s3, 4
          %s424 = int_to_ptr.hbm [resolvable:$true] %s423
          %s425 = sshll.u32 [#allocation8], 4
          %s426 = int_to_ptr.vmem [resolvable:$true] %s425
          %428 = dma.hbm_to_vmem [thread:$0]  %s424, 16, %s426, [#allocation9]
        $region16: #{tpu_custom_call.1} parent=11 // pred_fallthru
          _
        // Predicated region
        $region17: #{tpu_custom_call.1} parent=11 // pred_check
          %p429 = pneg %p164
        $region18: #{tpu_custom_call.1} parent=11 // pred_check_branch
          %431 = sbr.rel (%p429) target = $region20
        $region19: #{tpu_custom_call.1} parent=11 // pred_region
          %433 = vsyncadd [#allocation9], 0
          %s435 = sshll.u32 %s4, 4
          %s436 = int_to_ptr.hbm [resolvable:$true] %s435
          %s437 = sshll.u32 [#allocation10], 4
          %s438 = int_to_ptr.vmem [resolvable:$true] %s437
          %440 = dma.hbm_to_vmem [thread:$0]  %s436, 16, %s438, [#allocation9]
        $region20: #{tpu_custom_call.1} parent=11 // pred_fallthru
          _
        // Predicated region
        $region21: #{tpu_custom_call.1} parent=11 // pred_check
          %p441 = pneg %p185
        $region22: #{tpu_custom_call.1} parent=11 // pred_check_branch
          %443 = sbr.rel (%p441) target = $region24
        $region23: #{tpu_custom_call.1} parent=11 // pred_region
          %445 = vsyncadd [#allocation12], 0
          %s446 = sshll.u32 %s5, 4
          %s447 = int_to_ptr.hbm [resolvable:$true] %s446
          %s448 = sshll.u32 [#allocation11], 4
          %s449 = int_to_ptr.vmem [resolvable:$true] %s448
          %454 = dma.hbm_to_vmem [thread:$0]  %s447, 3072, %s449, [#allocation12], 192, 192, 12
        $region24: #{tpu_custom_call.1} parent=11 // pred_fallthru
          _
        // Predicated region
        $region25: #{tpu_custom_call.1} parent=11 // pred_check
          %p455 = pneg %p206
        $region26: #{tpu_custom_call.1} parent=11 // pred_check_branch
          %457 = sbr.rel (%p455) target = $region28
        $region27: #{tpu_custom_call.1} parent=11 // pred_region
          _
        $region28: #{tpu_custom_call.1} parent=11 // pred_fallthru
          _
        // Predicated region
        $region29: #{tpu_custom_call.1} parent=11 // pred_check
          %p458 = pneg %p227
        $region30: #{tpu_custom_call.1} parent=11 // pred_check_branch
          %460 = sbr.rel (%p458) target = $region32
        $region31: #{tpu_custom_call.1} parent=11 // pred_region
          %462 = vsyncadd [#allocation12], 0
          %s463 = sshll.u32 %s7, 4
          %s464 = int_to_ptr.hbm [resolvable:$true] %s463
          %s465 = sshll.u32 [#allocation13], 4
          %s466 = int_to_ptr.vmem [resolvable:$true] %s465
          %471 = dma.hbm_to_vmem [thread:$0]  %s464, 1024, %s466, [#allocation12], 64, 64, 4
        $region32: #{tpu_custom_call.1} parent=11 // pred_fallthru
          _
        // Predicated region
        $region33: #{tpu_custom_call.1} parent=11 // pred_check
          %p472 = pneg %p248
        $region34: #{tpu_custom_call.1} parent=11 // pred_check_branch
          %474 = sbr.rel (%p472) target = $region36
        $region35: #{tpu_custom_call.1} parent=11 // pred_region
          _
        $region36: #{tpu_custom_call.1} parent=11 // pred_fallthru
          _
        // Predicated region
        $region37: #{tpu_custom_call.1} parent=11 // pred_check
          %p475 = pneg %p269
        $region38: #{tpu_custom_call.1} parent=11 // pred_check_branch
          %477 = sbr.rel (%p475) target = $region40
        $region39: #{tpu_custom_call.1} parent=11 // pred_region
          _
        $region40: #{tpu_custom_call.1} parent=11 // pred_fallthru
          _
        // Predicated region
        $region41: #{tpu_custom_call.1} parent=11 // pred_check
          %p478 = pneg %p290
        $region42: #{tpu_custom_call.1} parent=11 // pred_check_branch
          %480 = sbr.rel (%p478) target = $region44
        $region43: #{tpu_custom_call.1} parent=11 // pred_region
          _
        $region44: #{tpu_custom_call.1} parent=11 // pred_fallthru
          _
        // Predicated region
        $region45: #{tpu_custom_call.1} parent=11 // pred_check
          %p481 = pneg %p311
        $region46: #{tpu_custom_call.1} parent=11 // pred_check_branch
          %483 = sbr.rel (%p481) target = $region48
        $region47: #{tpu_custom_call.1} parent=11 // pred_region
          %485 = vsyncadd [#allocation15], 0
          %s486 = sshll.u32 %s11, 4
          %s487 = int_to_ptr.hbm [resolvable:$true] %s486
          %s488 = sshll.u32 [#allocation14], 4
          %s489 = int_to_ptr.vmem [resolvable:$true] %s488
          %494 = dma.hbm_to_vmem [thread:$0]  %s487, 4096, %s489, [#allocation15], 256, 256, 16
        $region48: #{tpu_custom_call.1} parent=11 // pred_fallthru
          _
        // Predicated region
        $region49: #{tpu_custom_call.1} parent=11 // pred_check
          %p495 = pneg %p332
        $region50: #{tpu_custom_call.1} parent=11 // pred_check_branch
          %497 = sbr.rel (%p495) target = $region52
        $region51: #{tpu_custom_call.1} parent=11 // pred_region
          _
        $region52: #{tpu_custom_call.1} parent=11 // pred_fallthru
          _
        // Predicated region
        $region53: #{tpu_custom_call.1} parent=11 // pred_check
          %p498 = pneg %p353
        $region54: #{tpu_custom_call.1} parent=11 // pred_check_branch
          %500 = sbr.rel (%p498) target = $region56
        $region55: #{tpu_custom_call.1} parent=11 // pred_region
          %502 = vsyncadd [#allocation15], 0
          %s503 = sshll.u32 %s13, 4
          %s504 = int_to_ptr.hbm [resolvable:$true] %s503
          %s505 = sshll.u32 [#allocation16], 4
          %s506 = int_to_ptr.vmem [resolvable:$true] %s505
          %511 = dma.hbm_to_vmem [thread:$0]  %s504, 4096, %s506, [#allocation15], 64, 64, 4
        $region56: #{tpu_custom_call.1} parent=11 // pred_fallthru
          _
        // Predicated region
        $region57: #{tpu_custom_call.1} parent=11 // pred_check
          %p512 = pneg %p374
        $region58: #{tpu_custom_call.1} parent=11 // pred_check_branch
          %514 = sbr.rel (%p512) target = $region60
        $region59: #{tpu_custom_call.1} parent=11 // pred_region
          _
        $region60: #{tpu_custom_call.1} parent=11 // pred_fallthru
          _
      $region12: #{tpu_custom_call.1} parent=5 // pred_fallthru
        _
      %p515 = scmp.lt.s32.totalorder %s30, 4
      // Predicated region
      $region61: #{tpu_custom_call.1} parent=5 // pred_check
        %p516 = pneg %p515
      $region62: #{tpu_custom_call.1} parent=5 // pred_check_branch
        %518 = sbr.rel (%p516) target = $region64
      $region63: #{tpu_custom_call.1} parent=5 // pred_region
        // Predicated region
        $region65: #{tpu_custom_call.1} parent=63 // pred_check
          %p519 = pneg %p62
        $region66: #{tpu_custom_call.1} parent=63 // pred_check_branch
          %521 = sbr.rel (%p519) target = $region68
        $region67: #{tpu_custom_call.1} parent=63 // pred_region
          %p522 = scmp.lt.s32.totalorder %s37, 1
          %s523 = scalar_select %p522, %s37, 1
          %s524 = smul.addr %s523, 4
          %s525 = smul.addr %s524, 8
          %s526 = scalar_lea.vmem %s0, %s525
        $region68: #{tpu_custom_call.1} parent=63 // pred_fallthru
          _
        // Predicated region
        $region69: #{tpu_custom_call.1} parent=63 // pred_check
          %p527 = pneg %p88
        $region70: #{tpu_custom_call.1} parent=63 // pred_check_branch
          %529 = sbr.rel (%p527) target = $region72
        $region71: #{tpu_custom_call.1} parent=63 // pred_region
          %s530 = sand.u32 %s78, 1
          %s531 = scalar_lea.sflag [#allocation6], %s530
          %s532 = sand.u32 %s78, 1
          %s533 = smul.addr %s532, 16
          %s534 = scalar_lea.vmem [#allocation5], %s533
          %s535 = smul.u32 2, %s38
          %537 = vsyncadd %s531, 0
          %s538 = smul.addr %s535, 8
          %s539 = scalar_lea.hbm %s1, %s538
          %s540 = sshll.u32 %s539, 4
          %s541 = int_to_ptr.hbm [resolvable:$true] %s540
          %s542 = sshll.u32 %s534, 4
          %s543 = int_to_ptr.vmem [resolvable:$true] %s542
          %548 = dma.hbm_to_vmem [thread:$0]  %s541, 256, %s543, %s531, 128, 128, 8
        $region72: #{tpu_custom_call.1} parent=63 // pred_fallthru
          _
        // Predicated region
        $region73: #{tpu_custom_call.1} parent=63 // pred_check
          %p549 = pneg %p116
        $region74: #{tpu_custom_call.1} parent=63 // pred_check_branch
          %551 = sbr.rel (%p549) target = $region76
        $region75: #{tpu_custom_call.1} parent=63 // pred_region
          %s552 = smul.u32 2, %s38
          %p553 = scmp.lt.s32.totalorder %s37, 1
          %s554 = scalar_select %p553, %s37, 1
          %p555 = scmp.lt.s32.totalorder %s552, 3
          %s556 = scalar_select %p555, %s552, 3
          %s557 = smul.addr %s554, 4
          %s558 = sadd.s32 %s556, %s557
          %s559 = smul.addr %s558, 8
          %s560 = scalar_lea.vmem %s2, %s559
          %s561 = smul.u32 2, %s38
        $region76: #{tpu_custom_call.1} parent=63 // pred_fallthru
          _
      $region64: #{tpu_custom_call.1} parent=5 // pred_fallthru
        _
      %p562 = scmp.le.s32.totalorder 1, %s30
      %p563 = scmp.lt.s32.totalorder %s30, 5
      %p564 = pnand %p562, %p563
      %p565 = pneg %p564
      // Predicated region
      $region77: #{tpu_custom_call.1} parent=5 // pred_check
        _
      $region78: #{tpu_custom_call.1} parent=5 // pred_check_branch
        %567 = sbr.rel (%p564) target = $region80
      $region79: #{tpu_custom_call.1} parent=5 // pred_region
        %s568 = ssub.s32 %s30, 1
        %s569 = sand.u32 %s81, 1
        %s570 = scalar_lea.sflag [#allocation6], %s569
        %s571 = sand.u32 %s81, 1
        %s572 = smul.addr %s571, 16
        %s573 = scalar_lea.vmem [#allocation5], %s572
        // Predicated region
        $region81: #{tpu_custom_call.1} parent=79 // pred_check
          %p574 = pneg %p94
        $region82: #{tpu_custom_call.1} parent=79 // pred_check_branch
          %576 = sbr.rel (%p574) target = $region84
        $region83: #{tpu_custom_call.1} parent=79 // pred_region
          %578 = dma.done %s570, 256
        $region84: #{tpu_custom_call.1} parent=79 // pred_fallthru
          _
        // Predicated region
        $region85: #{tpu_custom_call.1} parent=79 // pred_check
          %p579 = pneg %p143
        $region86: #{tpu_custom_call.1} parent=79 // pred_check_branch
          %581 = sbr.rel (%p579) target = $region88
        $region87: #{tpu_custom_call.1} parent=79 // pred_region
          %583 = dma.done [#allocation9], 16
        $region88: #{tpu_custom_call.1} parent=79 // pred_fallthru
          _
        // Predicated region
        $region89: #{tpu_custom_call.1} parent=79 // pred_check
          %p584 = pneg %p164
        $region90: #{tpu_custom_call.1} parent=79 // pred_check_branch
          %586 = sbr.rel (%p584) target = $region92
        $region91: #{tpu_custom_call.1} parent=79 // pred_region
          %588 = dma.done [#allocation9], 16
        $region92: #{tpu_custom_call.1} parent=79 // pred_fallthru
          _
        // Predicated region
        $region93: #{tpu_custom_call.1} parent=79 // pred_check
          %p589 = pneg %p185
        $region94: #{tpu_custom_call.1} parent=79 // pred_check_branch
          %591 = sbr.rel (%p589) target = $region96
        $region95: #{tpu_custom_call.1} parent=79 // pred_region
          %593 = dma.done [#allocation12], 3072
        $region96: #{tpu_custom_call.1} parent=79 // pred_fallthru
          _
        // Predicated region
        $region97: #{tpu_custom_call.1} parent=79 // pred_check
          %p594 = pneg %p227
        $region98: #{tpu_custom_call.1} parent=79 // pred_check_branch
          %596 = sbr.rel (%p594) target = $region100
        $region99: #{tpu_custom_call.1} parent=79 // pred_region
          %598 = dma.done [#allocation12], 1024
        $region100: #{tpu_custom_call.1} parent=79 // pred_fallthru
          _
        // Predicated region
        $region101: #{tpu_custom_call.1} parent=79 // pred_check
          %p599 = pneg %p311
        $region102: #{tpu_custom_call.1} parent=79 // pred_check_branch
          %601 = sbr.rel (%p599) target = $region104
        $region103: #{tpu_custom_call.1} parent=79 // pred_region
          %603 = dma.done [#allocation15], 4096
        $region104: #{tpu_custom_call.1} parent=79 // pred_fallthru
          _
        // Predicated region
        $region105: #{tpu_custom_call.1} parent=79 // pred_check
          %p604 = pneg %p353
        $region106: #{tpu_custom_call.1} parent=79 // pred_check_branch
          %606 = sbr.rel (%p604) target = $region108
        $region107: #{tpu_custom_call.1} parent=79 // pred_region
          %608 = dma.done [#allocation15], 4096
        $region108: #{tpu_custom_call.1} parent=79 // pred_fallthru
          _
        %p609 = scmp.lt.s32.totalorder %s39, 1
        %s610 = scalar_select %p609, %s39, 1
        %s611 = smul.addr %s610, 4
        %s612 = smul.addr %s611, 8
        %s613 = scalar_lea.vmem %s0, %s612
        %p614 = pneg %p68
        %p615 = pneg %p65
        %s616 = sand.u32 %s81, 1
        %s617 = scalar_lea.sflag [#allocation6], %s616
        %s618 = sand.u32 %s81, 1
        %s619 = smul.addr %s618, 16
        %s620 = scalar_lea.vmem [#allocation5], %s619
        %p621 = pneg %p94
        %p622 = pneg %p91
        %s623 = smul.u32 2, %s40
        %p624 = scmp.lt.s32.totalorder %s39, 1
        %s625 = scalar_select %p624, %s39, 1
        %p626 = scmp.lt.s32.totalorder %s623, 3
        %s627 = scalar_select %p626, %s623, 3
        %s628 = smul.addr %s625, 4
        %s629 = sadd.s32 %s627, %s628
        %s630 = smul.addr %s629, 8
        %s631 = scalar_lea.vmem %s2, %s630
        %p632 = pneg %p122
        %p633 = pneg %p119
        %p634 = pneg %p143
        %p635 = pneg %p140
        %p636 = pneg %p164
        %p637 = pneg %p161
        %p638 = pneg %p185
        %p639 = pneg %p182
        %p640 = pneg %p206
        %p641 = pneg %p203
        %p642 = pneg %p227
        %p643 = pneg %p224
        %p644 = pneg %p248
        %p645 = pneg %p245
        %p646 = pneg %p269
        %p647 = pneg %p266
        %p648 = pneg %p290
        %p649 = pneg %p287
        %p650 = pneg %p311
        %p651 = pneg %p308
        %p652 = pneg %p332
        %p653 = pneg %p329
        %p654 = pneg %p353
        %p655 = pneg %p350
        %p656 = pneg %p374
        %p657 = pneg %p371
        %p658 = pneg %p402
        %p659 = pneg %p399
        %s660 = sand.u32 %s389, 1
        %s661 = scalar_lea.sflag [#allocation7], %s660
        %s662 = sand.u32 %s389, 1
        %s663 = smul.addr %s662, 16
        %s664 = scalar_lea.vmem [#allocation17], %s663
        %p665 = scmp.lt.s32.totalorder %s39, 1
        %s666 = scalar_select %p665, %s39, 1
        %s667 = smul.addr %s666, 4
        %s668 = smul.addr %s667, 8
        %s669 = scalar_lea.vmem %s0, %s668
        %s670 = smul.u32 2, %s40
        %s671 = smul.u32 2, %s40
        %p672 = scmp.lt.s32.totalorder %s39, 1
        %s673 = scalar_select %p672, %s39, 1
        %p674 = scmp.lt.s32.totalorder %s671, 3
        %s675 = scalar_select %p674, %s671, 3
        %s676 = smul.addr %s673, 4
        %s677 = sadd.s32 %s675, %s676
        %s678 = smul.addr %s677, 8
        %s679 = scalar_lea.vmem %s2, %s678
        %s680 = smul.u32 2, %s40
        %s681 = smul.u32 2, %s40
        %p683 = scmp.eq.s32.totalorder %s40, 0
        // Predicated region
        $region109: #{tpu_custom_call.1} parent=79 // pred_check
          %p684 = pneg %p683
        $region110: #{tpu_custom_call.1} parent=79 // pred_check_branch
          %686 = sbr.rel (%p684) target = $region112
        $region111: #{tpu_custom_call.1} parent=79 // pred_region
          %v687 = vld [vmem:[%s669] sm:$0xff]
          %v688 = vld [vmem:[%s669 + $0x8] sm:$0xff]
          %v689 = vld [vmem:[%s669 + $0x10] sm:$0xff]
          %v690 = vld [vmem:[%s669 + $0x18] sm:$0xff]
          %v691 = vld [vmem:[#allocation8] sm:$0x1]
          %v692 = vld [vmem:[#allocation10] sm:$0x1]
          %693 = vadd.xlane.f32.xlu0 %v687
          %v694 = vpop.xlane.xlu0 %693
          %695 = vadd.xlane.f32.xlu0 %v688
          %v696 = vpop.xlane.xlu0 %695
          %697 = vadd.xlane.f32.xlu0 %v689
          %v698 = vpop.xlane.xlu0 %697
          %699 = vadd.xlane.f32.xlu0 %v690
          %v700 = vpop.xlane.xlu0 %699
          %v701 = vrcp.pop 128.0
          %v702 = vmul.f32 128.0, %v701
          %v703 = vsub.f32 1.0, %v702
          %v704 = vmul.f32 %v701, %v703
          %v705 = vadd.f32 %v701, %v704
          %vm706 = vweird.f32 %v701
          %v707 = vsel %vm706, %v701, %v705
          %v708 = vmul.f32 %v694, %v707
          %v709 = vmul.f32 %v696, %v707
          %v710 = vmul.f32 %v698, %v707
          %v711 = vmul.f32 %v700, %v707
          %v712 = vsub.f32 %v687, %v708
          %v713 = vsub.f32 %v688, %v709
          %v714 = vsub.f32 %v689, %v710
          %v715 = vsub.f32 %v690, %v711
          %v716 = vmul.f32 %v712, %v712
          %v717 = vmul.f32 %v713, %v713
          %v718 = vmul.f32 %v714, %v714
          %v719 = vmul.f32 %v715, %v715
          %720 = vadd.xlane.f32.xlu0 %v716
          %v721 = vpop.xlane.xlu0 %720
          %722 = vadd.xlane.f32.xlu0 %v717
          %v723 = vpop.xlane.xlu0 %722
          %724 = vadd.xlane.f32.xlu0 %v718
          %v725 = vpop.xlane.xlu0 %724
          %726 = vadd.xlane.f32.xlu0 %v719
          %v727 = vpop.xlane.xlu0 %726
          %v728 = vmul.f32 %v721, %v707
          %v729 = vmul.f32 %v723, %v707
          %v730 = vmul.f32 %v725, %v707
          %v731 = vmul.f32 %v727, %v707
          %v732 = vadd.f32 %v728, 1e-05
          %v733 = vadd.f32 %v729, 1e-05
          %v734 = vadd.f32 %v730, 1e-05
          %v735 = vadd.f32 %v731, 1e-05
          %v736 = vrsqrt.pop %v732
          %v737 = vmul.f32 %v736, %v732
          %v738 = vmul.f32 %v737, %v736
          %v739 = vmul.f32 0.5, %v738
          %v740 = vsub.f32 1.5, %v739
          %v741 = vmul.f32 %v736, %v740
          %vm742 = vweird.f32 %v732
          %vm743 = vweird.f32 %v736
          %vm744 = vmor %vm742, %vm743
          %v745 = vsel %vm744, %v736, %v741
          %v746 = vrsqrt.pop %v733
          %v747 = vmul.f32 %v746, %v733
          %v748 = vmul.f32 %v747, %v746
          %v749 = vmul.f32 0.5, %v748
          %v750 = vsub.f32 1.5, %v749
          %v751 = vmul.f32 %v746, %v750
          %vm752 = vweird.f32 %v733
          %vm753 = vweird.f32 %v746
          %vm754 = vmor %vm752, %vm753
          %v755 = vsel %vm754, %v746, %v751
          %v756 = vrsqrt.pop %v734
          %v757 = vmul.f32 %v756, %v734
          %v758 = vmul.f32 %v757, %v756
          %v759 = vmul.f32 0.5, %v758
          %v760 = vsub.f32 1.5, %v759
          %v761 = vmul.f32 %v756, %v760
          %vm762 = vweird.f32 %v734
          %vm763 = vweird.f32 %v756
          %vm764 = vmor %vm762, %vm763
          %v765 = vsel %vm764, %v756, %v761
          %v766 = vrsqrt.pop %v735
          %v767 = vmul.f32 %v766, %v735
          %v768 = vmul.f32 %v767, %v766
          %v769 = vmul.f32 0.5, %v768
          %v770 = vsub.f32 1.5, %v769
          %v771 = vmul.f32 %v766, %v770
          %vm772 = vweird.f32 %v735
          %vm773 = vweird.f32 %v766
          %vm774 = vmor %vm772, %vm773
          %v775 = vsel %vm774, %v766, %v771
          %v776 = vmul.f32 %v712, %v745
          %v777 = vmul.f32 %v713, %v755
          %v778 = vmul.f32 %v714, %v765
          %v779 = vmul.f32 %v715, %v775
          %v781 = vperm.slane %v691, 0
          %v783 = vmul.f32 %v776, %v781
          %v784 = vmul.f32 %v777, %v781
          %v785 = vmul.f32 %v778, %v781
          %v786 = vmul.f32 %v779, %v781
          %v788 = vperm.slane %v692, 0
          %v790 = vadd.f32 %v783, %v788
          %v791 = vadd.f32 %v784, %v788
          %v792 = vadd.f32 %v785, %v788
          %v793 = vadd.f32 %v786, %v788
          %v794 = vpack.c.bf16 %v791, %v790
          %v795 = vpack.c.bf16 %v793, %v792
          %v796 = vld [vmem:[#allocation11 + $0x4] sm:$0xff]
          %v797 = vld [vmem:[#allocation11 + $0x10] sm:$0xff]
          %v798 = vld [vmem:[#allocation11 + $0x1c] sm:$0xff]
          %v799 = vld [vmem:[#allocation11 + $0x28] sm:$0xff]
          %v800 = vld [vmem:[#allocation11 + $0x34] sm:$0xff]
          %v801 = vld [vmem:[#allocation11 + $0x40] sm:$0xff]
          %v802 = vld [vmem:[#allocation11 + $0x4c] sm:$0xff]
          %v803 = vld [vmem:[#allocation11 + $0x58] sm:$0xff]
          %v804 = vld [vmem:[#allocation11 + $0x64] sm:$0xff]
          %v805 = vld [vmem:[#allocation11 + $0x70] sm:$0xff]
          %v806 = vld [vmem:[#allocation11 + $0x7c] sm:$0xff]
          %v807 = vld [vmem:[#allocation11 + $0x88] sm:$0xff]
          %v808 = vld [vmem:[#allocation11 + $0x94] sm:$0xff]
          %v809 = vld [vmem:[#allocation11 + $0xa0] sm:$0xff]
          %v810 = vld [vmem:[#allocation11 + $0xac] sm:$0xff]
          %v811 = vld [vmem:[#allocation11 + $0xb8] sm:$0xff]
          %v812 = vld [vmem:[%s6 + $0x1] sm:$0x3]
          %v814 = vperm.slane %v812, 0
          %v815 = vperm.slane %v812, 1
          %v834 = vunpack.c.l.b16 %v796
          %v835 = vunpack.c.h.b16 %v796
          %v836 = vunpack.c.l.b16 %v797
          %v837 = vunpack.c.h.b16 %v797
          %v838 = vunpack.c.l.b16 %v798
          %v839 = vunpack.c.h.b16 %v798
          %v840 = vunpack.c.l.b16 %v799
          %v841 = vunpack.c.h.b16 %v799
          %v842 = vunpack.c.l.b16 %v800
          %v843 = vunpack.c.h.b16 %v800
          %v844 = vunpack.c.l.b16 %v801
          %v845 = vunpack.c.h.b16 %v801
          %v846 = vunpack.c.l.b16 %v802
          %v847 = vunpack.c.h.b16 %v802
          %v848 = vunpack.c.l.b16 %v803
          %v849 = vunpack.c.h.b16 %v803
          %v850 = vunpack.c.l.b16 %v804
          %v851 = vunpack.c.h.b16 %v804
          %v852 = vunpack.c.l.b16 %v805
          %v853 = vunpack.c.h.b16 %v805
          %v854 = vunpack.c.l.b16 %v806
          %v855 = vunpack.c.h.b16 %v806
          %v856 = vunpack.c.l.b16 %v807
          %v857 = vunpack.c.h.b16 %v807
          %v858 = vunpack.c.l.b16 %v808
          %v859 = vunpack.c.h.b16 %v808
          %v860 = vunpack.c.l.b16 %v809
          %v861 = vunpack.c.h.b16 %v809
          %v862 = vunpack.c.l.b16 %v810
          %v863 = vunpack.c.h.b16 %v810
          %v864 = vunpack.c.l.b16 %v811
          %v865 = vunpack.c.h.b16 %v811
          %v866 = vpack.c.b16 %v836, %v834
          %v867 = vpack.c.b16 %v837, %v835
          %v868 = vpack.c.b16 %v840, %v838
          %v869 = vpack.c.b16 %v841, %v839
          %v870 = vpack.c.b16 %v844, %v842
          %v871 = vpack.c.b16 %v845, %v843
          %v872 = vpack.c.b16 %v848, %v846
          %v873 = vpack.c.b16 %v849, %v847
          %v874 = vpack.c.b16 %v852, %v850
          %v875 = vpack.c.b16 %v853, %v851
          %v876 = vpack.c.b16 %v856, %v854
          %v877 = vpack.c.b16 %v857, %v855
          %v878 = vpack.c.b16 %v860, %v858
          %v879 = vpack.c.b16 %v861, %v859
          %v880 = vpack.c.b16 %v864, %v862
          %v881 = vpack.c.b16 %v865, %v863
          %898 = vmatpush.bf16.msra.mxu0 %v880
          %899 = vmatpush.bf16.msra.mxu0 %v878
          %900 = vmatpush.bf16.msra.mxu0 %v876
          %901 = vmatpush.bf16.msra.mxu0 %v874
          %902 = vmatpush.bf16.msra.mxu0 %v872
          %903 = vmatpush.bf16.msra.mxu0 %v870
          %904 = vmatpush.bf16.msra.mxu0 %v868
          %905 = vmatpush.bf16.msra.mxu0 %v866
          %906 = vmatmul.bf16.gmra.mxu0 %v794
          %v907 = vpop.f32.mrf.mxu0
          %v908 = vadd.f32 %v814, %v907
          %v909 = vpop.f32.mrf.mxu0
          %v910 = vadd.f32 %v814, %v909
          %911 = vmatmul.bf16.gmra.mxu0 %v795
          %v912 = vpop.f32.mrf.mxu0
          %v913 = vadd.f32 %v814, %v912
          %v914 = vpop.f32.mrf.mxu0
          %v915 = vadd.f32 %v814, %v914
          %916 = vdwg.mxu0
          %917 = vmatpush.bf16.msra.mxu0 %v881
          %918 = vmatpush.bf16.msra.mxu0 %v879
          %919 = vmatpush.bf16.msra.mxu0 %v877
          %920 = vmatpush.bf16.msra.mxu0 %v875
          %921 = vmatpush.bf16.msra.mxu0 %v873
          %922 = vmatpush.bf16.msra.mxu0 %v871
          %923 = vmatpush.bf16.msra.mxu0 %v869
          %924 = vmatpush.bf16.msra.mxu0 %v867
          %925 = vmatmul.bf16.gmra.mxu0 %v794
          %v926 = vpop.f32.mrf.mxu0
          %v927 = vadd.f32 %v815, %v926
          %v928 = vpop.f32.mrf.mxu0
          %v929 = vadd.f32 %v815, %v928
          %930 = vmatmul.bf16.gmra.mxu0 %v795
          %v931 = vpop.f32.mrf.mxu0
          %v932 = vadd.f32 %v815, %v931
          %v933 = vpop.f32.mrf.mxu0
          %v934 = vadd.f32 %v815, %v933
          %935 = vdwg.mxu0
          %v936 = vpack.c.bf16 %v908, %v908
          %v937 = vpack.c.bf16 %v910, %v910
          %v938 = vpack.c.bf16 %v913, %v913
          %v939 = vpack.c.bf16 %v915, %v915
          %940 = vst [vmem:[#allocation2] sm:$0xf] %v936
          %941 = vst [vmem:[#allocation2 + $0x4] sm:$0xf] %v937
          %942 = vst [vmem:[#allocation2 + $0x8] sm:$0xf] %v938
          %943 = vst [vmem:[#allocation2 + $0xc] sm:$0xf] %v939
          %v944 = vpack.c.bf16 %v927, %v927
          %v945 = vpack.c.bf16 %v929, %v929
          %v946 = vpack.c.bf16 %v932, %v932
          %v947 = vpack.c.bf16 %v934, %v934
          %948 = vst [vmem:[#allocation3] sm:$0xf] %v944
          %949 = vst [vmem:[#allocation3 + $0x4] sm:$0xf] %v945
          %950 = vst [vmem:[#allocation3 + $0x8] sm:$0xf] %v946
          %951 = vst [vmem:[#allocation3 + $0xc] sm:$0xf] %v947
        $region112: #{tpu_custom_call.1} parent=79 // pred_fallthru
          _
        %s952 = smul.u32 %s40, 16
        %s953 = scalar_lea.vmem %s669, %s952
        %v954 = vld [vmem:[%s953] sm:$0xff]
        %v955 = vld [vmem:[%s953 + $0x8] sm:$0xff]
        %v956 = vld [vmem:[#allocation8] sm:$0x1]
        %v957 = vld [vmem:[#allocation10] sm:$0x1]
        %958 = vadd.xlane.f32.xlu0 %v954
        %v959 = vpop.xlane.xlu0 %958
        %960 = vadd.xlane.f32.xlu0 %v955
        %v961 = vpop.xlane.xlu0 %960
        %v962 = vrcp.pop 128.0
        %v963 = vmul.f32 128.0, %v962
        %v964 = vsub.f32 1.0, %v963
        %v965 = vmul.f32 %v962, %v964
        %v966 = vadd.f32 %v962, %v965
        %vm967 = vweird.f32 %v962
        %v968 = vsel %vm967, %v962, %v966
        %v969 = vmul.f32 %v959, %v968
        %v970 = vmul.f32 %v961, %v968
        %v971 = vsub.f32 %v954, %v969
        %v972 = vsub.f32 %v955, %v970
        %v973 = vmul.f32 %v971, %v971
        %v974 = vmul.f32 %v972, %v972
        %975 = vadd.xlane.f32.xlu0 %v973
        %v976 = vpop.xlane.xlu0 %975
        %977 = vadd.xlane.f32.xlu0 %v974
        %v978 = vpop.xlane.xlu0 %977
        %v979 = vmul.f32 %v976, %v968
        %v980 = vmul.f32 %v978, %v968
        %v981 = vadd.f32 %v979, 1e-05
        %v982 = vadd.f32 %v980, 1e-05
        %v983 = vrsqrt.pop %v981
        %v984 = vmul.f32 %v983, %v981
        %v985 = vmul.f32 %v984, %v983
        %v986 = vmul.f32 0.5, %v985
        %v987 = vsub.f32 1.5, %v986
        %v988 = vmul.f32 %v983, %v987
        %vm989 = vweird.f32 %v981
        %vm990 = vweird.f32 %v983
        %vm991 = vmor %vm989, %vm990
        %v992 = vsel %vm991, %v983, %v988
        %v993 = vrsqrt.pop %v982
        %v994 = vmul.f32 %v993, %v982
        %v995 = vmul.f32 %v994, %v993
        %v996 = vmul.f32 0.5, %v995
        %v997 = vsub.f32 1.5, %v996
        %v998 = vmul.f32 %v993, %v997
        %vm999 = vweird.f32 %v982
        %vm1000 = vweird.f32 %v993
        %vm1001 = vmor %vm999, %vm1000
        %v1002 = vsel %vm1001, %v993, %v998
        %v1003 = vmul.f32 %v971, %v992
        %v1004 = vmul.f32 %v972, %v1002
        %v1006 = vperm.slane %v956, 0
        %v1008 = vmul.f32 %v1003, %v1006
        %v1009 = vmul.f32 %v1004, %v1006
        %v1011 = vperm.slane %v957, 0
        %v1013 = vadd.f32 %v1008, %v1011
        %v1014 = vadd.f32 %v1009, %v1011
        %v1015 = vpack.c.bf16 %v1014, %v1013
        %v1016 = vld [vmem:[#allocation11] sm:$0xf]
        %v1017 = vld [vmem:[#allocation11 + $0xc] sm:$0xf]
        %v1018 = vld [vmem:[#allocation11 + $0x18] sm:$0xf]
        %v1019 = vld [vmem:[#allocation11 + $0x24] sm:$0xf]
        %v1020 = vld [vmem:[#allocation11 + $0x30] sm:$0xf]
        %v1021 = vld [vmem:[#allocation11 + $0x3c] sm:$0xf]
        %v1022 = vld [vmem:[#allocation11 + $0x48] sm:$0xf]
        %v1023 = vld [vmem:[#allocation11 + $0x54] sm:$0xf]
        %v1024 = vld [vmem:[#allocation11 + $0x60] sm:$0xf]
        %v1025 = vld [vmem:[#allocation11 + $0x6c] sm:$0xf]
        %v1026 = vld [vmem:[#allocation11 + $0x78] sm:$0xf]
        %v1027 = vld [vmem:[#allocation11 + $0x84] sm:$0xf]
        %v1028 = vld [vmem:[#allocation11 + $0x90] sm:$0xf]
        %v1029 = vld [vmem:[#allocation11 + $0x9c] sm:$0xf]
        %v1030 = vld [vmem:[#allocation11 + $0xa8] sm:$0xf]
        %v1031 = vld [vmem:[#allocation11 + $0xb4] sm:$0xf]
        %v1032 = vld [vmem:[%s6] sm:$0x1]
        %v1034 = vperm.slane %v1032, 0
        %v1052 = vunpack.c.l.b16 %v1016
        %v1053 = vunpack.c.l.b16 %v1017
        %v1054 = vunpack.c.l.b16 %v1018
        %v1055 = vunpack.c.l.b16 %v1019
        %v1056 = vunpack.c.l.b16 %v1020
        %v1057 = vunpack.c.l.b16 %v1021
        %v1058 = vunpack.c.l.b16 %v1022
        %v1059 = vunpack.c.l.b16 %v1023
        %v1060 = vunpack.c.l.b16 %v1024
        %v1061 = vunpack.c.l.b16 %v1025
        %v1062 = vunpack.c.l.b16 %v1026
        %v1063 = vunpack.c.l.b16 %v1027
        %v1064 = vunpack.c.l.b16 %v1028
        %v1065 = vunpack.c.l.b16 %v1029
        %v1066 = vunpack.c.l.b16 %v1030
        %v1067 = vunpack.c.l.b16 %v1031
        %v1068 = vpack.c.b16 %v1053, %v1052
        %v1069 = vpack.c.b16 %v1055, %v1054
        %v1070 = vpack.c.b16 %v1057, %v1056
        %v1071 = vpack.c.b16 %v1059, %v1058
        %v1072 = vpack.c.b16 %v1061, %v1060
        %v1073 = vpack.c.b16 %v1063, %v1062
        %v1074 = vpack.c.b16 %v1065, %v1064
        %v1075 = vpack.c.b16 %v1067, %v1066
        %1084 = vmatpush.bf16.msra.mxu0 %v1075
        %1085 = vmatpush.bf16.msra.mxu0 %v1074
        %1086 = vmatpush.bf16.msra.mxu0 %v1073
        %1087 = vmatpush.bf16.msra.mxu0 %v1072
        %1088 = vmatpush.bf16.msra.mxu0 %v1071
        %1089 = vmatpush.bf16.msra.mxu0 %v1070
        %1090 = vmatpush.bf16.msra.mxu0 %v1069
        %1091 = vmatpush.bf16.msra.mxu0 %v1068
        %1092 = vmatmul.bf16.gmra.mxu0 %v1015
        %v1093 = vpop.f32.mrf.mxu0
        %v1094 = vadd.f32 %v1034, %v1093
        %v1095 = vpop.f32.mrf.mxu0
        %v1096 = vadd.f32 %v1034, %v1095
        %1097 = vdwg.mxu0
        %v1098 = vmul.f32 %v1094, 0.17677669
        %v1099 = vmul.f32 %v1096, 0.17677669
        %v1100 = vpack.c.bf16 %v1098, %v1098
        %v1101 = vpack.c.bf16 %v1099, %v1099
        %v1102 = vlaneseq
        %v1103 = vshrl.u32 %v1102, 7
        %v1104 = vadd.s32 %v1103, 8
        %v1105 = vstv %s952
        %v1106 = vadd.s32 %v1105, %v1103
        %v1107 = vadd.s32 %v1105, %v1104
        %v1108 = vlaneseq
        %v1109 = vand.u32 %v1108, 127
        %v1110 = vld [vmem:[%s573] sm:$0xff]
        %v1111 = vld [vmem:[%s573 + $0x8] sm:$0xff]
        %vm1112 = vcmp.le.s32.totalorder %v1109, %v1106
        %vm1113 = vcmp.le.s32.totalorder %v1109, %v1107
        %v1114 = vsel %vm1112, 0.0, -1e+09
        %v1115 = vsel %vm1113, 0.0, -1e+09
        %v1116 = vadd.f32 %v1110, %v1114
        %v1117 = vadd.f32 %v1111, %v1115
        %v1118 = vld [vmem:[#allocation2] sm:$0xf]
        %v1119 = vld [vmem:[#allocation2 + $0x4] sm:$0xf]
        %v1120 = vld [vmem:[#allocation2 + $0x8] sm:$0xf]
        %v1121 = vld [vmem:[#allocation2 + $0xc] sm:$0xf]
        %v1124 = vunpack.c.l.b16 %v1100
        %v1125 = vunpack.c.l.b16 %v1101
        %v1126 = vpack.c.b16 %v1125, %v1124
        %v1131 = vunpack.c.l.b16 %v1118
        %v1132 = vunpack.c.l.b16 %v1119
        %v1133 = vunpack.c.l.b16 %v1120
        %v1134 = vunpack.c.l.b16 %v1121
        %v1135 = vpack.c.b16 %v1132, %v1131
        %v1136 = vpack.c.b16 %v1134, %v1133
        %vm1137 = vcmask 261120
        %v1139 = vsel %vm1137, %v1126, 0
        %v1142 = vsel %vm1137, %v1135, 0
        %v1145 = vsel %vm1137, %v1136, 0
        %1147 = vmatpush.bf16.xpose.msra.mxu0 0
        %1148 = vmatpush.bf16.xpose.msra.mxu0 0
        %1149 = vmatpush.bf16.xpose.msra.mxu0 0
        %1150 = vmatpush.bf16.xpose.msra.mxu0 0
        %1151 = vmatpush.bf16.xpose.msra.mxu0 0
        %1152 = vmatpush.bf16.xpose.msra.mxu0 0
        %1153 = vmatpush.bf16.xpose.msra.mxu0 %v1145
        %1154 = vmatpush.bf16.xpose.msra.mxu0 %v1142
        %1155 = vmatmul.bf16.gmra.mxu0 %v1139
        %v1156 = vpop.f32.mrf.mxu0
        %v1157 = vadd.f32 %v1116, %v1156
        %v1158 = vpop.f32.mrf.mxu0
        %v1159 = vadd.f32 %v1117, %v1158
        %1160 = vdwg.mxu0
        %v1161 = vsel %vm1137, %v1157, -inf
        %1162 = vmax.xlane.f32.xlu0 %v1161
        %v1163 = vpop.xlane.xlu0 %1162
        %v1164 = vsel %vm1137, %v1159, -inf
        %1165 = vmax.xlane.f32.xlu0 %v1164
        %v1166 = vpop.xlane.xlu0 %1165
        %v1167 = vsub.f32 %v1157, %v1163
        %v1168 = vsub.f32 %v1159, %v1166
        %v1169 = vpack.c.bf16 %v1168, %v1167
        %v1170 = vunpack.c.l.bf16 %v1169
        %v1171 = vunpack.c.h.bf16 %v1169
        %v1172 = vmul.f32 %v1170, 1.442695
        %v1173 = vpow.pop %v1172
        %v1174 = vmul.f32 %v1171, 1.442695
        %v1175 = vpow.pop %v1174
        %v1176 = vpack.c.bf16 %v1175, %v1173
        %v1177 = vunpack.c.l.bf16 %v1176
        %v1178 = vunpack.c.h.bf16 %v1176
        %v1179 = vsel %vm1137, %v1177, 0.0
        %1180 = vadd.xlane.f32.xlu0 %v1179
        %v1181 = vpop.xlane.xlu0 %1180
        %v1182 = vsel %vm1137, %v1178, 0.0
        %1183 = vadd.xlane.f32.xlu0 %v1182
        %v1184 = vpop.xlane.xlu0 %1183
        %v1185 = vld [vmem:[#allocation3] sm:$0xf]
        %v1186 = vld [vmem:[#allocation3 + $0x4] sm:$0xf]
        %v1187 = vld [vmem:[#allocation3 + $0x8] sm:$0xf]
        %v1188 = vld [vmem:[#allocation3 + $0xc] sm:$0xf]
        %v1193 = vunpack.c.l.b16 %v1185
        %v1194 = vunpack.c.l.b16 %v1186
        %v1195 = vunpack.c.l.b16 %v1187
        %v1196 = vunpack.c.l.b16 %v1188
        %v1197 = vpack.c.b16 %v1194, %v1193
        %v1198 = vpack.c.b16 %v1196, %v1195
        %v1202 = vsel %vm1137, %v1176, 0
        %1204 = vmatpush.bf16.msra.mxu0 0
        %1205 = vmatpush.bf16.msra.mxu0 0
        %1206 = vmatpush.bf16.msra.mxu0 0
        %1207 = vmatpush.bf16.msra.mxu0 0
        %1208 = vmatpush.bf16.msra.mxu0 0
        %1209 = vmatpush.bf16.msra.mxu0 0
        %1210 = vmatpush.bf16.msra.mxu0 %v1198
        %1211 = vmatpush.bf16.msra.mxu0 %v1197
        %1212 = vmatmul.bf16.gmra.mxu0 %v1202
        %v1213 = vpop.f32.mrf.mxu0
        %v1214 = vadd.f32 0.0, %v1213
        %v1215 = vpop.f32.mrf.mxu0
        %v1216 = vadd.f32 0.0, %v1215
        %1217 = vdwg.mxu0
        %v1218 = vrcp.pop %v1181
        %v1219 = vrcp.pop %v1184
        %v1220 = vmul.f32 %v1214, %v1218
        %v1221 = vmul.f32 %v1216, %v1219
        %v1222 = vpack.c.bf16 %v1220, %v1220
        %v1223 = vpack.c.bf16 %v1221, %v1221
        %vm1224 = vcmask 257024
        %1225 = vst.msk [vmem:[#allocation4] sm:$0xf] %vm1224, %v1222
        %1226 = vst.msk [vmem:[#allocation4 + $0x4] sm:$0xf] %vm1224, %v1223
        %v1227 = vld [vmem:[#allocation2] sm:$0xf]
        %v1228 = vld [vmem:[#allocation2 + $0x4] sm:$0xf]
        %v1229 = vld [vmem:[#allocation2 + $0x8] sm:$0xf]
        %v1230 = vld [vmem:[#allocation2 + $0xc] sm:$0xf]
        %1231 = vrot.lane.b32.xlu0 %v1126, 96
        %v1232 = vpop.permute.xlu0 %1231
        %v1237 = vunpack.c.l.b16 %v1227
        %v1238 = vunpack.c.l.b16 %v1228
        %v1239 = vunpack.c.l.b16 %v1229
        %v1240 = vunpack.c.l.b16 %v1230
        %v1241 = vpack.c.b16 %v1238, %v1237
        %v1242 = vpack.c.b16 %v1240, %v1239
        %1243 = vrot.lane.b32.xlu0 %v1241, 96
        %v1244 = vpop.permute.xlu0 %1243
        %1245 = vrot.lane.b32.xlu0 %v1242, 96
        %v1246 = vpop.permute.xlu0 %1245
        %v1248 = vsel %vm1137, %v1232, 0
        %v1251 = vsel %vm1137, %v1244, 0
        %v1254 = vsel %vm1137, %v1246, 0
        %1256 = vmatpush.bf16.xpose.msra.mxu0 0
        %1257 = vmatpush.bf16.xpose.msra.mxu0 0
        %1258 = vmatpush.bf16.xpose.msra.mxu0 0
        %1259 = vmatpush.bf16.xpose.msra.mxu0 0
        %1260 = vmatpush.bf16.xpose.msra.mxu0 0
        %1261 = vmatpush.bf16.xpose.msra.mxu0 0
        %1262 = vmatpush.bf16.xpose.msra.mxu0 %v1254
        %1263 = vmatpush.bf16.xpose.msra.mxu0 %v1251
        %1264 = vmatmul.bf16.gmra.mxu0 %v1248
        %v1265 = vpop.f32.mrf.mxu0
        %v1266 = vadd.f32 %v1116, %v1265
        %v1267 = vpop.f32.mrf.mxu0
        %v1268 = vadd.f32 %v1117, %v1267
        %1269 = vdwg.mxu0
        %v1270 = vsel %vm1137, %v1266, -inf
        %1271 = vmax.xlane.f32.xlu0 %v1270
        %v1272 = vpop.xlane.xlu0 %1271
        %v1273 = vsel %vm1137, %v1268, -inf
        %1274 = vmax.xlane.f32.xlu0 %v1273
        %v1275 = vpop.xlane.xlu0 %1274
        %v1276 = vsub.f32 %v1266, %v1272
        %v1277 = vsub.f32 %v1268, %v1275
        %v1278 = vpack.c.bf16 %v1277, %v1276
        %v1279 = vunpack.c.l.bf16 %v1278
        %v1280 = vunpack.c.h.bf16 %v1278
        %v1281 = vmul.f32 %v1279, 1.442695
        %v1282 = vpow.pop %v1281
        %v1283 = vmul.f32 %v1280, 1.442695
        %v1284 = vpow.pop %v1283
        %v1285 = vpack.c.bf16 %v1284, %v1282
        %v1286 = vunpack.c.l.bf16 %v1285
        %v1287 = vunpack.c.h.bf16 %v1285
        %v1288 = vsel %vm1137, %v1286, 0.0
        %1289 = vadd.xlane.f32.xlu0 %v1288
        %v1290 = vpop.xlane.xlu0 %1289
        %v1291 = vsel %vm1137, %v1287, 0.0
        %1292 = vadd.xlane.f32.xlu0 %v1291
        %v1293 = vpop.xlane.xlu0 %1292
        %v1294 = vld [vmem:[#allocation3] sm:$0xf]
        %v1295 = vld [vmem:[#allocation3 + $0x4] sm:$0xf]
        %v1296 = vld [vmem:[#allocation3 + $0x8] sm:$0xf]
        %v1297 = vld [vmem:[#allocation3 + $0xc] sm:$0xf]
        %v1302 = vunpack.c.l.b16 %v1294
        %v1303 = vunpack.c.l.b16 %v1295
        %v1304 = vunpack.c.l.b16 %v1296
        %v1305 = vunpack.c.l.b16 %v1297
        %v1306 = vpack.c.b16 %v1303, %v1302
        %v1307 = vpack.c.b16 %v1305, %v1304
        %1308 = vrot.lane.b32.xlu0 %v1306, 96
        %v1309 = vpop.permute.xlu0 %1308
        %1310 = vrot.lane.b32.xlu0 %v1307, 96
        %v1311 = vpop.permute.xlu0 %1310
        %v1315 = vsel %vm1137, %v1285, 0
        %1317 = vmatpush.bf16.msra.mxu0 0
        %1318 = vmatpush.bf16.msra.mxu0 0
        %1319 = vmatpush.bf16.msra.mxu0 0
        %1320 = vmatpush.bf16.msra.mxu0 0
        %1321 = vmatpush.bf16.msra.mxu0 0
        %1322 = vmatpush.bf16.msra.mxu0 0
        %1323 = vmatpush.bf16.msra.mxu0 %v1311
        %1324 = vmatpush.bf16.msra.mxu0 %v1309
        %1325 = vmatmul.bf16.gmra.mxu0 %v1315
        %v1326 = vpop.f32.mrf.mxu0
        %v1327 = vadd.f32 0.0, %v1326
        %v1328 = vpop.f32.mrf.mxu0
        %v1329 = vadd.f32 0.0, %v1328
        %1330 = vdwg.mxu0
        %v1331 = vrcp.pop %v1290
        %v1332 = vrcp.pop %v1293
        %v1333 = vmul.f32 %v1327, %v1331
        %v1334 = vmul.f32 %v1329, %v1332
        %v1335 = vpack.c.bf16 %v1333, %v1333
        %v1336 = vpack.c.bf16 %v1334, %v1334
        %1339 = vrot.lane.b32.xlu0 %v1335, 32
        %v1340 = vpop.permute.xlu0 %1339
        %1341 = vrot.lane.b32.xlu0 %v1336, 32
        %v1342 = vpop.permute.xlu0 %1341
        %vm1345 = vcmask 519424
        %1346 = vst.msk [vmem:[#allocation4] sm:$0xf] %vm1345, %v1340
        %1347 = vst.msk [vmem:[#allocation4 + $0x4] sm:$0xf] %vm1345, %v1342
        %v1348 = vld [vmem:[#allocation2] sm:$0xf]
        %v1349 = vld [vmem:[#allocation2 + $0x4] sm:$0xf]
        %v1350 = vld [vmem:[#allocation2 + $0x8] sm:$0xf]
        %v1351 = vld [vmem:[#allocation2 + $0xc] sm:$0xf]
        %1352 = vrot.lane.b32.xlu0 %v1126, 64
        %v1353 = vpop.permute.xlu0 %1352
        %v1358 = vunpack.c.l.b16 %v1348
        %v1359 = vunpack.c.l.b16 %v1349
        %v1360 = vunpack.c.l.b16 %v1350
        %v1361 = vunpack.c.l.b16 %v1351
        %v1362 = vpack.c.b16 %v1359, %v1358
        %v1363 = vpack.c.b16 %v1361, %v1360
        %1364 = vrot.lane.b32.xlu0 %v1362, 64
        %v1365 = vpop.permute.xlu0 %1364
        %1366 = vrot.lane.b32.xlu0 %v1363, 64
        %v1367 = vpop.permute.xlu0 %1366
        %v1369 = vsel %vm1137, %v1353, 0
        %v1372 = vsel %vm1137, %v1365, 0
        %v1375 = vsel %vm1137, %v1367, 0
        %1377 = vmatpush.bf16.xpose.msra.mxu0 0
        %1378 = vmatpush.bf16.xpose.msra.mxu0 0
        %1379 = vmatpush.bf16.xpose.msra.mxu0 0
        %1380 = vmatpush.bf16.xpose.msra.mxu0 0
        %1381 = vmatpush.bf16.xpose.msra.mxu0 0
        %1382 = vmatpush.bf16.xpose.msra.mxu0 0
        %1383 = vmatpush.bf16.xpose.msra.mxu0 %v1375
        %1384 = vmatpush.bf16.xpose.msra.mxu0 %v1372
        %1385 = vmatmul.bf16.gmra.mxu0 %v1369
        %v1386 = vpop.f32.mrf.mxu0
        %v1387 = vadd.f32 %v1116, %v1386
        %v1388 = vpop.f32.mrf.mxu0
        %v1389 = vadd.f32 %v1117, %v1388
        %1390 = vdwg.mxu0
        %v1391 = vsel %vm1137, %v1387, -inf
        %1392 = vmax.xlane.f32.xlu0 %v1391
        %v1393 = vpop.xlane.xlu0 %1392
        %v1394 = vsel %vm1137, %v1389, -inf
        %1395 = vmax.xlane.f32.xlu0 %v1394
        %v1396 = vpop.xlane.xlu0 %1395
        %v1397 = vsub.f32 %v1387, %v1393
        %v1398 = vsub.f32 %v1389, %v1396
        %v1399 = vpack.c.bf16 %v1398, %v1397
        %v1400 = vunpack.c.l.bf16 %v1399
        %v1401 = vunpack.c.h.bf16 %v1399
        %v1402 = vmul.f32 %v1400, 1.442695
        %v1403 = vpow.pop %v1402
        %v1404 = vmul.f32 %v1401, 1.442695
        %v1405 = vpow.pop %v1404
        %v1406 = vpack.c.bf16 %v1405, %v1403
        %v1407 = vunpack.c.l.bf16 %v1406
        %v1408 = vunpack.c.h.bf16 %v1406
        %v1409 = vsel %vm1137, %v1407, 0.0
        %1410 = vadd.xlane.f32.xlu0 %v1409
        %v1411 = vpop.xlane.xlu0 %1410
        %v1412 = vsel %vm1137, %v1408, 0.0
        %1413 = vadd.xlane.f32.xlu0 %v1412
        %v1414 = vpop.xlane.xlu0 %1413
        %v1415 = vld [vmem:[#allocation3] sm:$0xf]
        %v1416 = vld [vmem:[#allocation3 + $0x4] sm:$0xf]
        %v1417 = vld [vmem:[#allocation3 + $0x8] sm:$0xf]
        %v1418 = vld [vmem:[#allocation3 + $0xc] sm:$0xf]
        %v1423 = vunpack.c.l.b16 %v1415
        %v1424 = vunpack.c.l.b16 %v1416
        %v1425 = vunpack.c.l.b16 %v1417
        %v1426 = vunpack.c.l.b16 %v1418
        %v1427 = vpack.c.b16 %v1424, %v1423
        %v1428 = vpack.c.b16 %v1426, %v1425
        %1429 = vrot.lane.b32.xlu0 %v1427, 64
        %v1430 = vpop.permute.xlu0 %1429
        %1431 = vrot.lane.b32.xlu0 %v1428, 64
        %v1432 = vpop.permute.xlu0 %1431
        %v1436 = vsel %vm1137, %v1406, 0
        %1438 = vmatpush.bf16.msra.mxu0 0
        %1439 = vmatpush.bf16.msra.mxu0 0
        %1440 = vmatpush.bf16.msra.mxu0 0
        %1441 = vmatpush.bf16.msra.mxu0 0
        %1442 = vmatpush.bf16.msra.mxu0 0
        %1443 = vmatpush.bf16.msra.mxu0 0
        %1444 = vmatpush.bf16.msra.mxu0 %v1432
        %1445 = vmatpush.bf16.msra.mxu0 %v1430
        %1446 = vmatmul.bf16.gmra.mxu0 %v1436
        %v1447 = vpop.f32.mrf.mxu0
        %v1448 = vadd.f32 0.0, %v1447
        %v1449 = vpop.f32.mrf.mxu0
        %v1450 = vadd.f32 0.0, %v1449
        %1451 = vdwg.mxu0
        %v1452 = vrcp.pop %v1411
        %v1453 = vrcp.pop %v1414
        %v1454 = vmul.f32 %v1448, %v1452
        %v1455 = vmul.f32 %v1450, %v1453
        %v1456 = vpack.c.bf16 %v1454, %v1454
        %v1457 = vpack.c.bf16 %v1455, %v1455
        %1460 = vrot.lane.b32.xlu0 %v1456, 64
        %v1461 = vpop.permute.xlu0 %1460
        %1462 = vrot.lane.b32.xlu0 %v1457, 64
        %v1463 = vpop.permute.xlu0 %1462
        %vm1466 = vcmask 781824
        %1467 = vst.msk [vmem:[#allocation4] sm:$0xf] %vm1466, %v1461
        %1468 = vst.msk [vmem:[#allocation4 + $0x4] sm:$0xf] %vm1466, %v1463
        %v1469 = vld [vmem:[#allocation2] sm:$0xf]
        %v1470 = vld [vmem:[#allocation2 + $0x4] sm:$0xf]
        %v1471 = vld [vmem:[#allocation2 + $0x8] sm:$0xf]
        %v1472 = vld [vmem:[#allocation2 + $0xc] sm:$0xf]
        %1473 = vrot.lane.b32.xlu0 %v1126, 32
        %v1474 = vpop.permute.xlu0 %1473
        %v1479 = vunpack.c.l.b16 %v1469
        %v1480 = vunpack.c.l.b16 %v1470
        %v1481 = vunpack.c.l.b16 %v1471
        %v1482 = vunpack.c.l.b16 %v1472
        %v1483 = vpack.c.b16 %v1480, %v1479
        %v1484 = vpack.c.b16 %v1482, %v1481
        %1485 = vrot.lane.b32.xlu0 %v1483, 32
        %v1486 = vpop.permute.xlu0 %1485
        %1487 = vrot.lane.b32.xlu0 %v1484, 32
        %v1488 = vpop.permute.xlu0 %1487
        %v1490 = vsel %vm1137, %v1474, 0
        %v1493 = vsel %vm1137, %v1486, 0
        %v1496 = vsel %vm1137, %v1488, 0
        %1498 = vmatpush.bf16.xpose.msra.mxu0 0
        %1499 = vmatpush.bf16.xpose.msra.mxu0 0
        %1500 = vmatpush.bf16.xpose.msra.mxu0 0
        %1501 = vmatpush.bf16.xpose.msra.mxu0 0
        %1502 = vmatpush.bf16.xpose.msra.mxu0 0
        %1503 = vmatpush.bf16.xpose.msra.mxu0 0
        %1504 = vmatpush.bf16.xpose.msra.mxu0 %v1496
        %1505 = vmatpush.bf16.xpose.msra.mxu0 %v1493
        %1506 = vmatmul.bf16.gmra.mxu0 %v1490
        %v1507 = vpop.f32.mrf.mxu0
        %v1508 = vadd.f32 %v1116, %v1507
        %v1509 = vpop.f32.mrf.mxu0
        %v1510 = vadd.f32 %v1117, %v1509
        %1511 = vdwg.mxu0
        %v1512 = vsel %vm1137, %v1508, -inf
        %1513 = vmax.xlane.f32.xlu0 %v1512
        %v1514 = vpop.xlane.xlu0 %1513
        %v1515 = vsel %vm1137, %v1510, -inf
        %1516 = vmax.xlane.f32.xlu0 %v1515
        %v1517 = vpop.xlane.xlu0 %1516
        %v1518 = vsub.f32 %v1508, %v1514
        %v1519 = vsub.f32 %v1510, %v1517
        %v1520 = vpack.c.bf16 %v1519, %v1518
        %v1521 = vunpack.c.l.bf16 %v1520
        %v1522 = vunpack.c.h.bf16 %v1520
        %v1523 = vmul.f32 %v1521, 1.442695
        %v1524 = vpow.pop %v1523
        %v1525 = vmul.f32 %v1522, 1.442695
        %v1526 = vpow.pop %v1525
        %v1527 = vpack.c.bf16 %v1526, %v1524
        %v1528 = vunpack.c.l.bf16 %v1527
        %v1529 = vunpack.c.h.bf16 %v1527
        %v1530 = vsel %vm1137, %v1528, 0.0
        %1531 = vadd.xlane.f32.xlu0 %v1530
        %v1532 = vpop.xlane.xlu0 %1531
        %v1533 = vsel %vm1137, %v1529, 0.0
        %1534 = vadd.xlane.f32.xlu0 %v1533
        %v1535 = vpop.xlane.xlu0 %1534
        %v1536 = vld [vmem:[#allocation3] sm:$0xf]
        %v1537 = vld [vmem:[#allocation3 + $0x4] sm:$0xf]
        %v1538 = vld [vmem:[#allocation3 + $0x8] sm:$0xf]
        %v1539 = vld [vmem:[#allocation3 + $0xc] sm:$0xf]
        %v1544 = vunpack.c.l.b16 %v1536
        %v1545 = vunpack.c.l.b16 %v1537
        %v1546 = vunpack.c.l.b16 %v1538
        %v1547 = vunpack.c.l.b16 %v1539
        %v1548 = vpack.c.b16 %v1545, %v1544
        %v1549 = vpack.c.b16 %v1547, %v1546
        %1550 = vrot.lane.b32.xlu0 %v1548, 32
        %v1551 = vpop.permute.xlu0 %1550
        %1552 = vrot.lane.b32.xlu0 %v1549, 32
        %v1553 = vpop.permute.xlu0 %1552
        %v1557 = vsel %vm1137, %v1527, 0
        %1559 = vmatpush.bf16.msra.mxu0 0
        %1560 = vmatpush.bf16.msra.mxu0 0
        %1561 = vmatpush.bf16.msra.mxu0 0
        %1562 = vmatpush.bf16.msra.mxu0 0
        %1563 = vmatpush.bf16.msra.mxu0 0
        %1564 = vmatpush.bf16.msra.mxu0 0
        %1565 = vmatpush.bf16.msra.mxu0 %v1553
        %1566 = vmatpush.bf16.msra.mxu0 %v1551
        %1567 = vmatmul.bf16.gmra.mxu0 %v1557
        %v1568 = vpop.f32.mrf.mxu0
        %v1569 = vadd.f32 0.0, %v1568
        %v1570 = vpop.f32.mrf.mxu0
        %v1571 = vadd.f32 0.0, %v1570
        %1572 = vdwg.mxu0
        %v1573 = vrcp.pop %v1532
        %v1574 = vrcp.pop %v1535
        %v1575 = vmul.f32 %v1569, %v1573
        %v1576 = vmul.f32 %v1571, %v1574
        %v1577 = vpack.c.bf16 %v1575, %v1575
        %v1578 = vpack.c.bf16 %v1576, %v1576
        %1581 = vrot.lane.b32.xlu0 %v1577, 96
        %v1582 = vpop.permute.xlu0 %1581
        %1583 = vrot.lane.b32.xlu0 %v1578, 96
        %v1584 = vpop.permute.xlu0 %1583
        %vm1587 = vcmask 1044224
        %1588 = vst.msk [vmem:[#allocation4] sm:$0xf] %vm1587, %v1582
        %1589 = vst.msk [vmem:[#allocation4 + $0x4] sm:$0xf] %vm1587, %v1584
        %v1590 = vld [vmem:[#allocation4] sm:$0xf]
        %v1591 = vld [vmem:[#allocation4 + $0x4] sm:$0xf]
        %v1592 = vld [vmem:[#allocation13] sm:$0xf]
        %v1593 = vld [vmem:[#allocation13 + $0x4] sm:$0xf]
        %v1594 = vld [vmem:[#allocation13 + $0x8] sm:$0xf]
        %v1595 = vld [vmem:[#allocation13 + $0xc] sm:$0xf]
        %v1596 = vld [vmem:[#allocation13 + $0x10] sm:$0xf]
        %v1597 = vld [vmem:[#allocation13 + $0x14] sm:$0xf]
        %v1598 = vld [vmem:[#allocation13 + $0x18] sm:$0xf]
        %v1599 = vld [vmem:[#allocation13 + $0x1c] sm:$0xf]
        %v1600 = vld [vmem:[#allocation13 + $0x20] sm:$0xf]
        %v1601 = vld [vmem:[#allocation13 + $0x24] sm:$0xf]
        %v1602 = vld [vmem:[#allocation13 + $0x28] sm:$0xf]
        %v1603 = vld [vmem:[#allocation13 + $0x2c] sm:$0xf]
        %v1604 = vld [vmem:[#allocation13 + $0x30] sm:$0xf]
        %v1605 = vld [vmem:[#allocation13 + $0x34] sm:$0xf]
        %v1606 = vld [vmem:[#allocation13 + $0x38] sm:$0xf]
        %v1607 = vld [vmem:[#allocation13 + $0x3c] sm:$0xf]
        %v1608 = vld [vmem:[%s8] sm:$0x1]
        %v1610 = vperm.slane %v1608, 0
        %v1614 = vunpack.c.l.b16 %v1590
        %v1615 = vunpack.c.l.b16 %v1591
        %v1616 = vpack.c.b16 %v1615, %v1614
        %v1634 = vunpack.c.l.b16 %v1592
        %v1635 = vunpack.c.l.b16 %v1593
        %v1636 = vunpack.c.l.b16 %v1594
        %v1637 = vunpack.c.l.b16 %v1595
        %v1638 = vunpack.c.l.b16 %v1596
        %v1639 = vunpack.c.l.b16 %v1597
        %v1640 = vunpack.c.l.b16 %v1598
        %v1641 = vunpack.c.l.b16 %v1599
        %v1642 = vunpack.c.l.b16 %v1600
        %v1643 = vunpack.c.l.b16 %v1601
        %v1644 = vunpack.c.l.b16 %v1602
        %v1645 = vunpack.c.l.b16 %v1603
        %v1646 = vunpack.c.l.b16 %v1604
        %v1647 = vunpack.c.l.b16 %v1605
        %v1648 = vunpack.c.l.b16 %v1606
        %v1649 = vunpack.c.l.b16 %v1607
        %v1650 = vpack.c.b16 %v1635, %v1634
        %v1651 = vpack.c.b16 %v1637, %v1636
        %v1652 = vpack.c.b16 %v1639, %v1638
        %v1653 = vpack.c.b16 %v1641, %v1640
        %v1654 = vpack.c.b16 %v1643, %v1642
        %v1655 = vpack.c.b16 %v1645, %v1644
        %v1656 = vpack.c.b16 %v1647, %v1646
        %v1657 = vpack.c.b16 %v1649, %v1648
        %1666 = vmatpush.bf16.msra.mxu0 %v1657
        %1667 = vmatpush.bf16.msra.mxu0 %v1656
        %1668 = vmatpush.bf16.msra.mxu0 %v1655
        %1669 = vmatpush.bf16.msra.mxu0 %v1654
        %1670 = vmatpush.bf16.msra.mxu0 %v1653
        %1671 = vmatpush.bf16.msra.mxu0 %v1652
        %1672 = vmatpush.bf16.msra.mxu0 %v1651
        %1673 = vmatpush.bf16.msra.mxu0 %v1650
        %1674 = vmatmul.bf16.gmra.mxu0 %v1616
        %v1675 = vpop.f32.mrf.mxu0
        %v1676 = vadd.f32 %v1610, %v1675
        %v1677 = vpop.f32.mrf.mxu0
        %v1678 = vadd.f32 %v1610, %v1677
        %1679 = vdwg.mxu0
        %v1680 = vadd.f32 %v954, %v1676
        %v1681 = vadd.f32 %v955, %v1678
        %v1682 = vld [vmem:[%s9] sm:$0x1]
        %v1683 = vld [vmem:[%s10] sm:$0x1]
        %1684 = vadd.xlane.f32.xlu0 %v1680
        %v1685 = vpop.xlane.xlu0 %1684
        %1686 = vadd.xlane.f32.xlu0 %v1681
        %v1687 = vpop.xlane.xlu0 %1686
        %v1688 = vmul.f32 %v1685, %v968
        %v1689 = vmul.f32 %v1687, %v968
        %v1690 = vsub.f32 %v1680, %v1688
        %v1691 = vsub.f32 %v1681, %v1689
        %v1692 = vmul.f32 %v1690, %v1690
        %v1693 = vmul.f32 %v1691, %v1691
        %1694 = vadd.xlane.f32.xlu0 %v1692
        %v1695 = vpop.xlane.xlu0 %1694
        %1696 = vadd.xlane.f32.xlu0 %v1693
        %v1697 = vpop.xlane.xlu0 %1696
        %v1698 = vmul.f32 %v1695, %v968
        %v1699 = vmul.f32 %v1697, %v968
        %v1700 = vadd.f32 %v1698, 1e-05
        %v1701 = vadd.f32 %v1699, 1e-05
        %v1702 = vrsqrt.pop %v1700
        %v1703 = vmul.f32 %v1702, %v1700
        %v1704 = vmul.f32 %v1703, %v1702
        %v1705 = vmul.f32 0.5, %v1704
        %v1706 = vsub.f32 1.5, %v1705
        %v1707 = vmul.f32 %v1702, %v1706
        %vm1708 = vweird.f32 %v1700
        %vm1709 = vweird.f32 %v1702
        %vm1710 = vmor %vm1708, %vm1709
        %v1711 = vsel %vm1710, %v1702, %v1707
        %v1712 = vrsqrt.pop %v1701
        %v1713 = vmul.f32 %v1712, %v1701
        %v1714 = vmul.f32 %v1713, %v1712
        %v1715 = vmul.f32 0.5, %v1714
        %v1716 = vsub.f32 1.5, %v1715
        %v1717 = vmul.f32 %v1712, %v1716
        %vm1718 = vweird.f32 %v1701
        %vm1719 = vweird.f32 %v1712
        %vm1720 = vmor %vm1718, %vm1719
        %v1721 = vsel %vm1720, %v1712, %v1717
        %v1722 = vmul.f32 %v1690, %v1711
        %v1723 = vmul.f32 %v1691, %v1721
        %v1725 = vperm.slane %v1682, 0
        %v1727 = vmul.f32 %v1722, %v1725
        %v1728 = vmul.f32 %v1723, %v1725
        %v1730 = vperm.slane %v1683, 0
        %v1732 = vadd.f32 %v1727, %v1730
        %v1733 = vadd.f32 %v1728, %v1730
        %v1734 = vpack.c.bf16 %v1733, %v1732
        %v1735 = vld [vmem:[#allocation14] sm:$0xff]
        %v1736 = vld [vmem:[#allocation14 + $0x8] sm:$0xff]
        %v1737 = vld [vmem:[#allocation14 + $0x10] sm:$0xff]
        %v1738 = vld [vmem:[#allocation14 + $0x18] sm:$0xff]
        %v1739 = vld [vmem:[#allocation14 + $0x20] sm:$0xff]
        %v1740 = vld [vmem:[#allocation14 + $0x28] sm:$0xff]
        %v1741 = vld [vmem:[#allocation14 + $0x30] sm:$0xff]
        %v1742 = vld [vmem:[#allocation14 + $0x38] sm:$0xff]
        %v1743 = vld [vmem:[#allocation14 + $0x40] sm:$0xff]
        %v1744 = vld [vmem:[#allocation14 + $0x48] sm:$0xff]
        %v1745 = vld [vmem:[#allocation14 + $0x50] sm:$0xff]
        %v1746 = vld [vmem:[#allocation14 + $0x58] sm:$0xff]
        %v1747 = vld [vmem:[#allocation14 + $0x60] sm:$0xff]
        %v1748 = vld [vmem:[#allocation14 + $0x68] sm:$0xff]
        %v1749 = vld [vmem:[#allocation14 + $0x70] sm:$0xff]
        %v1750 = vld [vmem:[#allocation14 + $0x78] sm:$0xff]
        %v1751 = vld [vmem:[#allocation14 + $0x80] sm:$0xff]
        %v1752 = vld [vmem:[#allocation14 + $0x88] sm:$0xff]
        %v1753 = vld [vmem:[#allocation14 + $0x90] sm:$0xff]
        %v1754 = vld [vmem:[#allocation14 + $0x98] sm:$0xff]
        %v1755 = vld [vmem:[#allocation14 + $0xa0] sm:$0xff]
        %v1756 = vld [vmem:[#allocation14 + $0xa8] sm:$0xff]
        %v1757 = vld [vmem:[#allocation14 + $0xb0] sm:$0xff]
        %v1758 = vld [vmem:[#allocation14 + $0xb8] sm:$0xff]
        %v1759 = vld [vmem:[#allocation14 + $0xc0] sm:$0xff]
        %v1760 = vld [vmem:[#allocation14 + $0xc8] sm:$0xff]
        %v1761 = vld [vmem:[#allocation14 + $0xd0] sm:$0xff]
        %v1762 = vld [vmem:[#allocation14 + $0xd8] sm:$0xff]
        %v1763 = vld [vmem:[#allocation14 + $0xe0] sm:$0xff]
        %v1764 = vld [vmem:[#allocation14 + $0xe8] sm:$0xff]
        %v1765 = vld [vmem:[#allocation14 + $0xf0] sm:$0xff]
        %v1766 = vld [vmem:[#allocation14 + $0xf8] sm:$0xff]
        %v1767 = vld [vmem:[%s12] sm:$0xf]
        %v1769 = vperm.slane %v1767, 0
        %v1770 = vperm.slane %v1767, 1
        %v1771 = vperm.slane %v1767, 2
        %v1772 = vperm.slane %v1767, 3
        %v1809 = vunpack.c.l.b16 %v1735
        %v1810 = vunpack.c.h.b16 %v1735
        %v1811 = vunpack.c.l.b16 %v1736
        %v1812 = vunpack.c.h.b16 %v1736
        %v1813 = vunpack.c.l.b16 %v1737
        %v1814 = vunpack.c.h.b16 %v1737
        %v1815 = vunpack.c.l.b16 %v1738
        %v1816 = vunpack.c.h.b16 %v1738
        %v1817 = vunpack.c.l.b16 %v1739
        %v1818 = vunpack.c.h.b16 %v1739
        %v1819 = vunpack.c.l.b16 %v1740
        %v1820 = vunpack.c.h.b16 %v1740
        %v1821 = vunpack.c.l.b16 %v1741
        %v1822 = vunpack.c.h.b16 %v1741
        %v1823 = vunpack.c.l.b16 %v1742
        %v1824 = vunpack.c.h.b16 %v1742
        %v1825 = vunpack.c.l.b16 %v1743
        %v1826 = vunpack.c.h.b16 %v1743
        %v1827 = vunpack.c.l.b16 %v1744
        %v1828 = vunpack.c.h.b16 %v1744
        %v1829 = vunpack.c.l.b16 %v1745
        %v1830 = vunpack.c.h.b16 %v1745
        %v1831 = vunpack.c.l.b16 %v1746
        %v1832 = vunpack.c.h.b16 %v1746
        %v1833 = vunpack.c.l.b16 %v1747
        %v1834 = vunpack.c.h.b16 %v1747
        %v1835 = vunpack.c.l.b16 %v1748
        %v1836 = vunpack.c.h.b16 %v1748
        %v1837 = vunpack.c.l.b16 %v1749
        %v1838 = vunpack.c.h.b16 %v1749
        %v1839 = vunpack.c.l.b16 %v1750
        %v1840 = vunpack.c.h.b16 %v1750
        %v1841 = vunpack.c.l.b16 %v1751
        %v1842 = vunpack.c.h.b16 %v1751
        %v1843 = vunpack.c.l.b16 %v1752
        %v1844 = vunpack.c.h.b16 %v1752
        %v1845 = vunpack.c.l.b16 %v1753
        %v1846 = vunpack.c.h.b16 %v1753
        %v1847 = vunpack.c.l.b16 %v1754
        %v1848 = vunpack.c.h.b16 %v1754
        %v1849 = vunpack.c.l.b16 %v1755
        %v1850 = vunpack.c.h.b16 %v1755
        %v1851 = vunpack.c.l.b16 %v1756
        %v1852 = vunpack.c.h.b16 %v1756
        %v1853 = vunpack.c.l.b16 %v1757
        %v1854 = vunpack.c.h.b16 %v1757
        %v1855 = vunpack.c.l.b16 %v1758
        %v1856 = vunpack.c.h.b16 %v1758
        %v1857 = vunpack.c.l.b16 %v1759
        %v1858 = vunpack.c.h.b16 %v1759
        %v1859 = vunpack.c.l.b16 %v1760
        %v1860 = vunpack.c.h.b16 %v1760
        %v1861 = vunpack.c.l.b16 %v1761
        %v1862 = vunpack.c.h.b16 %v1761
        %v1863 = vunpack.c.l.b16 %v1762
        %v1864 = vunpack.c.h.b16 %v1762
        %v1865 = vunpack.c.l.b16 %v1763
        %v1866 = vunpack.c.h.b16 %v1763
        %v1867 = vunpack.c.l.b16 %v1764
        %v1868 = vunpack.c.h.b16 %v1764
        %v1869 = vunpack.c.l.b16 %v1765
        %v1870 = vunpack.c.h.b16 %v1765
        %v1871 = vunpack.c.l.b16 %v1766
        %v1872 = vunpack.c.h.b16 %v1766
        %v1873 = vpack.c.b16 %v1813, %v1809
        %v1874 = vpack.c.b16 %v1814, %v1810
        %v1875 = vpack.c.b16 %v1815, %v1811
        %v1876 = vpack.c.b16 %v1816, %v1812
        %v1877 = vpack.c.b16 %v1821, %v1817
        %v1878 = vpack.c.b16 %v1822, %v1818
        %v1879 = vpack.c.b16 %v1823, %v1819
        %v1880 = vpack.c.b16 %v1824, %v1820
        %v1881 = vpack.c.b16 %v1829, %v1825
        %v1882 = vpack.c.b16 %v1830, %v1826
        %v1883 = vpack.c.b16 %v1831, %v1827
        %v1884 = vpack.c.b16 %v1832, %v1828
        %v1885 = vpack.c.b16 %v1837, %v1833
        %v1886 = vpack.c.b16 %v1838, %v1834
        %v1887 = vpack.c.b16 %v1839, %v1835
        %v1888 = vpack.c.b16 %v1840, %v1836
        %v1889 = vpack.c.b16 %v1845, %v1841
        %v1890 = vpack.c.b16 %v1846, %v1842
        %v1891 = vpack.c.b16 %v1847, %v1843
        %v1892 = vpack.c.b16 %v1848, %v1844
        %v1893 = vpack.c.b16 %v1853, %v1849
        %v1894 = vpack.c.b16 %v1854, %v1850
        %v1895 = vpack.c.b16 %v1855, %v1851
        %v1896 = vpack.c.b16 %v1856, %v1852
        %v1897 = vpack.c.b16 %v1861, %v1857
        %v1898 = vpack.c.b16 %v1862, %v1858
        %v1899 = vpack.c.b16 %v1863, %v1859
        %v1900 = vpack.c.b16 %v1864, %v1860
        %v1901 = vpack.c.b16 %v1869, %v1865
        %v1902 = vpack.c.b16 %v1870, %v1866
        %v1903 = vpack.c.b16 %v1871, %v1867
        %v1904 = vpack.c.b16 %v1872, %v1868
        %1937 = vmatpush.bf16.msra.mxu0 %v1901
        %1938 = vmatpush.bf16.msra.mxu0 %v1897
        %1939 = vmatpush.bf16.msra.mxu0 %v1893
        %1940 = vmatpush.bf16.msra.mxu0 %v1889
        %1941 = vmatpush.bf16.msra.mxu0 %v1885
        %1942 = vmatpush.bf16.msra.mxu0 %v1881
        %1943 = vmatpush.bf16.msra.mxu0 %v1877
        %1944 = vmatpush.bf16.msra.mxu0 %v1873
        %1945 = vmatmul.bf16.gmra.mxu0 %v1734
        %v1946 = vpop.f32.mrf.mxu0
        %v1947 = vadd.f32 %v1769, %v1946
        %v1948 = vpop.f32.mrf.mxu0
        %v1949 = vadd.f32 %v1769, %v1948
        %1950 = vdwg.mxu0
        %1951 = vmatpush.bf16.msra.mxu0 %v1902
        %1952 = vmatpush.bf16.msra.mxu0 %v1898
        %1953 = vmatpush.bf16.msra.mxu0 %v1894
        %1954 = vmatpush.bf16.msra.mxu0 %v1890
        %1955 = vmatpush.bf16.msra.mxu0 %v1886
        %1956 = vmatpush.bf16.msra.mxu0 %v1882
        %1957 = vmatpush.bf16.msra.mxu0 %v1878
        %1958 = vmatpush.bf16.msra.mxu0 %v1874
        %1959 = vmatmul.bf16.gmra.mxu0 %v1734
        %v1960 = vpop.f32.mrf.mxu0
        %v1961 = vadd.f32 %v1770, %v1960
        %v1962 = vpop.f32.mrf.mxu0
        %v1963 = vadd.f32 %v1770, %v1962
        %1964 = vdwg.mxu0
        %1965 = vmatpush.bf16.msra.mxu0 %v1903
        %1966 = vmatpush.bf16.msra.mxu0 %v1899
        %1967 = vmatpush.bf16.msra.mxu0 %v1895
        %1968 = vmatpush.bf16.msra.mxu0 %v1891
        %1969 = vmatpush.bf16.msra.mxu0 %v1887
        %1970 = vmatpush.bf16.msra.mxu0 %v1883
        %1971 = vmatpush.bf16.msra.mxu0 %v1879
        %1972 = vmatpush.bf16.msra.mxu0 %v1875
        %1973 = vmatmul.bf16.gmra.mxu0 %v1734
        %v1974 = vpop.f32.mrf.mxu0
        %v1975 = vadd.f32 %v1771, %v1974
        %v1976 = vpop.f32.mrf.mxu0
        %v1977 = vadd.f32 %v1771, %v1976
        %1978 = vdwg.mxu0
        %1979 = vmatpush.bf16.msra.mxu0 %v1904
        %1980 = vmatpush.bf16.msra.mxu0 %v1900
        %1981 = vmatpush.bf16.msra.mxu0 %v1896
        %1982 = vmatpush.bf16.msra.mxu0 %v1892
        %1983 = vmatpush.bf16.msra.mxu0 %v1888
        %1984 = vmatpush.bf16.msra.mxu0 %v1884
        %1985 = vmatpush.bf16.msra.mxu0 %v1880
        %1986 = vmatpush.bf16.msra.mxu0 %v1876
        %1987 = vmatmul.bf16.gmra.mxu0 %v1734
        %v1988 = vpop.f32.mrf.mxu0
        %v1989 = vadd.f32 %v1772, %v1988
        %v1990 = vpop.f32.mrf.mxu0
        %v1991 = vadd.f32 %v1772, %v1990
        %1992 = vdwg.mxu0
        %v1993 = vmul.f32 %v1947, 0.5
        %v1994 = vmul.f32 %v1961, 0.5
        %v1995 = vmul.f32 %v1975, 0.5
        %v1996 = vmul.f32 %v1989, 0.5
        %v1997 = vmul.f32 %v1949, 0.5
        %v1998 = vmul.f32 %v1963, 0.5
        %v1999 = vmul.f32 %v1977, 0.5
        %v2000 = vmul.f32 %v1991, 0.5
        %v2001 = vmul.f32 %v1947, 0.044715
        %v2002 = vmul.f32 %v1961, 0.044715
        %v2003 = vmul.f32 %v1975, 0.044715
        %v2004 = vmul.f32 %v1989, 0.044715
        %v2005 = vmul.f32 %v1949, 0.044715
        %v2006 = vmul.f32 %v1963, 0.044715
        %v2007 = vmul.f32 %v1977, 0.044715
        %v2008 = vmul.f32 %v1991, 0.044715
        %v2009 = vmul.f32 %v2001, %v1947
        %v2010 = vmul.f32 %v2002, %v1961
        %v2011 = vmul.f32 %v2003, %v1975
        %v2012 = vmul.f32 %v2004, %v1989
        %v2013 = vmul.f32 %v2005, %v1949
        %v2014 = vmul.f32 %v2006, %v1963
        %v2015 = vmul.f32 %v2007, %v1977
        %v2016 = vmul.f32 %v2008, %v1991
        %v2017 = vmul.f32 %v2009, %v1947
        %v2018 = vmul.f32 %v2010, %v1961
        %v2019 = vmul.f32 %v2011, %v1975
        %v2020 = vmul.f32 %v2012, %v1989
        %v2021 = vmul.f32 %v2013, %v1949
        %v2022 = vmul.f32 %v2014, %v1963
        %v2023 = vmul.f32 %v2015, %v1977
        %v2024 = vmul.f32 %v2016, %v1991
        %v2025 = vadd.f32 %v1947, %v2017
        %v2026 = vadd.f32 %v1961, %v2018
        %v2027 = vadd.f32 %v1975, %v2019
        %v2028 = vadd.f32 %v1989, %v2020
        %v2029 = vadd.f32 %v1949, %v2021
        %v2030 = vadd.f32 %v1963, %v2022
        %v2031 = vadd.f32 %v1977, %v2023
        %v2032 = vadd.f32 %v1991, %v2024
        %v2033 = vmul.f32 %v2025, 0.7978846
        %v2034 = vmul.f32 %v2026, 0.7978846
        %v2035 = vmul.f32 %v2027, 0.7978846
        %v2036 = vmul.f32 %v2028, 0.7978846
        %v2037 = vmul.f32 %v2029, 0.7978846
        %v2038 = vmul.f32 %v2030, 0.7978846
        %v2039 = vmul.f32 %v2031, 0.7978846
        %v2040 = vmul.f32 %v2032, 0.7978846
        %v2041 = vtanh.pop %v2033
        %v2042 = vtanh.pop %v2034
        %v2043 = vtanh.pop %v2035
        %v2044 = vtanh.pop %v2036
        %v2045 = vtanh.pop %v2037
        %v2046 = vtanh.pop %v2038
        %v2047 = vtanh.pop %v2039
        %v2048 = vtanh.pop %v2040
        %v2049 = vadd.f32 %v2041, 1.0
        %v2050 = vadd.f32 %v2042, 1.0
        %v2051 = vadd.f32 %v2043, 1.0
        %v2052 = vadd.f32 %v2044, 1.0
        %v2053 = vadd.f32 %v2045, 1.0
        %v2054 = vadd.f32 %v2046, 1.0
        %v2055 = vadd.f32 %v2047, 1.0
        %v2056 = vadd.f32 %v2048, 1.0
        %v2057 = vmul.f32 %v1993, %v2049
        %v2058 = vmul.f32 %v1994, %v2050
        %v2059 = vmul.f32 %v1995, %v2051
        %v2060 = vmul.f32 %v1996, %v2052
        %v2061 = vmul.f32 %v1997, %v2053
        %v2062 = vmul.f32 %v1998, %v2054
        %v2063 = vmul.f32 %v1999, %v2055
        %v2064 = vmul.f32 %v2000, %v2056
        %v2065 = vpack.c.bf16 %v2061, %v2057
        %v2066 = vpack.c.bf16 %v2062, %v2058
        %v2067 = vpack.c.bf16 %v2063, %v2059
        %v2068 = vpack.c.bf16 %v2064, %v2060
        %v2069 = vld [vmem:[#allocation16] sm:$0xf]
        %v2070 = vld [vmem:[#allocation16 + $0x4] sm:$0xf]
        %v2071 = vld [vmem:[#allocation16 + $0x8] sm:$0xf]
        %v2072 = vld [vmem:[#allocation16 + $0xc] sm:$0xf]
        %v2073 = vld [vmem:[#allocation16 + $0x10] sm:$0xf]
        %v2074 = vld [vmem:[#allocation16 + $0x14] sm:$0xf]
        %v2075 = vld [vmem:[#allocation16 + $0x18] sm:$0xf]
        %v2076 = vld [vmem:[#allocation16 + $0x1c] sm:$0xf]
        %v2077 = vld [vmem:[#allocation16 + $0x20] sm:$0xf]
        %v2078 = vld [vmem:[#allocation16 + $0x24] sm:$0xf]
        %v2079 = vld [vmem:[#allocation16 + $0x28] sm:$0xf]
        %v2080 = vld [vmem:[#allocation16 + $0x2c] sm:$0xf]
        %v2081 = vld [vmem:[#allocation16 + $0x30] sm:$0xf]
        %v2082 = vld [vmem:[#allocation16 + $0x34] sm:$0xf]
        %v2083 = vld [vmem:[#allocation16 + $0x38] sm:$0xf]
        %v2084 = vld [vmem:[#allocation16 + $0x3c] sm:$0xf]
        %v2085 = vld [vmem:[#allocation16 + $0x40] sm:$0xf]
        %v2086 = vld [vmem:[#allocation16 + $0x44] sm:$0xf]
        %v2087 = vld [vmem:[#allocation16 + $0x48] sm:$0xf]
        %v2088 = vld [vmem:[#allocation16 + $0x4c] sm:$0xf]
        %v2089 = vld [vmem:[#allocation16 + $0x50] sm:$0xf]
        %v2090 = vld [vmem:[#allocation16 + $0x54] sm:$0xf]
        %v2091 = vld [vmem:[#allocation16 + $0x58] sm:$0xf]
        %v2092 = vld [vmem:[#allocation16 + $0x5c] sm:$0xf]
        %v2093 = vld [vmem:[#allocation16 + $0x60] sm:$0xf]
        %v2094 = vld [vmem:[#allocation16 + $0x64] sm:$0xf]
        %v2095 = vld [vmem:[#allocation16 + $0x68] sm:$0xf]
        %v2096 = vld [vmem:[#allocation16 + $0x6c] sm:$0xf]
        %v2097 = vld [vmem:[#allocation16 + $0x70] sm:$0xf]
        %v2098 = vld [vmem:[#allocation16 + $0x74] sm:$0xf]
        %v2099 = vld [vmem:[#allocation16 + $0x78] sm:$0xf]
        %v2100 = vld [vmem:[#allocation16 + $0x7c] sm:$0xf]
        %v2101 = vld [vmem:[#allocation16 + $0x80] sm:$0xf]
        %v2102 = vld [vmem:[#allocation16 + $0x84] sm:$0xf]
        %v2103 = vld [vmem:[#allocation16 + $0x88] sm:$0xf]
        %v2104 = vld [vmem:[#allocation16 + $0x8c] sm:$0xf]
        %v2105 = vld [vmem:[#allocation16 + $0x90] sm:$0xf]
        %v2106 = vld [vmem:[#allocation16 + $0x94] sm:$0xf]
        %v2107 = vld [vmem:[#allocation16 + $0x98] sm:$0xf]
        %v2108 = vld [vmem:[#allocation16 + $0x9c] sm:$0xf]
        %v2109 = vld [vmem:[#allocation16 + $0xa0] sm:$0xf]
        %v2110 = vld [vmem:[#allocation16 + $0xa4] sm:$0xf]
        %v2111 = vld [vmem:[#allocation16 + $0xa8] sm:$0xf]
        %v2112 = vld [vmem:[#allocation16 + $0xac] sm:$0xf]
        %v2113 = vld [vmem:[#allocation16 + $0xb0] sm:$0xf]
        %v2114 = vld [vmem:[#allocation16 + $0xb4] sm:$0xf]
        %v2115 = vld [vmem:[#allocation16 + $0xb8] sm:$0xf]
        %v2116 = vld [vmem:[#allocation16 + $0xbc] sm:$0xf]
        %v2117 = vld [vmem:[#allocation16 + $0xc0] sm:$0xf]
        %v2118 = vld [vmem:[#allocation16 + $0xc4] sm:$0xf]
        %v2119 = vld [vmem:[#allocation16 + $0xc8] sm:$0xf]
        %v2120 = vld [vmem:[#allocation16 + $0xcc] sm:$0xf]
        %v2121 = vld [vmem:[#allocation16 + $0xd0] sm:$0xf]
        %v2122 = vld [vmem:[#allocation16 + $0xd4] sm:$0xf]
        %v2123 = vld [vmem:[#allocation16 + $0xd8] sm:$0xf]
        %v2124 = vld [vmem:[#allocation16 + $0xdc] sm:$0xf]
        %v2125 = vld [vmem:[#allocation16 + $0xe0] sm:$0xf]
        %v2126 = vld [vmem:[#allocation16 + $0xe4] sm:$0xf]
        %v2127 = vld [vmem:[#allocation16 + $0xe8] sm:$0xf]
        %v2128 = vld [vmem:[#allocation16 + $0xec] sm:$0xf]
        %v2129 = vld [vmem:[#allocation16 + $0xf0] sm:$0xf]
        %v2130 = vld [vmem:[#allocation16 + $0xf4] sm:$0xf]
        %v2131 = vld [vmem:[#allocation16 + $0xf8] sm:$0xf]
        %v2132 = vld [vmem:[#allocation16 + $0xfc] sm:$0xf]
        %v2133 = vld [vmem:[%s14] sm:$0x1]
        %v2135 = vperm.slane %v2133, 0
        %v2201 = vunpack.c.l.b16 %v2069
        %v2202 = vunpack.c.l.b16 %v2070
        %v2203 = vunpack.c.l.b16 %v2071
        %v2204 = vunpack.c.l.b16 %v2072
        %v2205 = vunpack.c.l.b16 %v2073
        %v2206 = vunpack.c.l.b16 %v2074
        %v2207 = vunpack.c.l.b16 %v2075
        %v2208 = vunpack.c.l.b16 %v2076
        %v2209 = vunpack.c.l.b16 %v2077
        %v2210 = vunpack.c.l.b16 %v2078
        %v2211 = vunpack.c.l.b16 %v2079
        %v2212 = vunpack.c.l.b16 %v2080
        %v2213 = vunpack.c.l.b16 %v2081
        %v2214 = vunpack.c.l.b16 %v2082
        %v2215 = vunpack.c.l.b16 %v2083
        %v2216 = vunpack.c.l.b16 %v2084
        %v2217 = vunpack.c.l.b16 %v2085
        %v2218 = vunpack.c.l.b16 %v2086
        %v2219 = vunpack.c.l.b16 %v2087
        %v2220 = vunpack.c.l.b16 %v2088
        %v2221 = vunpack.c.l.b16 %v2089
        %v2222 = vunpack.c.l.b16 %v2090
        %v2223 = vunpack.c.l.b16 %v2091
        %v2224 = vunpack.c.l.b16 %v2092
        %v2225 = vunpack.c.l.b16 %v2093
        %v2226 = vunpack.c.l.b16 %v2094
        %v2227 = vunpack.c.l.b16 %v2095
        %v2228 = vunpack.c.l.b16 %v2096
        %v2229 = vunpack.c.l.b16 %v2097
        %v2230 = vunpack.c.l.b16 %v2098
        %v2231 = vunpack.c.l.b16 %v2099
        %v2232 = vunpack.c.l.b16 %v2100
        %v2233 = vunpack.c.l.b16 %v2101
        %v2234 = vunpack.c.l.b16 %v2102
        %v2235 = vunpack.c.l.b16 %v2103
        %v2236 = vunpack.c.l.b16 %v2104
        %v2237 = vunpack.c.l.b16 %v2105
        %v2238 = vunpack.c.l.b16 %v2106
        %v2239 = vunpack.c.l.b16 %v2107
        %v2240 = vunpack.c.l.b16 %v2108
        %v2241 = vunpack.c.l.b16 %v2109
        %v2242 = vunpack.c.l.b16 %v2110
        %v2243 = vunpack.c.l.b16 %v2111
        %v2244 = vunpack.c.l.b16 %v2112
        %v2245 = vunpack.c.l.b16 %v2113
        %v2246 = vunpack.c.l.b16 %v2114
        %v2247 = vunpack.c.l.b16 %v2115
        %v2248 = vunpack.c.l.b16 %v2116
        %v2249 = vunpack.c.l.b16 %v2117
        %v2250 = vunpack.c.l.b16 %v2118
        %v2251 = vunpack.c.l.b16 %v2119
        %v2252 = vunpack.c.l.b16 %v2120
        %v2253 = vunpack.c.l.b16 %v2121
        %v2254 = vunpack.c.l.b16 %v2122
        %v2255 = vunpack.c.l.b16 %v2123
        %v2256 = vunpack.c.l.b16 %v2124
        %v2257 = vunpack.c.l.b16 %v2125
        %v2258 = vunpack.c.l.b16 %v2126
        %v2259 = vunpack.c.l.b16 %v2127
        %v2260 = vunpack.c.l.b16 %v2128
        %v2261 = vunpack.c.l.b16 %v2129
        %v2262 = vunpack.c.l.b16 %v2130
        %v2263 = vunpack.c.l.b16 %v2131
        %v2264 = vunpack.c.l.b16 %v2132
        %v2265 = vpack.c.b16 %v2202, %v2201
        %v2266 = vpack.c.b16 %v2204, %v2203
        %v2267 = vpack.c.b16 %v2206, %v2205
        %v2268 = vpack.c.b16 %v2208, %v2207
        %v2269 = vpack.c.b16 %v2210, %v2209
        %v2270 = vpack.c.b16 %v2212, %v2211
        %v2271 = vpack.c.b16 %v2214, %v2213
        %v2272 = vpack.c.b16 %v2216, %v2215
        %v2273 = vpack.c.b16 %v2218, %v2217
        %v2274 = vpack.c.b16 %v2220, %v2219
        %v2275 = vpack.c.b16 %v2222, %v2221
        %v2276 = vpack.c.b16 %v2224, %v2223
        %v2277 = vpack.c.b16 %v2226, %v2225
        %v2278 = vpack.c.b16 %v2228, %v2227
        %v2279 = vpack.c.b16 %v2230, %v2229
        %v2280 = vpack.c.b16 %v2232, %v2231
        %v2281 = vpack.c.b16 %v2234, %v2233
        %v2282 = vpack.c.b16 %v2236, %v2235
        %v2283 = vpack.c.b16 %v2238, %v2237
        %v2284 = vpack.c.b16 %v2240, %v2239
        %v2285 = vpack.c.b16 %v2242, %v2241
        %v2286 = vpack.c.b16 %v2244, %v2243
        %v2287 = vpack.c.b16 %v2246, %v2245
        %v2288 = vpack.c.b16 %v2248, %v2247
        %v2289 = vpack.c.b16 %v2250, %v2249
        %v2290 = vpack.c.b16 %v2252, %v2251
        %v2291 = vpack.c.b16 %v2254, %v2253
        %v2292 = vpack.c.b16 %v2256, %v2255
        %v2293 = vpack.c.b16 %v2258, %v2257
        %v2294 = vpack.c.b16 %v2260, %v2259
        %v2295 = vpack.c.b16 %v2262, %v2261
        %v2296 = vpack.c.b16 %v2264, %v2263
        %2329 = vmatpush.bf16.msra.mxu0 %v2272
        %2330 = vmatpush.bf16.msra.mxu0 %v2271
        %2331 = vmatpush.bf16.msra.mxu0 %v2270
        %2332 = vmatpush.bf16.msra.mxu0 %v2269
        %2333 = vmatpush.bf16.msra.mxu0 %v2268
        %2334 = vmatpush.bf16.msra.mxu0 %v2267
        %2335 = vmatpush.bf16.msra.mxu0 %v2266
        %2336 = vmatpush.bf16.msra.mxu0 %v2265
        %2337 = vmatmul.bf16.gmra.mxu0 %v2065
        %v2338 = vpop.f32.mrf.mxu0
        %v2339 = vadd.f32 %v2135, %v2338
        %v2340 = vpop.f32.mrf.mxu0
        %v2341 = vadd.f32 %v2135, %v2340
        %2342 = vdwg.mxu0
        %2343 = vmatpush.bf16.msra.mxu0 %v2280
        %2344 = vmatpush.bf16.msra.mxu0 %v2279
        %2345 = vmatpush.bf16.msra.mxu0 %v2278
        %2346 = vmatpush.bf16.msra.mxu0 %v2277
        %2347 = vmatpush.bf16.msra.mxu0 %v2276
        %2348 = vmatpush.bf16.msra.mxu0 %v2275
        %2349 = vmatpush.bf16.msra.mxu0 %v2274
        %2350 = vmatpush.bf16.msra.mxu0 %v2273
        %2351 = vmatmul.bf16.gmra.mxu0 %v2066
        %v2352 = vpop.f32.mrf.mxu0
        %v2353 = vadd.f32 %v2339, %v2352
        %v2354 = vpop.f32.mrf.mxu0
        %v2355 = vadd.f32 %v2341, %v2354
        %2356 = vdwg.mxu0
        %2357 = vmatpush.bf16.msra.mxu0 %v2288
        %2358 = vmatpush.bf16.msra.mxu0 %v2287
        %2359 = vmatpush.bf16.msra.mxu0 %v2286
        %2360 = vmatpush.bf16.msra.mxu0 %v2285
        %2361 = vmatpush.bf16.msra.mxu0 %v2284
        %2362 = vmatpush.bf16.msra.mxu0 %v2283
        %2363 = vmatpush.bf16.msra.mxu0 %v2282
        %2364 = vmatpush.bf16.msra.mxu0 %v2281
        %2365 = vmatmul.bf16.gmra.mxu0 %v2067
        %v2366 = vpop.f32.mrf.mxu0
        %v2367 = vadd.f32 %v2353, %v2366
        %v2368 = vpop.f32.mrf.mxu0
        %v2369 = vadd.f32 %v2355, %v2368
        %2370 = vdwg.mxu0
        %2371 = vmatpush.bf16.msra.mxu0 %v2296
        %2372 = vmatpush.bf16.msra.mxu0 %v2295
        %2373 = vmatpush.bf16.msra.mxu0 %v2294
        %2374 = vmatpush.bf16.msra.mxu0 %v2293
        %2375 = vmatpush.bf16.msra.mxu0 %v2292
        %2376 = vmatpush.bf16.msra.mxu0 %v2291
        %2377 = vmatpush.bf16.msra.mxu0 %v2290
        %2378 = vmatpush.bf16.msra.mxu0 %v2289
        %2379 = vmatmul.bf16.gmra.mxu0 %v2068
        %v2380 = vpop.f32.mrf.mxu0
        %v2381 = vadd.f32 %v2367, %v2380
        %v2382 = vpop.f32.mrf.mxu0
        %v2383 = vadd.f32 %v2369, %v2382
        %2384 = vdwg.mxu0
        %v2385 = vadd.f32 %v1680, %v2381
        %v2386 = vadd.f32 %v1681, %v2383
        %v2387 = vld [vmem:[%s679] sm:$0xff]
        %v2388 = vld [vmem:[%s679 + $0x8] sm:$0xff]
        %2390 = vset.pattern.permute.xlu0 0
        %2391 = vperm.xlu0 %2390, %v2387
        %v2392 = vpop.permute.xlu0 %2391
        %2395 = vset.pattern.permute.xlu0 0
        %2396 = vperm.xlu0 %2395, %v2388
        %v2397 = vpop.permute.xlu0 %2396
        %v2399 = vmul.f32 %v2385, %v2392
        %v2400 = vmul.f32 %v2386, %v2397
        %2401 = vst [vmem:[%s664] sm:$0xff] %v2399
        %2402 = vst [vmem:[%s664 + $0x8] sm:$0xff] %v2400
        %s2403 = sand.u32 %s389, 1
        %s2404 = scalar_lea.sflag [#allocation7], %s2403
        %s2405 = sand.u32 %s389, 1
        %s2406 = smul.addr %s2405, 16
        %s2407 = scalar_lea.vmem [#allocation17], %s2406
        // Predicated region
        $region113: #{tpu_custom_call.1} parent=79 // pred_check
          %p2408 = pneg %p399
        $region114: #{tpu_custom_call.1} parent=79 // pred_check_branch
          %2410 = sbr.rel (%p2408) target = $region116
        $region115: #{tpu_custom_call.1} parent=79 // pred_region
          %s2411 = smul.u32 2, %s40
          %2413 = vsyncadd %s2404, 0
          %s2414 = smul.addr %s39, 4
          %s2415 = sadd.s32 %s2411, %s2414
          %s2416 = smul.addr %s2415, 8
          %s2417 = scalar_lea.hbm %s15, %s2416
          %s2418 = sshll.u32 %s2407, 4
          %s2419 = int_to_ptr.vmem [resolvable:$true] %s2418
          %s2420 = sshll.u32 %s2417, 4
          %s2421 = int_to_ptr.hbm [resolvable:$true] %s2420
          %2426 = dma.vmem_to_hbm [thread:$0]  %s2419, 256, %s2421, %s2404, 128, 128, 8
        $region116: #{tpu_custom_call.1} parent=79 // pred_fallthru
          _
      $region80: #{tpu_custom_call.1} parent=5 // pred_fallthru
        _
      %p2427 = scmp.le.s32.totalorder 2, %s30
      // Predicated region
      $region117: #{tpu_custom_call.1} parent=5 // pred_check
        %p2428 = pneg %p2427
      $region118: #{tpu_custom_call.1} parent=5 // pred_check_branch
        %2430 = sbr.rel (%p2428) target = $region120
      $region119: #{tpu_custom_call.1} parent=5 // pred_region
        %s2431 = ssub.s32 %s30, 2
        // Predicated region
        $region121: #{tpu_custom_call.1} parent=119 // pred_check
          %p2432 = pneg %p405
        $region122: #{tpu_custom_call.1} parent=119 // pred_check_branch
          %2434 = sbr.rel (%p2432) target = $region124
        $region123: #{tpu_custom_call.1} parent=119 // pred_region
          %s2435 = sand.u32 %s390, 1
          %s2436 = scalar_lea.sflag [#allocation7], %s2435
          %s2437 = sand.u32 %s390, 1
          %s2438 = smul.addr %s2437, 16
          %s2439 = scalar_lea.vmem [#allocation17], %s2438
          %2441 = dma.done %s2436, 256
        $region124: #{tpu_custom_call.1} parent=119 // pred_fallthru
          _
      $region120: #{tpu_custom_call.1} parent=5 // pred_fallthru
        _
    $region6: #{tpu_custom_call.1} parent=1 // loop_footer
      %s34 = sadd.s32 1, %s30
    $region7: #{tpu_custom_call.1} parent=1 // loop_footer_branch
      %29 = sbr.rel target = $region3
    $region8: #{tpu_custom_call.1} parent=1 // loop_exit
      _
    %2442 = vsyncpa [#allocation6], 1
    %s2443 = scalar_lea.sflag [#allocation6], 1
    %2444 = vsyncpa %s2443, 1
    %2445 = vsyncpa [#allocation9], 1
    %2446 = vsyncpa [#allocation12], 1
    %2447 = vsyncpa [#allocation15], 1
    %2448 = vsyncpa [#allocation7], 1
    %s2449 = scalar_lea.sflag [#allocation7], 1
    %2450 = vsyncpa %s2449, 1

</llo_original>
